<compile_context>
chip_gen: v7x
topology: tpu7x:2x2x1
jax: 0.10.0
libtpu: 0.0.40
codegen_flags: <defaults>
</compile_context>

<pallas_src>
import functools

import jax
import jax.numpy as jnp
import numpy as np
from jax.experimental import pallas as pl
from jax.experimental.pallas import tpu as pltpu

# ---------------- model hyper-parameters (small, deterministic) ----------------
VOCAB = 50
EMB = 16
SENT_H = 4          # hard-coded in the reference: Ori_SentAttNet(..., sent_hidden_size=4)
NEWS_H = 8          # news_hidden_size
DAYS_H = 16         # days_hidden_size
NUM_CLASSES = 2

_GATE_LANES = 128            # each of r/z/n occupies its own 128-lane block
_GW = 3 * _GATE_LANES        # packed gate width (fwd lanes 0:H, bwd lanes H:2H of each block)


# ---------------- host-side parameter packing (numpy, done once) ----------------
def _align8(n):
    return (n + 7) // 8 * 8


class _SlabBuilder:
    """Packs many small matrices into one [R, 384] f32 slab, 8-row aligned per piece."""

    def __init__(self, lanes):
        self.lanes = lanes
        self.blocks = []
        self.rows = 0

    def add(self, mat):
        mat = np.asarray(mat, np.float32)
        r, c = mat.shape
        assert c <= self.lanes
        off = self.rows
        blk = np.zeros((_align8(r), self.lanes), np.float32)
        blk[:r, :c] = mat
        self.blocks.append(blk)
        self.rows += blk.shape[0]
        return off

    def finish(self):
        return np.concatenate(self.blocks, axis=0)


def _pack_input_gates(w_f, w_b, H):
    """[In,3H] fwd + [In,3H] bwd (gate order r,z,n) -> [In, 3*128]:
    gate g lives in lanes [g*128, g*128+2H): fwd in 0:H, bwd in H:2H of the block."""
    w_f = np.asarray(w_f, np.float32)
    w_b = np.asarray(w_b, np.float32)
    out = np.zeros((w_f.shape[0], _GW), np.float32)
    for g in range(3):
        out[:, g * _GATE_LANES:g * _GATE_LANES + H] = w_f[:, g * H:(g + 1) * H]
        out[:, g * _GATE_LANES + H:g * _GATE_LANES + 2 * H] = w_b[:, g * H:(g + 1) * H]
    return out


def _pack_hidden_gates(wh_f, wh_b, H):
    """Block-diagonal recurrent weight for the lane-packed hidden state [fwd | bwd]."""
    wh_f = np.asarray(wh_f, np.float32)
    wh_b = np.asarray(wh_b, np.float32)
    out = np.zeros((2 * H, _GW), np.float32)
    for g in range(3):
        out[0:H, g * _GATE_LANES:g * _GATE_LANES + H] = wh_f[:, g * H:(g + 1) * H]
        out[H:2 * H, g * _GATE_LANES + H:g * _GATE_LANES + 2 * H] = wh_b[:, g * H:(g + 1) * H]
    return out


def _pack_level(builder, gru, att, H):
    wi_f, wh_f, bi_f, bh_f, wi_b, wh_b, bi_b, bh_b = gru
    w_att, b_att, ctx = att
    return {
        "In": int(np.asarray(wi_f).shape[0]),
        "H": int(H),
        "wi": builder.add(_pack_input_gates(wi_f, wi_b, H)),
        "bi": builder.add(_pack_input_gates(bi_f, bi_b, H)),
        "wh": builder.add(_pack_hidden_gates(wh_f, wh_b, H)),
        "bh": builder.add(_pack_input_gates(bh_f, bh_b, H)),
        "wa": builder.add(np.asarray(w_att, np.float32)),
        "ba": builder.add(np.asarray(b_att, np.float32)),
        "cx": builder.add(np.asarray(ctx, np.float32).T),
    }


def pack_params(params):
    """One-time host-side packing of all parameters into a single lane-padded slab."""
    b = _SlabBuilder(_GW)
    emb = np.asarray(params["embedding"], np.float32)
    V, E = emb.shape
    off = {
        "V": int(V), "Vp": int(_align8(V)), "E": int(E),
        "emb": b.add(emb),
        "sent": _pack_level(b, *params["sent"], SENT_H),
        "news": _pack_level(b, *params["news"], NEWS_H),
        "days": _pack_level(b, *params["days"], DAYS_H),
    }
    w_fc, b_fc = params["fc"]
    off["fc_w"] = b.add(np.asarray(w_fc, np.float32))
    off["fc_b"] = b.add(np.asarray(b_fc, np.float32))
    off["fc_in"] = int(np.asarray(w_fc).shape[0])
    off["C"] = int(np.asarray(w_fc).shape[1])
    return {"slab": jnp.asarray(b.finish()), "off": off}


# ---------------- kernel-side math ----------------
def _gru_attention_level(x, T, Bp, slab, o):
    """One HAN level (fused bi-GRU + additive attention) on time-major input x [T*Bp, In].

    Returns the attention-pooled output [Bp, 128] (valid lanes 0:2H, padded lanes stay 0).
    """
    H, In = o["H"], o["In"]
    F = 2 * H

    wi = slab[o["wi"]:o["wi"] + In, :]           # [In, 384]
    bi = slab[o["bi"]:o["bi"] + 1, :]            # [1, 384]
    wh = slab[o["wh"]:o["wh"] + F, :]            # [2H, 384] block-diagonal
    bh = slab[o["bh"]:o["bh"] + 1, :]            # [1, 384]

    # all input-gate projections, both directions, all timesteps: one matmul
    gi_all = jnp.dot(x, wi, preferred_element_type=jnp.float32) + bi        # [T*Bp, 384]

    lane_h = jax.lax.broadcasted_iota(jnp.int32, (Bp, _GATE_LANES), 1)
    fwd_half = lane_h < H                                                   # [Bp, 128]
    fwd_sel = jnp.concatenate([fwd_half, fwd_half, fwd_half], axis=1)       # [Bp, 384]

    # fused fwd+bwd recurrence: step k uses fwd gi(k) and bwd gi(T-1-k)
    h = jnp.zeros((Bp, _GATE_LANES), jnp.float32)
    steps = []
    for k in range(T):
        gi_f = gi_all[k * Bp:(k + 1) * Bp, :]
        gi_b = gi_all[(T - 1 - k) * Bp:(T - k) * Bp, :]
        gi = jnp.where(fwd_sel, gi_f, gi_b)
        gh = jnp.dot(h[:, 0:F], wh, preferred_element_type=jnp.float32) + bh
        r = jax.nn.sigmoid(gi[:, 0:_GATE_LANES] + gh[:, 0:_GATE_LANES])
        z = jax.nn.sigmoid(gi[:, _GATE_LANES:2 * _GATE_LANES] + gh[:, _GATE_LANES:2 * _GATE_LANES])
        n = jnp.tanh(gi[:, 2 * _GATE_LANES:3 * _GATE_LANES]
                     + r * gh[:, 2 * _GATE_LANES:3 * _GATE_LANES])
        h = (1.0 - z) * n + z * h
        steps.append(h)

    # time-aligned hidden states: fwd part from step t, bwd part from step T-1-t
    h_time = [jnp.where(fwd_half, steps[t], steps[T - 1 - t]) for t in range(T)]

    # additive attention: one stacked tanh matmul + block-row softmax (no lane concats)
    wa = slab[o["wa"]:o["wa"] + F, 0:F]
    ba = slab[o["ba"]:o["ba"] + 1, 0:F]
    cx = slab[o["cx"]:o["cx"] + 1, 0:F]
    hcat = jnp.concatenate(h_time, axis=0)                                  # [T*Bp, 128]
    u = jnp.tanh(jnp.dot(hcat[:, 0:F], wa, preferred_element_type=jnp.float32) + ba)
    sc = jnp.sum(u * cx, axis=-1, keepdims=True)                            # [T*Bp, 1]
    sc_t = [sc[t * Bp:(t + 1) * Bp, :] for t in range(T)]                   # T x [Bp, 1]
    m = sc_t[0]
    for t in range(1, T):
        m = jnp.maximum(m, sc_t[t])
    e_t = [jnp.exp(s - m) for s in sc_t]
    denom = e_t[0]
    for t in range(1, T):
        denom = denom + e_t[t]
    inv = 1.0 / denom
    out = (e_t[0] * inv) * h_time[0]
    for t in range(1, T):
        out = out + (e_t[t] * inv) * h_time[t]
    return out                                                              # [Bp, 128]


def _fused_han_kernel(ids_ref, slab_ref, out_ref, *, B, D, N, S, W, off):
    R = S * N * D * B
    E, Vp = off["E"], off["Vp"]

    # ---- embedding lookup + word mean, fused as a scaled one-hot count matmul ----
    ids = ids_ref[...]                                                      # [R, W] int32
    vocab_iota = jax.lax.broadcasted_iota(jnp.int32, (R, Vp), 1)
    inv_w = jnp.float32(1.0 / W)
    counts = jnp.zeros((R, Vp), jnp.float32)
    for w in range(W):
        counts = counts + jnp.where(vocab_iota == ids[:, w:w + 1], inv_w, 0.0)
    emb = slab_ref[off["emb"]:off["emb"] + Vp, 0:E]                         # rows >= V are zero
    x = jnp.dot(counts, emb, preferred_element_type=jnp.float32)            # [R, E] word-mean embs

    # ---- sentence -> news -> days (each level: fused bi-GRU + attention pooling) ----
    sent_out = _gru_attention_level(x, S, N * D * B, slab_ref, off["sent"])         # [N*D*B, 128]
    news_out = _gru_attention_level(sent_out[:, 0:2 * SENT_H], N, D * B,
                                    slab_ref, off["news"])                          # [D*B, 128]
    days_out = _gru_attention_level(news_out[:, 0:2 * NEWS_H], D, B,
                                    slab_ref, off["days"])                          # [B, 128]

    # ---- final FC ----
    fin, c = off["fc_in"], off["C"]
    w_fc = slab_ref[off["fc_w"]:off["fc_w"] + fin, 0:c]
    b_fc = slab_ref[off["fc_b"]:off["fc_b"] + 1, 0:c]
    out_ref[...] = jnp.dot(days_out[:, 0:fin], w_fc,
                           preferred_element_type=jnp.float32) + b_fc


def _full_spec(shape):
    nd = len(shape)
    return pl.BlockSpec(shape, lambda *_: (0,) * nd)


# ---------------- full forward ----------------
def sent_ori_han_forward(word_ids, packed):
    """word_ids: [B, D, N, S, W] int32 (same layout as the PyTorch input)."""
    B, D, N, S, W = word_ids.shape
    slab = packed["slab"]
    off = packed["off"]

    # pre-permute ids to time-major (s, n, d, b) so all in-kernel accesses are contiguous rows
    ids = jnp.transpose(word_ids, (3, 2, 1, 0, 4)).reshape(S * N * D * B, W).astype(jnp.int32)

    kern = functools.partial(_fused_han_kernel, B=B, D=D, N=N, S=S, W=W, off=off)
    return pl.pallas_call(
        kern,
        out_shape=jax.ShapeDtypeStruct((B, NUM_CLASSES), jnp.float32),
        grid=(1,),
        in_specs=[_full_spec(ids.shape), _full_spec(slab.shape)],
        out_specs=_full_spec((B, NUM_CLASSES)),
        compiler_params=pltpu.CompilerParams(dimension_semantics=("arbitrary",)),
    )(ids, slab)


# ---------------- independent pure-JAX reference (mirrors the PyTorch nested loops) ----------------
def _ref_gru_cell(h, xt, wi, wh, bi, bh, H):
    gi = jnp.dot(xt, wi) + bi
    gh = jnp.dot(h, wh) + bh
    r = jax.nn.sigmoid(gi[:, 0 * H:1 * H] + gh[:, 0 * H:1 * H])
    z = jax.nn.sigmoid(gi[:, 1 * H:2 * H] + gh[:, 1 * H:2 * H])
    n = jnp.tanh(gi[:, 2 * H:3 * H] + r * gh[:, 2 * H:3 * H])
    return (1.0 - z) * n + z * h


def _ref_bigru(x_t_list, gru, H):
    wi_f, wh_f, bi_f, bh_f, wi_b, wh_b, bi_b, bh_b = gru
    T = len(x_t_list)
    Bz = x_t_list[0].shape[0]
    h = jnp.zeros((Bz, H), jnp.float32)
    fwd = []
    for t in range(T):
        h = _ref_gru_cell(h, x_t_list[t], wi_f, wh_f, bi_f, bh_f, H)
        fwd.append(h)
    h = jnp.zeros((Bz, H), jnp.float32)
    bwd = [None] * T
    for t in range(T - 1, -1, -1):
        h = _ref_gru_cell(h, x_t_list[t], wi_b, wh_b, bi_b, bh_b, H)
        bwd[t] = h
    return [jnp.concatenate([fwd[t], bwd[t]], axis=-1) for t in range(T)]


def _ref_attention(h_list, w_att, b_att, ctx):
    scores = [jnp.dot(jnp.tanh(jnp.dot(ht, w_att) + b_att), ctx) for ht in h_list]
    s = jnp.concatenate(scores, axis=1)
    alpha = jax.nn.softmax(s, axis=1)
    out = jnp.zeros_like(h_list[0])
    for t, ht in enumerate(h_list):
        out = out + alpha[:, t:t + 1] * ht
    return out


def reference_forward(word_ids, params):
    emb = params["embedding"]
    x = jnp.take(emb, word_ids, axis=0)                   # [B, D, N, S, W, E]
    sent_x = jnp.mean(x, axis=4)                          # [B, D, N, S, E]
    B, D, N, S, E = sent_x.shape
    day_vecs = []
    for d in range(D):
        news_vecs = []
        for n in range(N):
            xs = [sent_x[:, d, n, t, :] for t in range(S)]
            hs = _ref_bigru(xs, params["sent"][0], SENT_H)
            news_vecs.append(_ref_attention(hs, *params["sent"][1]))
        hs = _ref_bigru(news_vecs, params["news"][0], NEWS_H)
        day_vecs.append(_ref_attention(hs, *params["news"][1]))
    hs = _ref_bigru(day_vecs, params["days"][0], DAYS_H)
    v = _ref_attention(hs, *params["days"][1])
    w_fc, b_fc = params["fc"]
    return jnp.dot(v, w_fc) + b_fc


# ---------------- deterministic parameter init ----------------
def _rnd(key, shape, scale=0.2):
    return (scale * jax.random.normal(key, shape)).astype(jnp.float32)


def _init_gru(key, in_dim, H):
    ks = jax.random.split(key, 8)
    return (_rnd(ks[0], (in_dim, 3 * H)), _rnd(ks[1], (H, 3 * H)),
            _rnd(ks[2], (1, 3 * H)), _rnd(ks[3], (1, 3 * H)),
            _rnd(ks[4], (in_dim, 3 * H)), _rnd(ks[5], (H, 3 * H)),
            _rnd(ks[6], (1, 3 * H)), _rnd(ks[7], (1, 3 * H)))


def _init_attn(key, F):
    ks = jax.random.split(key, 3)
    return (_rnd(ks[0], (F, F)), _rnd(ks[1], (1, F)), _rnd(ks[2], (F, 1)))


def init_params(key):
    ks = jax.random.split(key, 8)
    fc_ks = jax.random.split(ks[7], 2)
    return {
        "embedding": _rnd(ks[0], (VOCAB, EMB)),
        "sent": (_init_gru(ks[1], EMB, SENT_H), _init_attn(ks[2], 2 * SENT_H)),
        "news": (_init_gru(ks[3], 2 * SENT_H, NEWS_H), _init_attn(ks[4], 2 * NEWS_H)),
        "days": (_init_gru(ks[5], 2 * NEWS_H, DAYS_H), _init_attn(ks[6], 2 * DAYS_H)),
        "fc": (_rnd(fc_ks[0], (2 * DAYS_H, NUM_CLASSES)), _rnd(fc_ks[1], (1, NUM_CLASSES))),
    }


if __name__ == "__main__":
    B, D, N, S, W = 2, 4, 3, 3, 5   # batch, days_num, max_news, max_sent, max_word
    key = jax.random.PRNGKey(0)
    pkey, dkey = jax.random.split(key)
    params = init_params(pkey)
    word_ids = jax.random.randint(dkey, (B, D, N, S, W), 0, VOCAB, dtype=jnp.int32)

    packed = pack_params(params)                       # one-time host-side packing
    fwd = jax.jit(lambda ids: sent_ori_han_forward(ids, packed))
    out = jax.block_until_ready(fwd(word_ids))

    ref = reference_forward(word_ids, params)
    assert out.shape == (B, NUM_CLASSES)
    assert bool(jnp.all(jnp.isfinite(out)))
    np.testing.assert_allclose(np.asarray(out), np.asarray(ref), rtol=3e-3, atol=3e-3)
    print("KERNEL_OK")
</pallas_src>

<mosaic_0001>
module attributes {stable_mosaic.version = 11 : i64} {
  func.func @_fused_han_kernel(%arg0: i32, %arg1: memref<72x5xi32, #tpu.memory_space<vmem>>, %arg2: memref<344x384xf32, #tpu.memory_space<vmem>>, %arg3: memref<2x2xf32, #tpu.memory_space<vmem>>) attributes {dimension_semantics = [#tpu.dimension_semantics<arbitrary>], iteration_bounds = array<i64: 1>, scalar_prefetch = 0 : i64, scratch_operands = 0 : i64, tpu.core_type = #tpu.core_type<tc>, window_params = [{pipeline_mode = #tpu.pipeline_mode<synchronous>, transform_indices = @transform_0, window_bounds = array<i64: 72, 5>}, {pipeline_mode = #tpu.pipeline_mode<synchronous>, transform_indices = @transform_1, window_bounds = array<i64: 344, 384>}, {pipeline_mode = #tpu.pipeline_mode<synchronous>, transform_indices = @transform_2, window_bounds = array<i64: 2, 2>}]} {
    %c0 = arith.constant 0 : index
    %c0_0 = arith.constant 0 : index
    %0 = vector.load %arg1[%c0, %c0_0] : memref<72x5xi32, #tpu.memory_space<vmem>>, vector<72x5xi32>
    %1 = tpu.iota {dimensions = array<i32: 1>} : vector<72x56xi32>
    %cst = arith.constant 0.000000e+00 : f32
    %2 = vector.broadcast %cst : f32 to vector<72x56xf32>
    %3 = vector.extract_strided_slice %0 {offsets = [0, 0], sizes = [72, 1], strides = [1, 1]} : vector<72x5xi32> to vector<72x1xi32>
    %4 = vector.broadcast %3 : vector<72x1xi32> to vector<72x56xi32>
    %5 = arith.cmpi eq, %1, %4 : vector<72x56xi32>
    %cst_1 = arith.constant 2.000000e-01 : f32
    %cst_2 = arith.constant 0.000000e+00 : f32
    %6 = vector.broadcast %cst_1 : f32 to vector<72x56xf32>
    %7 = vector.broadcast %cst_2 : f32 to vector<72x56xf32>
    %8 = arith.select %5, %6, %7 : vector<72x56xi1>, vector<72x56xf32>
    %9 = arith.addf %2, %8 : vector<72x56xf32>
    %10 = vector.extract_strided_slice %0 {offsets = [0, 1], sizes = [72, 1], strides = [1, 1]} : vector<72x5xi32> to vector<72x1xi32>
    %11 = vector.broadcast %10 : vector<72x1xi32> to vector<72x56xi32>
    %12 = arith.cmpi eq, %1, %11 : vector<72x56xi32>
    %cst_3 = arith.constant 2.000000e-01 : f32
    %cst_4 = arith.constant 0.000000e+00 : f32
    %13 = vector.broadcast %cst_3 : f32 to vector<72x56xf32>
    %14 = vector.broadcast %cst_4 : f32 to vector<72x56xf32>
    %15 = arith.select %12, %13, %14 : vector<72x56xi1>, vector<72x56xf32>
    %16 = arith.addf %9, %15 : vector<72x56xf32>
    %17 = vector.extract_strided_slice %0 {offsets = [0, 2], sizes = [72, 1], strides = [1, 1]} : vector<72x5xi32> to vector<72x1xi32>
    %18 = vector.broadcast %17 : vector<72x1xi32> to vector<72x56xi32>
    %19 = arith.cmpi eq, %1, %18 : vector<72x56xi32>
    %cst_5 = arith.constant 2.000000e-01 : f32
    %cst_6 = arith.constant 0.000000e+00 : f32
    %20 = vector.broadcast %cst_5 : f32 to vector<72x56xf32>
    %21 = vector.broadcast %cst_6 : f32 to vector<72x56xf32>
    %22 = arith.select %19, %20, %21 : vector<72x56xi1>, vector<72x56xf32>
    %23 = arith.addf %16, %22 : vector<72x56xf32>
    %24 = vector.extract_strided_slice %0 {offsets = [0, 3], sizes = [72, 1], strides = [1, 1]} : vector<72x5xi32> to vector<72x1xi32>
    %25 = vector.broadcast %24 : vector<72x1xi32> to vector<72x56xi32>
    %26 = arith.cmpi eq, %1, %25 : vector<72x56xi32>
    %cst_7 = arith.constant 2.000000e-01 : f32
    %cst_8 = arith.constant 0.000000e+00 : f32
    %27 = vector.broadcast %cst_7 : f32 to vector<72x56xf32>
    %28 = vector.broadcast %cst_8 : f32 to vector<72x56xf32>
    %29 = arith.select %26, %27, %28 : vector<72x56xi1>, vector<72x56xf32>
    %30 = arith.addf %23, %29 : vector<72x56xf32>
    %31 = vector.extract_strided_slice %0 {offsets = [0, 4], sizes = [72, 1], strides = [1, 1]} : vector<72x5xi32> to vector<72x1xi32>
    %32 = vector.broadcast %31 : vector<72x1xi32> to vector<72x56xi32>
    %33 = arith.cmpi eq, %1, %32 : vector<72x56xi32>
    %cst_9 = arith.constant 2.000000e-01 : f32
    %cst_10 = arith.constant 0.000000e+00 : f32
    %34 = vector.broadcast %cst_9 : f32 to vector<72x56xf32>
    %35 = vector.broadcast %cst_10 : f32 to vector<72x56xf32>
    %36 = arith.select %33, %34, %35 : vector<72x56xi1>, vector<72x56xf32>
    %37 = arith.addf %30, %36 : vector<72x56xf32>
    %c0_11 = arith.constant 0 : index
    %c0_12 = arith.constant 0 : index
    %38 = vector.load %arg2[%c0_11, %c0_12] : memref<344x384xf32, #tpu.memory_space<vmem>>, vector<56x16xf32>
    %cst_13 = arith.constant dense<0.000000e+00> : vector<72x16xf32>
    %39 = tpu.matmul %37, %38, %cst_13 {dimension_numbers = #tpu.dot_dimension_numbers<[1], [0], [0], [1], [0, 0, 1, 1], [], []>} : vector<72x56xf32>, vector<56x16xf32>, vector<72x16xf32> -> vector<72x16xf32>
    %c56 = arith.constant 56 : index
    %c0_14 = arith.constant 0 : index
    %40 = vector.load %arg2[%c56, %c0_14] : memref<344x384xf32, #tpu.memory_space<vmem>>, vector<16x384xf32>
    %c72 = arith.constant 72 : index
    %c0_15 = arith.constant 0 : index
    %41 = vector.load %arg2[%c72, %c0_15] : memref<344x384xf32, #tpu.memory_space<vmem>>, vector<1x384xf32>
    %c80 = arith.constant 80 : index
    %c0_16 = arith.constant 0 : index
    %42 = vector.load %arg2[%c80, %c0_16] : memref<344x384xf32, #tpu.memory_space<vmem>>, vector<8x384xf32>
    %c88 = arith.constant 88 : index
    %c0_17 = arith.constant 0 : index
    %43 = vector.load %arg2[%c88, %c0_17] : memref<344x384xf32, #tpu.memory_space<vmem>>, vector<1x384xf32>
    %cst_18 = arith.constant dense<0.000000e+00> : vector<72x384xf32>
    %44 = tpu.matmul %39, %40, %cst_18 {dimension_numbers = #tpu.dot_dimension_numbers<[1], [0], [0], [1], [0, 0, 1, 1], [], []>} : vector<72x16xf32>, vector<16x384xf32>, vector<72x384xf32> -> vector<72x384xf32>
    %45 = vector.broadcast %41 : vector<1x384xf32> to vector<72x384xf32>
    %46 = arith.addf %44, %45 : vector<72x384xf32>
    %47 = tpu.iota {dimensions = array<i32: 1>} : vector<24x128xi32>
    %c4_i32 = arith.constant 4 : i32
    %48 = vector.broadcast %c4_i32 : i32 to vector<24x128xi32>
    %49 = arith.cmpi slt, %47, %48 : vector<24x128xi32>
    %50 = tpu.concatenate %49, %49, %49 in 1 : vector<24x128xi1>, vector<24x128xi1>, vector<24x128xi1> -> vector<24x384xi1>
    %cst_19 = arith.constant 0.000000e+00 : f32
    %51 = vector.broadcast %cst_19 : f32 to vector<24x128xf32>
    %52 = vector.extract_strided_slice %46 {offsets = [0, 0], sizes = [24, 384], strides = [1, 1]} : vector<72x384xf32> to vector<24x384xf32>
    %53 = vector.extract_strided_slice %46 {offsets = [48, 0], sizes = [24, 384], strides = [1, 1]} : vector<72x384xf32> to vector<24x384xf32>
    %54 = arith.select %50, %52, %53 : vector<24x384xi1>, vector<24x384xf32>
    %55 = vector.extract_strided_slice %51 {offsets = [0, 0], sizes = [24, 8], strides = [1, 1]} : vector<24x128xf32> to vector<24x8xf32>
    %cst_20 = arith.constant dense<0.000000e+00> : vector<24x384xf32>
    %56 = tpu.matmul %55, %42, %cst_20 {dimension_numbers = #tpu.dot_dimension_numbers<[1], [0], [0], [1], [0, 0, 1, 1], [], []>} : vector<24x8xf32>, vector<8x384xf32>, vector<24x384xf32> -> vector<24x384xf32>
    %57 = vector.broadcast %43 : vector<1x384xf32> to vector<24x384xf32>
    %58 = arith.addf %56, %57 : vector<24x384xf32>
    %59 = vector.extract_strided_slice %54 {offsets = [0, 0], sizes = [24, 128], strides = [1, 1]} : vector<24x384xf32> to vector<24x128xf32>
    %60 = vector.extract_strided_slice %58 {offsets = [0, 0], sizes = [24, 128], strides = [1, 1]} : vector<24x384xf32> to vector<24x128xf32>
    %61 = arith.addf %59, %60 : vector<24x128xf32>
    %62 = arith.negf %61 : vector<24x128xf32>
    %63 = math.exp %62 : vector<24x128xf32>
    %cst_21 = arith.constant 1.000000e+00 : f32
    %64 = vector.broadcast %cst_21 : f32 to vector<24x128xf32>
    %65 = arith.addf %64, %63 : vector<24x128xf32>
    %66 = arith.divf %64, %65 : vector<24x128xf32>
    %67 = vector.extract_strided_slice %54 {offsets = [0, 128], sizes = [24, 128], strides = [1, 1]} : vector<24x384xf32> to vector<24x128xf32>
    %68 = vector.extract_strided_slice %58 {offsets = [0, 128], sizes = [24, 128], strides = [1, 1]} : vector<24x384xf32> to vector<24x128xf32>
    %69 = arith.addf %67, %68 : vector<24x128xf32>
    %70 = arith.negf %69 : vector<24x128xf32>
    %71 = math.exp %70 : vector<24x128xf32>
    %cst_22 = arith.constant 1.000000e+00 : f32
    %72 = vector.broadcast %cst_22 : f32 to vector<24x128xf32>
    %73 = arith.addf %72, %71 : vector<24x128xf32>
    %74 = arith.divf %72, %73 : vector<24x128xf32>
    %75 = vector.extract_strided_slice %54 {offsets = [0, 256], sizes = [24, 128], strides = [1, 1]} : vector<24x384xf32> to vector<24x128xf32>
    %76 = vector.extract_strided_slice %58 {offsets = [0, 256], sizes = [24, 128], strides = [1, 1]} : vector<24x384xf32> to vector<24x128xf32>
    %77 = arith.mulf %66, %76 : vector<24x128xf32>
    %78 = arith.addf %75, %77 : vector<24x128xf32>
    %79 = math.tanh %78 : vector<24x128xf32>
    %cst_23 = arith.constant 1.000000e+00 : f32
    %80 = vector.broadcast %cst_23 : f32 to vector<24x128xf32>
    %81 = arith.subf %80, %74 : vector<24x128xf32>
    %82 = arith.mulf %81, %79 : vector<24x128xf32>
    %83 = arith.mulf %74, %51 : vector<24x128xf32>
    %84 = arith.addf %82, %83 : vector<24x128xf32>
    %85 = vector.extract_strided_slice %46 {offsets = [24, 0], sizes = [24, 384], strides = [1, 1]} : vector<72x384xf32> to vector<24x384xf32>
    %86 = vector.extract_strided_slice %46 {offsets = [24, 0], sizes = [24, 384], strides = [1, 1]} : vector<72x384xf32> to vector<24x384xf32>
    %87 = arith.select %50, %85, %86 : vector<24x384xi1>, vector<24x384xf32>
    %88 = vector.extract_strided_slice %84 {offsets = [0, 0], sizes = [24, 8], strides = [1, 1]} : vector<24x128xf32> to vector<24x8xf32>
    %cst_24 = arith.constant dense<0.000000e+00> : vector<24x384xf32>
    %89 = tpu.matmul %88, %42, %cst_24 {dimension_numbers = #tpu.dot_dimension_numbers<[1], [0], [0], [1], [0, 0, 1, 1], [], []>} : vector<24x8xf32>, vector<8x384xf32>, vector<24x384xf32> -> vector<24x384xf32>
    %90 = vector.broadcast %43 : vector<1x384xf32> to vector<24x384xf32>
    %91 = arith.addf %89, %90 : vector<24x384xf32>
    %92 = vector.extract_strided_slice %87 {offsets = [0, 0], sizes = [24, 128], strides = [1, 1]} : vector<24x384xf32> to vector<24x128xf32>
    %93 = vector.extract_strided_slice %91 {offsets = [0, 0], sizes = [24, 128], strides = [1, 1]} : vector<24x384xf32> to vector<24x128xf32>
    %94 = arith.addf %92, %93 : vector<24x128xf32>
    %95 = arith.negf %94 : vector<24x128xf32>
    %96 = math.exp %95 : vector<24x128xf32>
    %cst_25 = arith.constant 1.000000e+00 : f32
    %97 = vector.broadcast %cst_25 : f32 to vector<24x128xf32>
    %98 = arith.addf %97, %96 : vector<24x128xf32>
    %99 = arith.divf %97, %98 : vector<24x128xf32>
    %100 = vector.extract_strided_slice %87 {offsets = [0, 128], sizes = [24, 128], strides = [1, 1]} : vector<24x384xf32> to vector<24x128xf32>
    %101 = vector.extract_strided_slice %91 {offsets = [0, 128], sizes = [24, 128], strides = [1, 1]} : vector<24x384xf32> to vector<24x128xf32>
    %102 = arith.addf %100, %101 : vector<24x128xf32>
    %103 = arith.negf %102 : vector<24x128xf32>
    %104 = math.exp %103 : vector<24x128xf32>
    %cst_26 = arith.constant 1.000000e+00 : f32
    %105 = vector.broadcast %cst_26 : f32 to vector<24x128xf32>
    %106 = arith.addf %105, %104 : vector<24x128xf32>
    %107 = arith.divf %105, %106 : vector<24x128xf32>
    %108 = vector.extract_strided_slice %87 {offsets = [0, 256], sizes = [24, 128], strides = [1, 1]} : vector<24x384xf32> to vector<24x128xf32>
    %109 = vector.extract_strided_slice %91 {offsets = [0, 256], sizes = [24, 128], strides = [1, 1]} : vector<24x384xf32> to vector<24x128xf32>
    %110 = arith.mulf %99, %109 : vector<24x128xf32>
    %111 = arith.addf %108, %110 : vector<24x128xf32>
    %112 = math.tanh %111 : vector<24x128xf32>
    %cst_27 = arith.constant 1.000000e+00 : f32
    %113 = vector.broadcast %cst_27 : f32 to vector<24x128xf32>
    %114 = arith.subf %113, %107 : vector<24x128xf32>
    %115 = arith.mulf %114, %112 : vector<24x128xf32>
    %116 = arith.mulf %107, %84 : vector<24x128xf32>
    %117 = arith.addf %115, %116 : vector<24x128xf32>
    %118 = vector.extract_strided_slice %46 {offsets = [48, 0], sizes = [24, 384], strides = [1, 1]} : vector<72x384xf32> to vector<24x384xf32>
    %119 = vector.extract_strided_slice %46 {offsets = [0, 0], sizes = [24, 384], strides = [1, 1]} : vector<72x384xf32> to vector<24x384xf32>
    %120 = arith.select %50, %118, %119 : vector<24x384xi1>, vector<24x384xf32>
    %121 = vector.extract_strided_slice %117 {offsets = [0, 0], sizes = [24, 8], strides = [1, 1]} : vector<24x128xf32> to vector<24x8xf32>
    %cst_28 = arith.constant dense<0.000000e+00> : vector<24x384xf32>
    %122 = tpu.matmul %121, %42, %cst_28 {dimension_numbers = #tpu.dot_dimension_numbers<[1], [0], [0], [1], [0, 0, 1, 1], [], []>} : vector<24x8xf32>, vector<8x384xf32>, vector<24x384xf32> -> vector<24x384xf32>
    %123 = vector.broadcast %43 : vector<1x384xf32> to vector<24x384xf32>
    %124 = arith.addf %122, %123 : vector<24x384xf32>
    %125 = vector.extract_strided_slice %120 {offsets = [0, 0], sizes = [24, 128], strides = [1, 1]} : vector<24x384xf32> to vector<24x128xf32>
    %126 = vector.extract_strided_slice %124 {offsets = [0, 0], sizes = [24, 128], strides = [1, 1]} : vector<24x384xf32> to vector<24x128xf32>
    %127 = arith.addf %125, %126 : vector<24x128xf32>
    %128 = arith.negf %127 : vector<24x128xf32>
    %129 = math.exp %128 : vector<24x128xf32>
    %cst_29 = arith.constant 1.000000e+00 : f32
    %130 = vector.broadcast %cst_29 : f32 to vector<24x128xf32>
    %131 = arith.addf %130, %129 : vector<24x128xf32>
    %132 = arith.divf %130, %131 : vector<24x128xf32>
    %133 = vector.extract_strided_slice %120 {offsets = [0, 128], sizes = [24, 128], strides = [1, 1]} : vector<24x384xf32> to vector<24x128xf32>
    %134 = vector.extract_strided_slice %124 {offsets = [0, 128], sizes = [24, 128], strides = [1, 1]} : vector<24x384xf32> to vector<24x128xf32>
    %135 = arith.addf %133, %134 : vector<24x128xf32>
    %136 = arith.negf %135 : vector<24x128xf32>
    %137 = math.exp %136 : vector<24x128xf32>
    %cst_30 = arith.constant 1.000000e+00 : f32
    %138 = vector.broadcast %cst_30 : f32 to vector<24x128xf32>
    %139 = arith.addf %138, %137 : vector<24x128xf32>
    %140 = arith.divf %138, %139 : vector<24x128xf32>
    %141 = vector.extract_strided_slice %120 {offsets = [0, 256], sizes = [24, 128], strides = [1, 1]} : vector<24x384xf32> to vector<24x128xf32>
    %142 = vector.extract_strided_slice %124 {offsets = [0, 256], sizes = [24, 128], strides = [1, 1]} : vector<24x384xf32> to vector<24x128xf32>
    %143 = arith.mulf %132, %142 : vector<24x128xf32>
    %144 = arith.addf %141, %143 : vector<24x128xf32>
    %145 = math.tanh %144 : vector<24x128xf32>
    %cst_31 = arith.constant 1.000000e+00 : f32
    %146 = vector.broadcast %cst_31 : f32 to vector<24x128xf32>
    %147 = arith.subf %146, %140 : vector<24x128xf32>
    %148 = arith.mulf %147, %145 : vector<24x128xf32>
    %149 = arith.mulf %140, %117 : vector<24x128xf32>
    %150 = arith.addf %148, %149 : vector<24x128xf32>
    %151 = arith.select %49, %84, %150 : vector<24x128xi1>, vector<24x128xf32>
    %152 = arith.select %49, %117, %117 : vector<24x128xi1>, vector<24x128xf32>
    %153 = arith.select %49, %150, %84 : vector<24x128xi1>, vector<24x128xf32>
    %c96 = arith.constant 96 : index
    %c0_32 = arith.constant 0 : index
    %154 = vector.load %arg2[%c96, %c0_32] : memref<344x384xf32, #tpu.memory_space<vmem>>, vector<8x8xf32>
    %c104 = arith.constant 104 : index
    %c0_33 = arith.constant 0 : index
    %155 = vector.load %arg2[%c104, %c0_33] : memref<344x384xf32, #tpu.memory_space<vmem>>, vector<1x8xf32>
    %c112 = arith.constant 112 : index
    %c0_34 = arith.constant 0 : index
    %156 = vector.load %arg2[%c112, %c0_34] : memref<344x384xf32, #tpu.memory_space<vmem>>, vector<1x8xf32>
    %157 = tpu.concatenate %151, %152, %153 in 0 : vector<24x128xf32>, vector<24x128xf32>, vector<24x128xf32> -> vector<72x128xf32>
    %158 = vector.extract_strided_slice %157 {offsets = [0, 0], sizes = [72, 8], strides = [1, 1]} : vector<72x128xf32> to vector<72x8xf32>
    %cst_35 = arith.constant dense<0.000000e+00> : vector<72x8xf32>
    %159 = tpu.matmul %158, %154, %cst_35 {dimension_numbers = #tpu.dot_dimension_numbers<[1], [0], [0], [1], [0, 0, 1, 1], [], []>} : vector<72x8xf32>, vector<8x8xf32>, vector<72x8xf32> -> vector<72x8xf32>
    %160 = vector.broadcast %155 : vector<1x8xf32> to vector<72x8xf32>
    %161 = arith.addf %159, %160 : vector<72x8xf32>
    %162 = math.tanh %161 : vector<72x8xf32>
    %163 = vector.broadcast %156 : vector<1x8xf32> to vector<72x8xf32>
    %164 = arith.mulf %162, %163 : vector<72x8xf32>
    %cst_36 = arith.constant dense<0.000000e+00> : vector<72xf32>
    %165 = vector.multi_reduction <add>, %164, %cst_36 [1] : vector<72x8xf32> to vector<72xf32>
    %166 = vector.shape_cast %165 : vector<72xf32> to vector<72x1xf32>
    %167 = vector.extract_strided_slice %166 {offsets = [0, 0], sizes = [24, 1], strides = [1, 1]} : vector<72x1xf32> to vector<24x1xf32>
    %168 = vector.extract_strided_slice %166 {offsets = [24, 0], sizes = [24, 1], strides = [1, 1]} : vector<72x1xf32> to vector<24x1xf32>
    %169 = vector.extract_strided_slice %166 {offsets = [48, 0], sizes = [24, 1], strides = [1, 1]} : vector<72x1xf32> to vector<24x1xf32>
    %170 = arith.maximumf %167, %168 : vector<24x1xf32>
    %171 = arith.maximumf %170, %169 : vector<24x1xf32>
    %172 = arith.subf %167, %171 : vector<24x1xf32>
    %173 = math.exp %172 : vector<24x1xf32>
    %174 = arith.subf %168, %171 : vector<24x1xf32>
    %175 = math.exp %174 : vector<24x1xf32>
    %176 = arith.subf %169, %171 : vector<24x1xf32>
    %177 = math.exp %176 : vector<24x1xf32>
    %178 = arith.addf %173, %175 : vector<24x1xf32>
    %179 = arith.addf %178, %177 : vector<24x1xf32>
    %cst_37 = arith.constant 1.000000e+00 : f32
    %180 = vector.broadcast %cst_37 : f32 to vector<24x1xf32>
    %181 = arith.divf %180, %179 : vector<24x1xf32>
    %182 = arith.mulf %173, %181 : vector<24x1xf32>
    %183 = vector.broadcast %182 : vector<24x1xf32> to vector<24x128xf32>
    %184 = arith.mulf %183, %151 : vector<24x128xf32>
    %185 = arith.mulf %175, %181 : vector<24x1xf32>
    %186 = vector.broadcast %185 : vector<24x1xf32> to vector<24x128xf32>
    %187 = arith.mulf %186, %152 : vector<24x128xf32>
    %188 = arith.addf %184, %187 : vector<24x128xf32>
    %189 = arith.mulf %177, %181 : vector<24x1xf32>
    %190 = vector.broadcast %189 : vector<24x1xf32> to vector<24x128xf32>
    %191 = arith.mulf %190, %153 : vector<24x128xf32>
    %192 = arith.addf %188, %191 : vector<24x128xf32>
    %193 = vector.extract_strided_slice %192 {offsets = [0, 0], sizes = [24, 8], strides = [1, 1]} : vector<24x128xf32> to vector<24x8xf32>
    %c120 = arith.constant 120 : index
    %c0_38 = arith.constant 0 : index
    %194 = vector.load %arg2[%c120, %c0_38] : memref<344x384xf32, #tpu.memory_space<vmem>>, vector<8x384xf32>
    %c128 = arith.constant 128 : index
    %c0_39 = arith.constant 0 : index
    %195 = vector.load %arg2[%c128, %c0_39] : memref<344x384xf32, #tpu.memory_space<vmem>>, vector<1x384xf32>
    %c136 = arith.constant 136 : index
    %c0_40 = arith.constant 0 : index
    %196 = vector.load %arg2[%c136, %c0_40] : memref<344x384xf32, #tpu.memory_space<vmem>>, vector<16x384xf32>
    %c152 = arith.constant 152 : index
    %c0_41 = arith.constant 0 : index
    %197 = vector.load %arg2[%c152, %c0_41] : memref<344x384xf32, #tpu.memory_space<vmem>>, vector<1x384xf32>
    %cst_42 = arith.constant dense<0.000000e+00> : vector<24x384xf32>
    %198 = tpu.matmul %193, %194, %cst_42 {dimension_numbers = #tpu.dot_dimension_numbers<[1], [0], [0], [1], [0, 0, 1, 1], [], []>} : vector<24x8xf32>, vector<8x384xf32>, vector<24x384xf32> -> vector<24x384xf32>
    %199 = vector.broadcast %195 : vector<1x384xf32> to vector<24x384xf32>
    %200 = arith.addf %198, %199 : vector<24x384xf32>
    %201 = tpu.iota {dimensions = array<i32: 1>} : vector<8x128xi32>
    %c8_i32 = arith.constant 8 : i32
    %202 = vector.broadcast %c8_i32 : i32 to vector<8x128xi32>
    %203 = arith.cmpi slt, %201, %202 : vector<8x128xi32>
    %204 = tpu.concatenate %203, %203, %203 in 1 : vector<8x128xi1>, vector<8x128xi1>, vector<8x128xi1> -> vector<8x384xi1>
    %cst_43 = arith.constant 0.000000e+00 : f32
    %205 = vector.broadcast %cst_43 : f32 to vector<8x128xf32>
    %206 = vector.extract_strided_slice %200 {offsets = [0, 0], sizes = [8, 384], strides = [1, 1]} : vector<24x384xf32> to vector<8x384xf32>
    %207 = vector.extract_strided_slice %200 {offsets = [16, 0], sizes = [8, 384], strides = [1, 1]} : vector<24x384xf32> to vector<8x384xf32>
    %208 = arith.select %204, %206, %207 : vector<8x384xi1>, vector<8x384xf32>
    %209 = vector.extract_strided_slice %205 {offsets = [0, 0], sizes = [8, 16], strides = [1, 1]} : vector<8x128xf32> to vector<8x16xf32>
    %cst_44 = arith.constant dense<0.000000e+00> : vector<8x384xf32>
    %210 = tpu.matmul %209, %196, %cst_44 {dimension_numbers = #tpu.dot_dimension_numbers<[1], [0], [0], [1], [0, 0, 1, 1], [], []>} : vector<8x16xf32>, vector<16x384xf32>, vector<8x384xf32> -> vector<8x384xf32>
    %211 = vector.broadcast %197 : vector<1x384xf32> to vector<8x384xf32>
    %212 = arith.addf %210, %211 : vector<8x384xf32>
    %213 = vector.extract_strided_slice %208 {offsets = [0, 0], sizes = [8, 128], strides = [1, 1]} : vector<8x384xf32> to vector<8x128xf32>
    %214 = vector.extract_strided_slice %212 {offsets = [0, 0], sizes = [8, 128], strides = [1, 1]} : vector<8x384xf32> to vector<8x128xf32>
    %215 = arith.addf %213, %214 : vector<8x128xf32>
    %216 = arith.negf %215 : vector<8x128xf32>
    %217 = math.exp %216 : vector<8x128xf32>
    %cst_45 = arith.constant 1.000000e+00 : f32
    %218 = vector.broadcast %cst_45 : f32 to vector<8x128xf32>
    %219 = arith.addf %218, %217 : vector<8x128xf32>
    %220 = arith.divf %218, %219 : vector<8x128xf32>
    %221 = vector.extract_strided_slice %208 {offsets = [0, 128], sizes = [8, 128], strides = [1, 1]} : vector<8x384xf32> to vector<8x128xf32>
    %222 = vector.extract_strided_slice %212 {offsets = [0, 128], sizes = [8, 128], strides = [1, 1]} : vector<8x384xf32> to vector<8x128xf32>
    %223 = arith.addf %221, %222 : vector<8x128xf32>
    %224 = arith.negf %223 : vector<8x128xf32>
    %225 = math.exp %224 : vector<8x128xf32>
    %cst_46 = arith.constant 1.000000e+00 : f32
    %226 = vector.broadcast %cst_46 : f32 to vector<8x128xf32>
    %227 = arith.addf %226, %225 : vector<8x128xf32>
    %228 = arith.divf %226, %227 : vector<8x128xf32>
    %229 = vector.extract_strided_slice %208 {offsets = [0, 256], sizes = [8, 128], strides = [1, 1]} : vector<8x384xf32> to vector<8x128xf32>
    %230 = vector.extract_strided_slice %212 {offsets = [0, 256], sizes = [8, 128], strides = [1, 1]} : vector<8x384xf32> to vector<8x128xf32>
    %231 = arith.mulf %220, %230 : vector<8x128xf32>
    %232 = arith.addf %229, %231 : vector<8x128xf32>
    %233 = math.tanh %232 : vector<8x128xf32>
    %cst_47 = arith.constant 1.000000e+00 : f32
    %234 = vector.broadcast %cst_47 : f32 to vector<8x128xf32>
    %235 = arith.subf %234, %228 : vector<8x128xf32>
    %236 = arith.mulf %235, %233 : vector<8x128xf32>
    %237 = arith.mulf %228, %205 : vector<8x128xf32>
    %238 = arith.addf %236, %237 : vector<8x128xf32>
    %239 = vector.extract_strided_slice %200 {offsets = [8, 0], sizes = [8, 384], strides = [1, 1]} : vector<24x384xf32> to vector<8x384xf32>
    %240 = vector.extract_strided_slice %200 {offsets = [8, 0], sizes = [8, 384], strides = [1, 1]} : vector<24x384xf32> to vector<8x384xf32>
    %241 = arith.select %204, %239, %240 : vector<8x384xi1>, vector<8x384xf32>
    %242 = vector.extract_strided_slice %238 {offsets = [0, 0], sizes = [8, 16], strides = [1, 1]} : vector<8x128xf32> to vector<8x16xf32>
    %cst_48 = arith.constant dense<0.000000e+00> : vector<8x384xf32>
    %243 = tpu.matmul %242, %196, %cst_48 {dimension_numbers = #tpu.dot_dimension_numbers<[1], [0], [0], [1], [0, 0, 1, 1], [], []>} : vector<8x16xf32>, vector<16x384xf32>, vector<8x384xf32> -> vector<8x384xf32>
    %244 = vector.broadcast %197 : vector<1x384xf32> to vector<8x384xf32>
    %245 = arith.addf %243, %244 : vector<8x384xf32>
    %246 = vector.extract_strided_slice %241 {offsets = [0, 0], sizes = [8, 128], strides = [1, 1]} : vector<8x384xf32> to vector<8x128xf32>
    %247 = vector.extract_strided_slice %245 {offsets = [0, 0], sizes = [8, 128], strides = [1, 1]} : vector<8x384xf32> to vector<8x128xf32>
    %248 = arith.addf %246, %247 : vector<8x128xf32>
    %249 = arith.negf %248 : vector<8x128xf32>
    %250 = math.exp %249 : vector<8x128xf32>
    %cst_49 = arith.constant 1.000000e+00 : f32
    %251 = vector.broadcast %cst_49 : f32 to vector<8x128xf32>
    %252 = arith.addf %251, %250 : vector<8x128xf32>
    %253 = arith.divf %251, %252 : vector<8x128xf32>
    %254 = vector.extract_strided_slice %241 {offsets = [0, 128], sizes = [8, 128], strides = [1, 1]} : vector<8x384xf32> to vector<8x128xf32>
    %255 = vector.extract_strided_slice %245 {offsets = [0, 128], sizes = [8, 128], strides = [1, 1]} : vector<8x384xf32> to vector<8x128xf32>
    %256 = arith.addf %254, %255 : vector<8x128xf32>
    %257 = arith.negf %256 : vector<8x128xf32>
    %258 = math.exp %257 : vector<8x128xf32>
    %cst_50 = arith.constant 1.000000e+00 : f32
    %259 = vector.broadcast %cst_50 : f32 to vector<8x128xf32>
    %260 = arith.addf %259, %258 : vector<8x128xf32>
    %261 = arith.divf %259, %260 : vector<8x128xf32>
    %262 = vector.extract_strided_slice %241 {offsets = [0, 256], sizes = [8, 128], strides = [1, 1]} : vector<8x384xf32> to vector<8x128xf32>
    %263 = vector.extract_strided_slice %245 {offsets = [0, 256], sizes = [8, 128], strides = [1, 1]} : vector<8x384xf32> to vector<8x128xf32>
    %264 = arith.mulf %253, %263 : vector<8x128xf32>
    %265 = arith.addf %262, %264 : vector<8x128xf32>
    %266 = math.tanh %265 : vector<8x128xf32>
    %cst_51 = arith.constant 1.000000e+00 : f32
    %267 = vector.broadcast %cst_51 : f32 to vector<8x128xf32>
    %268 = arith.subf %267, %261 : vector<8x128xf32>
    %269 = arith.mulf %268, %266 : vector<8x128xf32>
    %270 = arith.mulf %261, %238 : vector<8x128xf32>
    %271 = arith.addf %269, %270 : vector<8x128xf32>
    %272 = vector.extract_strided_slice %200 {offsets = [16, 0], sizes = [8, 384], strides = [1, 1]} : vector<24x384xf32> to vector<8x384xf32>
    %273 = vector.extract_strided_slice %200 {offsets = [0, 0], sizes = [8, 384], strides = [1, 1]} : vector<24x384xf32> to vector<8x384xf32>
    %274 = arith.select %204, %272, %273 : vector<8x384xi1>, vector<8x384xf32>
    %275 = vector.extract_strided_slice %271 {offsets = [0, 0], sizes = [8, 16], strides = [1, 1]} : vector<8x128xf32> to vector<8x16xf32>
    %cst_52 = arith.constant dense<0.000000e+00> : vector<8x384xf32>
    %276 = tpu.matmul %275, %196, %cst_52 {dimension_numbers = #tpu.dot_dimension_numbers<[1], [0], [0], [1], [0, 0, 1, 1], [], []>} : vector<8x16xf32>, vector<16x384xf32>, vector<8x384xf32> -> vector<8x384xf32>
    %277 = vector.broadcast %197 : vector<1x384xf32> to vector<8x384xf32>
    %278 = arith.addf %276, %277 : vector<8x384xf32>
    %279 = vector.extract_strided_slice %274 {offsets = [0, 0], sizes = [8, 128], strides = [1, 1]} : vector<8x384xf32> to vector<8x128xf32>
    %280 = vector.extract_strided_slice %278 {offsets = [0, 0], sizes = [8, 128], strides = [1, 1]} : vector<8x384xf32> to vector<8x128xf32>
    %281 = arith.addf %279, %280 : vector<8x128xf32>
    %282 = arith.negf %281 : vector<8x128xf32>
    %283 = math.exp %282 : vector<8x128xf32>
    %cst_53 = arith.constant 1.000000e+00 : f32
    %284 = vector.broadcast %cst_53 : f32 to vector<8x128xf32>
    %285 = arith.addf %284, %283 : vector<8x128xf32>
    %286 = arith.divf %284, %285 : vector<8x128xf32>
    %287 = vector.extract_strided_slice %274 {offsets = [0, 128], sizes = [8, 128], strides = [1, 1]} : vector<8x384xf32> to vector<8x128xf32>
    %288 = vector.extract_strided_slice %278 {offsets = [0, 128], sizes = [8, 128], strides = [1, 1]} : vector<8x384xf32> to vector<8x128xf32>
    %289 = arith.addf %287, %288 : vector<8x128xf32>
    %290 = arith.negf %289 : vector<8x128xf32>
    %291 = math.exp %290 : vector<8x128xf32>
    %cst_54 = arith.constant 1.000000e+00 : f32
    %292 = vector.broadcast %cst_54 : f32 to vector<8x128xf32>
    %293 = arith.addf %292, %291 : vector<8x128xf32>
    %294 = arith.divf %292, %293 : vector<8x128xf32>
    %295 = vector.extract_strided_slice %274 {offsets = [0, 256], sizes = [8, 128], strides = [1, 1]} : vector<8x384xf32> to vector<8x128xf32>
    %296 = vector.extract_strided_slice %278 {offsets = [0, 256], sizes = [8, 128], strides = [1, 1]} : vector<8x384xf32> to vector<8x128xf32>
    %297 = arith.mulf %286, %296 : vector<8x128xf32>
    %298 = arith.addf %295, %297 : vector<8x128xf32>
    %299 = math.tanh %298 : vector<8x128xf32>
    %cst_55 = arith.constant 1.000000e+00 : f32
    %300 = vector.broadcast %cst_55 : f32 to vector<8x128xf32>
    %301 = arith.subf %300, %294 : vector<8x128xf32>
    %302 = arith.mulf %301, %299 : vector<8x128xf32>
    %303 = arith.mulf %294, %271 : vector<8x128xf32>
    %304 = arith.addf %302, %303 : vector<8x128xf32>
    %305 = arith.select %203, %238, %304 : vector<8x128xi1>, vector<8x128xf32>
    %306 = arith.select %203, %271, %271 : vector<8x128xi1>, vector<8x128xf32>
    %307 = arith.select %203, %304, %238 : vector<8x128xi1>, vector<8x128xf32>
    %c160 = arith.constant 160 : index
    %c0_56 = arith.constant 0 : index
    %308 = vector.load %arg2[%c160, %c0_56] : memref<344x384xf32, #tpu.memory_space<vmem>>, vector<16x16xf32>
    %c176 = arith.constant 176 : index
    %c0_57 = arith.constant 0 : index
    %309 = vector.load %arg2[%c176, %c0_57] : memref<344x384xf32, #tpu.memory_space<vmem>>, vector<1x16xf32>
    %c184 = arith.constant 184 : index
    %c0_58 = arith.constant 0 : index
    %310 = vector.load %arg2[%c184, %c0_58] : memref<344x384xf32, #tpu.memory_space<vmem>>, vector<1x16xf32>
    %311 = tpu.concatenate %305, %306, %307 in 0 : vector<8x128xf32>, vector<8x128xf32>, vector<8x128xf32> -> vector<24x128xf32>
    %312 = vector.extract_strided_slice %311 {offsets = [0, 0], sizes = [24, 16], strides = [1, 1]} : vector<24x128xf32> to vector<24x16xf32>
    %cst_59 = arith.constant dense<0.000000e+00> : vector<24x16xf32>
    %313 = tpu.matmul %312, %308, %cst_59 {dimension_numbers = #tpu.dot_dimension_numbers<[1], [0], [0], [1], [0, 0, 1, 1], [], []>} : vector<24x16xf32>, vector<16x16xf32>, vector<24x16xf32> -> vector<24x16xf32>
    %314 = vector.broadcast %309 : vector<1x16xf32> to vector<24x16xf32>
    %315 = arith.addf %313, %314 : vector<24x16xf32>
    %316 = math.tanh %315 : vector<24x16xf32>
    %317 = vector.broadcast %310 : vector<1x16xf32> to vector<24x16xf32>
    %318 = arith.mulf %316, %317 : vector<24x16xf32>
    %cst_60 = arith.constant dense<0.000000e+00> : vector<24xf32>
    %319 = vector.multi_reduction <add>, %318, %cst_60 [1] : vector<24x16xf32> to vector<24xf32>
    %320 = vector.shape_cast %319 : vector<24xf32> to vector<24x1xf32>
    %321 = vector.extract_strided_slice %320 {offsets = [0, 0], sizes = [8, 1], strides = [1, 1]} : vector<24x1xf32> to vector<8x1xf32>
    %322 = vector.extract_strided_slice %320 {offsets = [8, 0], sizes = [8, 1], strides = [1, 1]} : vector<24x1xf32> to vector<8x1xf32>
    %323 = vector.extract_strided_slice %320 {offsets = [16, 0], sizes = [8, 1], strides = [1, 1]} : vector<24x1xf32> to vector<8x1xf32>
    %324 = arith.maximumf %321, %322 : vector<8x1xf32>
    %325 = arith.maximumf %324, %323 : vector<8x1xf32>
    %326 = arith.subf %321, %325 : vector<8x1xf32>
    %327 = math.exp %326 : vector<8x1xf32>
    %328 = arith.subf %322, %325 : vector<8x1xf32>
    %329 = math.exp %328 : vector<8x1xf32>
    %330 = arith.subf %323, %325 : vector<8x1xf32>
    %331 = math.exp %330 : vector<8x1xf32>
    %332 = arith.addf %327, %329 : vector<8x1xf32>
    %333 = arith.addf %332, %331 : vector<8x1xf32>
    %cst_61 = arith.constant 1.000000e+00 : f32
    %334 = vector.broadcast %cst_61 : f32 to vector<8x1xf32>
    %335 = arith.divf %334, %333 : vector<8x1xf32>
    %336 = arith.mulf %327, %335 : vector<8x1xf32>
    %337 = vector.broadcast %336 : vector<8x1xf32> to vector<8x128xf32>
    %338 = arith.mulf %337, %305 : vector<8x128xf32>
    %339 = arith.mulf %329, %335 : vector<8x1xf32>
    %340 = vector.broadcast %339 : vector<8x1xf32> to vector<8x128xf32>
    %341 = arith.mulf %340, %306 : vector<8x128xf32>
    %342 = arith.addf %338, %341 : vector<8x128xf32>
    %343 = arith.mulf %331, %335 : vector<8x1xf32>
    %344 = vector.broadcast %343 : vector<8x1xf32> to vector<8x128xf32>
    %345 = arith.mulf %344, %307 : vector<8x128xf32>
    %346 = arith.addf %342, %345 : vector<8x128xf32>
    %347 = vector.extract_strided_slice %346 {offsets = [0, 0], sizes = [8, 16], strides = [1, 1]} : vector<8x128xf32> to vector<8x16xf32>
    %c192 = arith.constant 192 : index
    %c0_62 = arith.constant 0 : index
    %348 = vector.load %arg2[%c192, %c0_62] : memref<344x384xf32, #tpu.memory_space<vmem>>, vector<16x384xf32>
    %c208 = arith.constant 208 : index
    %c0_63 = arith.constant 0 : index
    %349 = vector.load %arg2[%c208, %c0_63] : memref<344x384xf32, #tpu.memory_space<vmem>>, vector<1x384xf32>
    %c216 = arith.constant 216 : index
    %c0_64 = arith.constant 0 : index
    %350 = vector.load %arg2[%c216, %c0_64] : memref<344x384xf32, #tpu.memory_space<vmem>>, vector<32x384xf32>
    %c248 = arith.constant 248 : index
    %c0_65 = arith.constant 0 : index
    %351 = vector.load %arg2[%c248, %c0_65] : memref<344x384xf32, #tpu.memory_space<vmem>>, vector<1x384xf32>
    %cst_66 = arith.constant dense<0.000000e+00> : vector<8x384xf32>
    %352 = tpu.matmul %347, %348, %cst_66 {dimension_numbers = #tpu.dot_dimension_numbers<[1], [0], [0], [1], [0, 0, 1, 1], [], []>} : vector<8x16xf32>, vector<16x384xf32>, vector<8x384xf32> -> vector<8x384xf32>
    %353 = vector.broadcast %349 : vector<1x384xf32> to vector<8x384xf32>
    %354 = arith.addf %352, %353 : vector<8x384xf32>
    %355 = tpu.iota {dimensions = array<i32: 1>} : vector<2x128xi32>
    %c16_i32 = arith.constant 16 : i32
    %356 = vector.broadcast %c16_i32 : i32 to vector<2x128xi32>
    %357 = arith.cmpi slt, %355, %356 : vector<2x128xi32>
    %358 = tpu.concatenate %357, %357, %357 in 1 : vector<2x128xi1>, vector<2x128xi1>, vector<2x128xi1> -> vector<2x384xi1>
    %cst_67 = arith.constant 0.000000e+00 : f32
    %359 = vector.broadcast %cst_67 : f32 to vector<2x128xf32>
    %360 = vector.extract_strided_slice %354 {offsets = [0, 0], sizes = [2, 384], strides = [1, 1]} : vector<8x384xf32> to vector<2x384xf32>
    %361 = vector.extract_strided_slice %354 {offsets = [6, 0], sizes = [2, 384], strides = [1, 1]} : vector<8x384xf32> to vector<2x384xf32>
    %362 = arith.select %358, %360, %361 : vector<2x384xi1>, vector<2x384xf32>
    %363 = vector.extract_strided_slice %359 {offsets = [0, 0], sizes = [2, 32], strides = [1, 1]} : vector<2x128xf32> to vector<2x32xf32>
    %cst_68 = arith.constant dense<0.000000e+00> : vector<2x384xf32>
    %364 = tpu.matmul %363, %350, %cst_68 {dimension_numbers = #tpu.dot_dimension_numbers<[1], [0], [0], [1], [0, 0, 1, 1], [], []>} : vector<2x32xf32>, vector<32x384xf32>, vector<2x384xf32> -> vector<2x384xf32>
    %365 = vector.broadcast %351 : vector<1x384xf32> to vector<2x384xf32>
    %366 = arith.addf %364, %365 : vector<2x384xf32>
    %367 = vector.extract_strided_slice %362 {offsets = [0, 0], sizes = [2, 128], strides = [1, 1]} : vector<2x384xf32> to vector<2x128xf32>
    %368 = vector.extract_strided_slice %366 {offsets = [0, 0], sizes = [2, 128], strides = [1, 1]} : vector<2x384xf32> to vector<2x128xf32>
    %369 = arith.addf %367, %368 : vector<2x128xf32>
    %370 = arith.negf %369 : vector<2x128xf32>
    %371 = math.exp %370 : vector<2x128xf32>
    %cst_69 = arith.constant 1.000000e+00 : f32
    %372 = vector.broadcast %cst_69 : f32 to vector<2x128xf32>
    %373 = arith.addf %372, %371 : vector<2x128xf32>
    %374 = arith.divf %372, %373 : vector<2x128xf32>
    %375 = vector.extract_strided_slice %362 {offsets = [0, 128], sizes = [2, 128], strides = [1, 1]} : vector<2x384xf32> to vector<2x128xf32>
    %376 = vector.extract_strided_slice %366 {offsets = [0, 128], sizes = [2, 128], strides = [1, 1]} : vector<2x384xf32> to vector<2x128xf32>
    %377 = arith.addf %375, %376 : vector<2x128xf32>
    %378 = arith.negf %377 : vector<2x128xf32>
    %379 = math.exp %378 : vector<2x128xf32>
    %cst_70 = arith.constant 1.000000e+00 : f32
    %380 = vector.broadcast %cst_70 : f32 to vector<2x128xf32>
    %381 = arith.addf %380, %379 : vector<2x128xf32>
    %382 = arith.divf %380, %381 : vector<2x128xf32>
    %383 = vector.extract_strided_slice %362 {offsets = [0, 256], sizes = [2, 128], strides = [1, 1]} : vector<2x384xf32> to vector<2x128xf32>
    %384 = vector.extract_strided_slice %366 {offsets = [0, 256], sizes = [2, 128], strides = [1, 1]} : vector<2x384xf32> to vector<2x128xf32>
    %385 = arith.mulf %374, %384 : vector<2x128xf32>
    %386 = arith.addf %383, %385 : vector<2x128xf32>
    %387 = math.tanh %386 : vector<2x128xf32>
    %cst_71 = arith.constant 1.000000e+00 : f32
    %388 = vector.broadcast %cst_71 : f32 to vector<2x128xf32>
    %389 = arith.subf %388, %382 : vector<2x128xf32>
    %390 = arith.mulf %389, %387 : vector<2x128xf32>
    %391 = arith.mulf %382, %359 : vector<2x128xf32>
    %392 = arith.addf %390, %391 : vector<2x128xf32>
    %393 = vector.extract_strided_slice %354 {offsets = [2, 0], sizes = [2, 384], strides = [1, 1]} : vector<8x384xf32> to vector<2x384xf32>
    %394 = vector.extract_strided_slice %354 {offsets = [4, 0], sizes = [2, 384], strides = [1, 1]} : vector<8x384xf32> to vector<2x384xf32>
    %395 = arith.select %358, %393, %394 : vector<2x384xi1>, vector<2x384xf32>
    %396 = vector.extract_strided_slice %392 {offsets = [0, 0], sizes = [2, 32], strides = [1, 1]} : vector<2x128xf32> to vector<2x32xf32>
    %cst_72 = arith.constant dense<0.000000e+00> : vector<2x384xf32>
    %397 = tpu.matmul %396, %350, %cst_72 {dimension_numbers = #tpu.dot_dimension_numbers<[1], [0], [0], [1], [0, 0, 1, 1], [], []>} : vector<2x32xf32>, vector<32x384xf32>, vector<2x384xf32> -> vector<2x384xf32>
    %398 = vector.broadcast %351 : vector<1x384xf32> to vector<2x384xf32>
    %399 = arith.addf %397, %398 : vector<2x384xf32>
    %400 = vector.extract_strided_slice %395 {offsets = [0, 0], sizes = [2, 128], strides = [1, 1]} : vector<2x384xf32> to vector<2x128xf32>
    %401 = vector.extract_strided_slice %399 {offsets = [0, 0], sizes = [2, 128], strides = [1, 1]} : vector<2x384xf32> to vector<2x128xf32>
    %402 = arith.addf %400, %401 : vector<2x128xf32>
    %403 = arith.negf %402 : vector<2x128xf32>
    %404 = math.exp %403 : vector<2x128xf32>
    %cst_73 = arith.constant 1.000000e+00 : f32
    %405 = vector.broadcast %cst_73 : f32 to vector<2x128xf32>
    %406 = arith.addf %405, %404 : vector<2x128xf32>
    %407 = arith.divf %405, %406 : vector<2x128xf32>
    %408 = vector.extract_strided_slice %395 {offsets = [0, 128], sizes = [2, 128], strides = [1, 1]} : vector<2x384xf32> to vector<2x128xf32>
    %409 = vector.extract_strided_slice %399 {offsets = [0, 128], sizes = [2, 128], strides = [1, 1]} : vector<2x384xf32> to vector<2x128xf32>
    %410 = arith.addf %408, %409 : vector<2x128xf32>
    %411 = arith.negf %410 : vector<2x128xf32>
    %412 = math.exp %411 : vector<2x128xf32>
    %cst_74 = arith.constant 1.000000e+00 : f32
    %413 = vector.broadcast %cst_74 : f32 to vector<2x128xf32>
    %414 = arith.addf %413, %412 : vector<2x128xf32>
    %415 = arith.divf %413, %414 : vector<2x128xf32>
    %416 = vector.extract_strided_slice %395 {offsets = [0, 256], sizes = [2, 128], strides = [1, 1]} : vector<2x384xf32> to vector<2x128xf32>
    %417 = vector.extract_strided_slice %399 {offsets = [0, 256], sizes = [2, 128], strides = [1, 1]} : vector<2x384xf32> to vector<2x128xf32>
    %418 = arith.mulf %407, %417 : vector<2x128xf32>
    %419 = arith.addf %416, %418 : vector<2x128xf32>
    %420 = math.tanh %419 : vector<2x128xf32>
    %cst_75 = arith.constant 1.000000e+00 : f32
    %421 = vector.broadcast %cst_75 : f32 to vector<2x128xf32>
    %422 = arith.subf %421, %415 : vector<2x128xf32>
    %423 = arith.mulf %422, %420 : vector<2x128xf32>
    %424 = arith.mulf %415, %392 : vector<2x128xf32>
    %425 = arith.addf %423, %424 : vector<2x128xf32>
    %426 = vector.extract_strided_slice %354 {offsets = [4, 0], sizes = [2, 384], strides = [1, 1]} : vector<8x384xf32> to vector<2x384xf32>
    %427 = vector.extract_strided_slice %354 {offsets = [2, 0], sizes = [2, 384], strides = [1, 1]} : vector<8x384xf32> to vector<2x384xf32>
    %428 = arith.select %358, %426, %427 : vector<2x384xi1>, vector<2x384xf32>
    %429 = vector.extract_strided_slice %425 {offsets = [0, 0], sizes = [2, 32], strides = [1, 1]} : vector<2x128xf32> to vector<2x32xf32>
    %cst_76 = arith.constant dense<0.000000e+00> : vector<2x384xf32>
    %430 = tpu.matmul %429, %350, %cst_76 {dimension_numbers = #tpu.dot_dimension_numbers<[1], [0], [0], [1], [0, 0, 1, 1], [], []>} : vector<2x32xf32>, vector<32x384xf32>, vector<2x384xf32> -> vector<2x384xf32>
    %431 = vector.broadcast %351 : vector<1x384xf32> to vector<2x384xf32>
    %432 = arith.addf %430, %431 : vector<2x384xf32>
    %433 = vector.extract_strided_slice %428 {offsets = [0, 0], sizes = [2, 128], strides = [1, 1]} : vector<2x384xf32> to vector<2x128xf32>
    %434 = vector.extract_strided_slice %432 {offsets = [0, 0], sizes = [2, 128], strides = [1, 1]} : vector<2x384xf32> to vector<2x128xf32>
    %435 = arith.addf %433, %434 : vector<2x128xf32>
    %436 = arith.negf %435 : vector<2x128xf32>
    %437 = math.exp %436 : vector<2x128xf32>
    %cst_77 = arith.constant 1.000000e+00 : f32
    %438 = vector.broadcast %cst_77 : f32 to vector<2x128xf32>
    %439 = arith.addf %438, %437 : vector<2x128xf32>
    %440 = arith.divf %438, %439 : vector<2x128xf32>
    %441 = vector.extract_strided_slice %428 {offsets = [0, 128], sizes = [2, 128], strides = [1, 1]} : vector<2x384xf32> to vector<2x128xf32>
    %442 = vector.extract_strided_slice %432 {offsets = [0, 128], sizes = [2, 128], strides = [1, 1]} : vector<2x384xf32> to vector<2x128xf32>
    %443 = arith.addf %441, %442 : vector<2x128xf32>
    %444 = arith.negf %443 : vector<2x128xf32>
    %445 = math.exp %444 : vector<2x128xf32>
    %cst_78 = arith.constant 1.000000e+00 : f32
    %446 = vector.broadcast %cst_78 : f32 to vector<2x128xf32>
    %447 = arith.addf %446, %445 : vector<2x128xf32>
    %448 = arith.divf %446, %447 : vector<2x128xf32>
    %449 = vector.extract_strided_slice %428 {offsets = [0, 256], sizes = [2, 128], strides = [1, 1]} : vector<2x384xf32> to vector<2x128xf32>
    %450 = vector.extract_strided_slice %432 {offsets = [0, 256], sizes = [2, 128], strides = [1, 1]} : vector<2x384xf32> to vector<2x128xf32>
    %451 = arith.mulf %440, %450 : vector<2x128xf32>
    %452 = arith.addf %449, %451 : vector<2x128xf32>
    %453 = math.tanh %452 : vector<2x128xf32>
    %cst_79 = arith.constant 1.000000e+00 : f32
    %454 = vector.broadcast %cst_79 : f32 to vector<2x128xf32>
    %455 = arith.subf %454, %448 : vector<2x128xf32>
    %456 = arith.mulf %455, %453 : vector<2x128xf32>
    %457 = arith.mulf %448, %425 : vector<2x128xf32>
    %458 = arith.addf %456, %457 : vector<2x128xf32>
    %459 = vector.extract_strided_slice %354 {offsets = [6, 0], sizes = [2, 384], strides = [1, 1]} : vector<8x384xf32> to vector<2x384xf32>
    %460 = vector.extract_strided_slice %354 {offsets = [0, 0], sizes = [2, 384], strides = [1, 1]} : vector<8x384xf32> to vector<2x384xf32>
    %461 = arith.select %358, %459, %460 : vector<2x384xi1>, vector<2x384xf32>
    %462 = vector.extract_strided_slice %458 {offsets = [0, 0], sizes = [2, 32], strides = [1, 1]} : vector<2x128xf32> to vector<2x32xf32>
    %cst_80 = arith.constant dense<0.000000e+00> : vector<2x384xf32>
    %463 = tpu.matmul %462, %350, %cst_80 {dimension_numbers = #tpu.dot_dimension_numbers<[1], [0], [0], [1], [0, 0, 1, 1], [], []>} : vector<2x32xf32>, vector<32x384xf32>, vector<2x384xf32> -> vector<2x384xf32>
    %464 = vector.broadcast %351 : vector<1x384xf32> to vector<2x384xf32>
    %465 = arith.addf %463, %464 : vector<2x384xf32>
    %466 = vector.extract_strided_slice %461 {offsets = [0, 0], sizes = [2, 128], strides = [1, 1]} : vector<2x384xf32> to vector<2x128xf32>
    %467 = vector.extract_strided_slice %465 {offsets = [0, 0], sizes = [2, 128], strides = [1, 1]} : vector<2x384xf32> to vector<2x128xf32>
    %468 = arith.addf %466, %467 : vector<2x128xf32>
    %469 = arith.negf %468 : vector<2x128xf32>
    %470 = math.exp %469 : vector<2x128xf32>
    %cst_81 = arith.constant 1.000000e+00 : f32
    %471 = vector.broadcast %cst_81 : f32 to vector<2x128xf32>
    %472 = arith.addf %471, %470 : vector<2x128xf32>
    %473 = arith.divf %471, %472 : vector<2x128xf32>
    %474 = vector.extract_strided_slice %461 {offsets = [0, 128], sizes = [2, 128], strides = [1, 1]} : vector<2x384xf32> to vector<2x128xf32>
    %475 = vector.extract_strided_slice %465 {offsets = [0, 128], sizes = [2, 128], strides = [1, 1]} : vector<2x384xf32> to vector<2x128xf32>
    %476 = arith.addf %474, %475 : vector<2x128xf32>
    %477 = arith.negf %476 : vector<2x128xf32>
    %478 = math.exp %477 : vector<2x128xf32>
    %cst_82 = arith.constant 1.000000e+00 : f32
    %479 = vector.broadcast %cst_82 : f32 to vector<2x128xf32>
    %480 = arith.addf %479, %478 : vector<2x128xf32>
    %481 = arith.divf %479, %480 : vector<2x128xf32>
    %482 = vector.extract_strided_slice %461 {offsets = [0, 256], sizes = [2, 128], strides = [1, 1]} : vector<2x384xf32> to vector<2x128xf32>
    %483 = vector.extract_strided_slice %465 {offsets = [0, 256], sizes = [2, 128], strides = [1, 1]} : vector<2x384xf32> to vector<2x128xf32>
    %484 = arith.mulf %473, %483 : vector<2x128xf32>
    %485 = arith.addf %482, %484 : vector<2x128xf32>
    %486 = math.tanh %485 : vector<2x128xf32>
    %cst_83 = arith.constant 1.000000e+00 : f32
    %487 = vector.broadcast %cst_83 : f32 to vector<2x128xf32>
    %488 = arith.subf %487, %481 : vector<2x128xf32>
    %489 = arith.mulf %488, %486 : vector<2x128xf32>
    %490 = arith.mulf %481, %458 : vector<2x128xf32>
    %491 = arith.addf %489, %490 : vector<2x128xf32>
    %492 = arith.select %357, %392, %491 : vector<2x128xi1>, vector<2x128xf32>
    %493 = arith.select %357, %425, %458 : vector<2x128xi1>, vector<2x128xf32>
    %494 = arith.select %357, %458, %425 : vector<2x128xi1>, vector<2x128xf32>
    %495 = arith.select %357, %491, %392 : vector<2x128xi1>, vector<2x128xf32>
    %c256 = arith.constant 256 : index
    %c0_84 = arith.constant 0 : index
    %496 = vector.load %arg2[%c256, %c0_84] : memref<344x384xf32, #tpu.memory_space<vmem>>, vector<32x32xf32>
    %c288 = arith.constant 288 : index
    %c0_85 = arith.constant 0 : index
    %497 = vector.load %arg2[%c288, %c0_85] : memref<344x384xf32, #tpu.memory_space<vmem>>, vector<1x32xf32>
    %c296 = arith.constant 296 : index
    %c0_86 = arith.constant 0 : index
    %498 = vector.load %arg2[%c296, %c0_86] : memref<344x384xf32, #tpu.memory_space<vmem>>, vector<1x32xf32>
    %499 = tpu.concatenate %492, %493, %494, %495 in 0 : vector<2x128xf32>, vector<2x128xf32>, vector<2x128xf32>, vector<2x128xf32> -> vector<8x128xf32>
    %500 = vector.extract_strided_slice %499 {offsets = [0, 0], sizes = [8, 32], strides = [1, 1]} : vector<8x128xf32> to vector<8x32xf32>
    %cst_87 = arith.constant dense<0.000000e+00> : vector<8x32xf32>
    %501 = tpu.matmul %500, %496, %cst_87 {dimension_numbers = #tpu.dot_dimension_numbers<[1], [0], [0], [1], [0, 0, 1, 1], [], []>} : vector<8x32xf32>, vector<32x32xf32>, vector<8x32xf32> -> vector<8x32xf32>
    %502 = vector.broadcast %497 : vector<1x32xf32> to vector<8x32xf32>
    %503 = arith.addf %501, %502 : vector<8x32xf32>
    %504 = math.tanh %503 : vector<8x32xf32>
    %505 = vector.broadcast %498 : vector<1x32xf32> to vector<8x32xf32>
    %506 = arith.mulf %504, %505 : vector<8x32xf32>
    %cst_88 = arith.constant dense<0.000000e+00> : vector<8xf32>
    %507 = vector.multi_reduction <add>, %506, %cst_88 [1] : vector<8x32xf32> to vector<8xf32>
    %508 = vector.shape_cast %507 : vector<8xf32> to vector<8x1xf32>
    %509 = vector.extract_strided_slice %508 {offsets = [0, 0], sizes = [2, 1], strides = [1, 1]} : vector<8x1xf32> to vector<2x1xf32>
    %510 = vector.extract_strided_slice %508 {offsets = [2, 0], sizes = [2, 1], strides = [1, 1]} : vector<8x1xf32> to vector<2x1xf32>
    %511 = vector.extract_strided_slice %508 {offsets = [4, 0], sizes = [2, 1], strides = [1, 1]} : vector<8x1xf32> to vector<2x1xf32>
    %512 = vector.extract_strided_slice %508 {offsets = [6, 0], sizes = [2, 1], strides = [1, 1]} : vector<8x1xf32> to vector<2x1xf32>
    %513 = arith.maximumf %509, %510 : vector<2x1xf32>
    %514 = arith.maximumf %513, %511 : vector<2x1xf32>
    %515 = arith.maximumf %514, %512 : vector<2x1xf32>
    %516 = arith.subf %509, %515 : vector<2x1xf32>
    %517 = math.exp %516 : vector<2x1xf32>
    %518 = arith.subf %510, %515 : vector<2x1xf32>
    %519 = math.exp %518 : vector<2x1xf32>
    %520 = arith.subf %511, %515 : vector<2x1xf32>
    %521 = math.exp %520 : vector<2x1xf32>
    %522 = arith.subf %512, %515 : vector<2x1xf32>
    %523 = math.exp %522 : vector<2x1xf32>
    %524 = arith.addf %517, %519 : vector<2x1xf32>
    %525 = arith.addf %524, %521 : vector<2x1xf32>
    %526 = arith.addf %525, %523 : vector<2x1xf32>
    %cst_89 = arith.constant 1.000000e+00 : f32
    %527 = vector.broadcast %cst_89 : f32 to vector<2x1xf32>
    %528 = arith.divf %527, %526 : vector<2x1xf32>
    %529 = arith.mulf %517, %528 : vector<2x1xf32>
    %530 = vector.broadcast %529 : vector<2x1xf32> to vector<2x128xf32>
    %531 = arith.mulf %530, %492 : vector<2x128xf32>
    %532 = arith.mulf %519, %528 : vector<2x1xf32>
    %533 = vector.broadcast %532 : vector<2x1xf32> to vector<2x128xf32>
    %534 = arith.mulf %533, %493 : vector<2x128xf32>
    %535 = arith.addf %531, %534 : vector<2x128xf32>
    %536 = arith.mulf %521, %528 : vector<2x1xf32>
    %537 = vector.broadcast %536 : vector<2x1xf32> to vector<2x128xf32>
    %538 = arith.mulf %537, %494 : vector<2x128xf32>
    %539 = arith.addf %535, %538 : vector<2x128xf32>
    %540 = arith.mulf %523, %528 : vector<2x1xf32>
    %541 = vector.broadcast %540 : vector<2x1xf32> to vector<2x128xf32>
    %542 = arith.mulf %541, %495 : vector<2x128xf32>
    %543 = arith.addf %539, %542 : vector<2x128xf32>
    %c304 = arith.constant 304 : index
    %c0_90 = arith.constant 0 : index
    %544 = vector.load %arg2[%c304, %c0_90] : memref<344x384xf32, #tpu.memory_space<vmem>>, vector<32x2xf32>
    %c336 = arith.constant 336 : index
    %c0_91 = arith.constant 0 : index
    %545 = vector.load %arg2[%c336, %c0_91] : memref<344x384xf32, #tpu.memory_space<vmem>>, vector<1x2xf32>
    %546 = vector.extract_strided_slice %543 {offsets = [0, 0], sizes = [2, 32], strides = [1, 1]} : vector<2x128xf32> to vector<2x32xf32>
    %cst_92 = arith.constant dense<0.000000e+00> : vector<2x2xf32>
    %547 = tpu.matmul %546, %544, %cst_92 {dimension_numbers = #tpu.dot_dimension_numbers<[1], [0], [0], [1], [0, 0, 1, 1], [], []>} : vector<2x32xf32>, vector<32x2xf32>, vector<2x2xf32> -> vector<2x2xf32>
    %548 = vector.broadcast %545 : vector<1x2xf32> to vector<2x2xf32>
    %549 = arith.addf %547, %548 : vector<2x2xf32>
    %c0_93 = arith.constant 0 : index
    %c0_94 = arith.constant 0 : index
    %550 = vector.load %arg3[%c0_93, %c0_94] : memref<2x2xf32, #tpu.memory_space<vmem>>, vector<2x2xf32>
    tpu.vector_store %arg3[%c0_93, %c0_94], %549 {strides = array<i32>} : memref<2x2xf32, #tpu.memory_space<vmem>>, vector<2x2xf32>,
    return
  }
  func.func @transform_0(%arg0: i32) -> (i32, i32) {
    %c0_i32 = arith.constant 0 : i32
    %c0_i32_0 = arith.constant 0 : i32
    %c0_i32_1 = arith.constant 0 : i32
    return %c0_i32, %c0_i32_0 : i32, i32
  }
  func.func @transform_1(%arg0: i32) -> (i32, i32) {
    %c0_i32 = arith.constant 0 : i32
    %c0_i32_0 = arith.constant 0 : i32
    %c0_i32_1 = arith.constant 0 : i32
    return %c0_i32, %c0_i32_0 : i32, i32
  }
  func.func @transform_2(%arg0: i32) -> (i32, i32) {
    %c0_i32 = arith.constant 0 : i32
    %c0_i32_0 = arith.constant 0 : i32
    %c0_i32_1 = arith.constant 0 : i32
    return %c0_i32, %c0_i32_0 : i32, i32
  }
}

</mosaic_0001>

<llo_original>
// kernel: _lambda_.1
$region0: #{_lambda_.1}
  #allocation0 [shape = 'u32[]', space=smem, size = 0x4, offset = 0x4, fixed_abs, tag = 'smem constant byte address 0x4 - core index']
  #allocation1 [shape = 'u32[144,128]{1,0:T(1,128)}', space=vmem, size = 0x12000, scoped, tag = 'internal scratch']
  %s0 = inlined_call_operand.vmem [shape: s32[72,5], index: 0, kind: input, shape index: {}]
  %s1 = inlined_call_operand.hbm [shape: f32[344,384], index: 1, kind: input, shape index: {}]
  %s2 = inlined_call_operand.hbm [shape: f32[2,2], index: 2, kind: output, shape index: {}]
  %s3 = sld [smem:[#allocation0]]
  $region22: #{_lambda_.1} parent=0
    _
  %s5 = ssub.s32 1, %s3
  %s6 = scalar_select 0, %s5, %s3
  $region1: #{_lambda_.1} parent=0
    #allocation2 [shape = 'u8[528384]{0}', space=vmem, size = 0x81000, scoped, tag = 'input window, operand 1, single buffered']
    #allocation3 [shape = 's32[1]{0}', space=sflag, size = 0x4, scoped, tag = 'scoped memory for _lambda_.1']
    #allocation4 [shape = 's32[1]{0}', space=sflag, size = 0x4, scoped, tag = 'scoped memory for _lambda_.1']
    #allocation5 [shape = 'u8[1024]{0}', space=vmem, size = 0x400, scoped, tag = 'output window, operand 0, single buffered']
    %7 = vsyncpa [#allocation3], 0
    %8 = vsyncpa [#allocation4], 0
    // Predicated region
    $region2: #{_lambda_.1} parent=1 // pred_check
      _
    $region3: #{_lambda_.1} parent=1 // pred_check_branch
      %10 = sbr.rel (0) target = $region5
    $region4: #{_lambda_.1} parent=1 // pred_region
      _
    $region5: #{_lambda_.1} parent=1 // pred_fallthru
      _
    // Predicated region
    $region6: #{_lambda_.1} parent=1 // pred_check
      _
    $region7: #{_lambda_.1} parent=1 // pred_check_branch
      %12 = sbr.rel (0) target = $region9
    $region8: #{_lambda_.1} parent=1 // pred_region
      %s14 = ssub.s32 16512, 16512
      %15 = vsyncadd [#allocation3], %s14
      %s16 = sshll.u32 [#allocation2], 4
      %s17 = int_to_ptr.vmem [resolvable:$true] %s16
      %22 = dma.hbm_to_vmem [thread:$0]  %s1, 16512, %s17, [#allocation3], 384, 384, 24
    $region9: #{_lambda_.1} parent=1 // pred_fallthru
      _
    // Predicated region
    $region10: #{_lambda_.1} parent=1 // pred_check
      _
    $region11: #{_lambda_.1} parent=1 // pred_check_branch
      %24 = sbr.rel (0) target = $region13
    $region12: #{_lambda_.1} parent=1 // pred_region
      %25 = dma.done [#allocation3], 16512
    $region13: #{_lambda_.1} parent=1 // pred_fallthru
      _
    %v26 = vld [vmem:[%s0] sm:$0xff]
    %v27 = vld [vmem:[%s0 + $0x8] sm:$0xff]
    %v28 = vld [vmem:[%s0 + $0x10] sm:$0xff]
    %v29 = vld [vmem:[%s0 + $0x18] sm:$0xff]
    %v30 = vld [vmem:[%s0 + $0x20] sm:$0xff]
    %v31 = vld [vmem:[%s0 + $0x28] sm:$0xff]
    %v32 = vld [vmem:[%s0 + $0x30] sm:$0xff]
    %v33 = vld [vmem:[%s0 + $0x38] sm:$0xff]
    %v34 = vld [vmem:[%s0 + $0x40] sm:$0xff]
    %v35 = vlaneseq
    %v36 = vand.u32 %v35, 127
    %37 = vset.pattern.permute.xlu0 0
    %38 = vperm.xlu0 %37, %v26
    %v39 = vpop.permute.xlu0 %38
    %40 = vset.pattern.permute.xlu0 0
    %41 = vperm.xlu0 %40, %v27
    %v42 = vpop.permute.xlu0 %41
    %43 = vset.pattern.permute.xlu0 0
    %44 = vperm.xlu0 %43, %v28
    %v45 = vpop.permute.xlu0 %44
    %46 = vset.pattern.permute.xlu0 0
    %47 = vperm.xlu0 %46, %v29
    %v48 = vpop.permute.xlu0 %47
    %49 = vset.pattern.permute.xlu0 0
    %50 = vperm.xlu0 %49, %v30
    %v51 = vpop.permute.xlu0 %50
    %52 = vset.pattern.permute.xlu0 0
    %53 = vperm.xlu0 %52, %v31
    %v54 = vpop.permute.xlu0 %53
    %55 = vset.pattern.permute.xlu0 0
    %56 = vperm.xlu0 %55, %v32
    %v57 = vpop.permute.xlu0 %56
    %58 = vset.pattern.permute.xlu0 0
    %59 = vperm.xlu0 %58, %v33
    %v60 = vpop.permute.xlu0 %59
    %61 = vset.pattern.permute.xlu0 0
    %62 = vperm.xlu0 %61, %v34
    %v63 = vpop.permute.xlu0 %62
    %vm64 = vcmp.eq.s32.totalorder %v36, %v39
    %vm65 = vcmp.eq.s32.totalorder %v36, %v42
    %vm66 = vcmp.eq.s32.totalorder %v36, %v45
    %vm67 = vcmp.eq.s32.totalorder %v36, %v48
    %vm68 = vcmp.eq.s32.totalorder %v36, %v51
    %vm69 = vcmp.eq.s32.totalorder %v36, %v54
    %vm70 = vcmp.eq.s32.totalorder %v36, %v57
    %vm71 = vcmp.eq.s32.totalorder %v36, %v60
    %vm72 = vcmp.eq.s32.totalorder %v36, %v63
    %v73 = vsel %vm64, 0.2, 0.0
    %v74 = vsel %vm65, 0.2, 0.0
    %v75 = vsel %vm66, 0.2, 0.0
    %v76 = vsel %vm67, 0.2, 0.0
    %v77 = vsel %vm68, 0.2, 0.0
    %v78 = vsel %vm69, 0.2, 0.0
    %v79 = vsel %vm70, 0.2, 0.0
    %v80 = vsel %vm71, 0.2, 0.0
    %v81 = vsel %vm72, 0.2, 0.0
    %v82 = vadd.f32 %v73, 0.0
    %v83 = vadd.f32 %v74, 0.0
    %v84 = vadd.f32 %v75, 0.0
    %v85 = vadd.f32 %v76, 0.0
    %v86 = vadd.f32 %v77, 0.0
    %v87 = vadd.f32 %v78, 0.0
    %v88 = vadd.f32 %v79, 0.0
    %v89 = vadd.f32 %v80, 0.0
    %v90 = vadd.f32 %v81, 0.0
    %91 = vset.pattern.permute.xlu0 1
    %92 = vperm.xlu0 %91, %v26
    %v93 = vpop.permute.xlu0 %92
    %94 = vset.pattern.permute.xlu0 1
    %95 = vperm.xlu0 %94, %v27
    %v96 = vpop.permute.xlu0 %95
    %97 = vset.pattern.permute.xlu0 1
    %98 = vperm.xlu0 %97, %v28
    %v99 = vpop.permute.xlu0 %98
    %100 = vset.pattern.permute.xlu0 1
    %101 = vperm.xlu0 %100, %v29
    %v102 = vpop.permute.xlu0 %101
    %103 = vset.pattern.permute.xlu0 1
    %104 = vperm.xlu0 %103, %v30
    %v105 = vpop.permute.xlu0 %104
    %106 = vset.pattern.permute.xlu0 1
    %107 = vperm.xlu0 %106, %v31
    %v108 = vpop.permute.xlu0 %107
    %109 = vset.pattern.permute.xlu0 1
    %110 = vperm.xlu0 %109, %v32
    %v111 = vpop.permute.xlu0 %110
    %112 = vset.pattern.permute.xlu0 1
    %113 = vperm.xlu0 %112, %v33
    %v114 = vpop.permute.xlu0 %113
    %115 = vset.pattern.permute.xlu0 1
    %116 = vperm.xlu0 %115, %v34
    %v117 = vpop.permute.xlu0 %116
    %vm118 = vcmp.eq.s32.totalorder %v36, %v93
    %vm119 = vcmp.eq.s32.totalorder %v36, %v96
    %vm120 = vcmp.eq.s32.totalorder %v36, %v99
    %vm121 = vcmp.eq.s32.totalorder %v36, %v102
    %vm122 = vcmp.eq.s32.totalorder %v36, %v105
    %vm123 = vcmp.eq.s32.totalorder %v36, %v108
    %vm124 = vcmp.eq.s32.totalorder %v36, %v111
    %vm125 = vcmp.eq.s32.totalorder %v36, %v114
    %vm126 = vcmp.eq.s32.totalorder %v36, %v117
    %v127 = vsel %vm118, 0.2, 0.0
    %v128 = vsel %vm119, 0.2, 0.0
    %v129 = vsel %vm120, 0.2, 0.0
    %v130 = vsel %vm121, 0.2, 0.0
    %v131 = vsel %vm122, 0.2, 0.0
    %v132 = vsel %vm123, 0.2, 0.0
    %v133 = vsel %vm124, 0.2, 0.0
    %v134 = vsel %vm125, 0.2, 0.0
    %v135 = vsel %vm126, 0.2, 0.0
    %v136 = vadd.f32 %v82, %v127
    %v137 = vadd.f32 %v83, %v128
    %v138 = vadd.f32 %v84, %v129
    %v139 = vadd.f32 %v85, %v130
    %v140 = vadd.f32 %v86, %v131
    %v141 = vadd.f32 %v87, %v132
    %v142 = vadd.f32 %v88, %v133
    %v143 = vadd.f32 %v89, %v134
    %v144 = vadd.f32 %v90, %v135
    %145 = vset.pattern.permute.xlu0 2
    %146 = vperm.xlu0 %145, %v26
    %v147 = vpop.permute.xlu0 %146
    %148 = vset.pattern.permute.xlu0 2
    %149 = vperm.xlu0 %148, %v27
    %v150 = vpop.permute.xlu0 %149
    %151 = vset.pattern.permute.xlu0 2
    %152 = vperm.xlu0 %151, %v28
    %v153 = vpop.permute.xlu0 %152
    %154 = vset.pattern.permute.xlu0 2
    %155 = vperm.xlu0 %154, %v29
    %v156 = vpop.permute.xlu0 %155
    %157 = vset.pattern.permute.xlu0 2
    %158 = vperm.xlu0 %157, %v30
    %v159 = vpop.permute.xlu0 %158
    %160 = vset.pattern.permute.xlu0 2
    %161 = vperm.xlu0 %160, %v31
    %v162 = vpop.permute.xlu0 %161
    %163 = vset.pattern.permute.xlu0 2
    %164 = vperm.xlu0 %163, %v32
    %v165 = vpop.permute.xlu0 %164
    %166 = vset.pattern.permute.xlu0 2
    %167 = vperm.xlu0 %166, %v33
    %v168 = vpop.permute.xlu0 %167
    %169 = vset.pattern.permute.xlu0 2
    %170 = vperm.xlu0 %169, %v34
    %v171 = vpop.permute.xlu0 %170
    %vm172 = vcmp.eq.s32.totalorder %v36, %v147
    %vm173 = vcmp.eq.s32.totalorder %v36, %v150
    %vm174 = vcmp.eq.s32.totalorder %v36, %v153
    %vm175 = vcmp.eq.s32.totalorder %v36, %v156
    %vm176 = vcmp.eq.s32.totalorder %v36, %v159
    %vm177 = vcmp.eq.s32.totalorder %v36, %v162
    %vm178 = vcmp.eq.s32.totalorder %v36, %v165
    %vm179 = vcmp.eq.s32.totalorder %v36, %v168
    %vm180 = vcmp.eq.s32.totalorder %v36, %v171
    %v181 = vsel %vm172, 0.2, 0.0
    %v182 = vsel %vm173, 0.2, 0.0
    %v183 = vsel %vm174, 0.2, 0.0
    %v184 = vsel %vm175, 0.2, 0.0
    %v185 = vsel %vm176, 0.2, 0.0
    %v186 = vsel %vm177, 0.2, 0.0
    %v187 = vsel %vm178, 0.2, 0.0
    %v188 = vsel %vm179, 0.2, 0.0
    %v189 = vsel %vm180, 0.2, 0.0
    %v190 = vadd.f32 %v136, %v181
    %v191 = vadd.f32 %v137, %v182
    %v192 = vadd.f32 %v138, %v183
    %v193 = vadd.f32 %v139, %v184
    %v194 = vadd.f32 %v140, %v185
    %v195 = vadd.f32 %v141, %v186
    %v196 = vadd.f32 %v142, %v187
    %v197 = vadd.f32 %v143, %v188
    %v198 = vadd.f32 %v144, %v189
    %199 = vset.pattern.permute.xlu0 3
    %200 = vperm.xlu0 %199, %v26
    %v201 = vpop.permute.xlu0 %200
    %202 = vset.pattern.permute.xlu0 3
    %203 = vperm.xlu0 %202, %v27
    %v204 = vpop.permute.xlu0 %203
    %205 = vset.pattern.permute.xlu0 3
    %206 = vperm.xlu0 %205, %v28
    %v207 = vpop.permute.xlu0 %206
    %208 = vset.pattern.permute.xlu0 3
    %209 = vperm.xlu0 %208, %v29
    %v210 = vpop.permute.xlu0 %209
    %211 = vset.pattern.permute.xlu0 3
    %212 = vperm.xlu0 %211, %v30
    %v213 = vpop.permute.xlu0 %212
    %214 = vset.pattern.permute.xlu0 3
    %215 = vperm.xlu0 %214, %v31
    %v216 = vpop.permute.xlu0 %215
    %217 = vset.pattern.permute.xlu0 3
    %218 = vperm.xlu0 %217, %v32
    %v219 = vpop.permute.xlu0 %218
    %220 = vset.pattern.permute.xlu0 3
    %221 = vperm.xlu0 %220, %v33
    %v222 = vpop.permute.xlu0 %221
    %223 = vset.pattern.permute.xlu0 3
    %224 = vperm.xlu0 %223, %v34
    %v225 = vpop.permute.xlu0 %224
    %vm226 = vcmp.eq.s32.totalorder %v36, %v201
    %vm227 = vcmp.eq.s32.totalorder %v36, %v204
    %vm228 = vcmp.eq.s32.totalorder %v36, %v207
    %vm229 = vcmp.eq.s32.totalorder %v36, %v210
    %vm230 = vcmp.eq.s32.totalorder %v36, %v213
    %vm231 = vcmp.eq.s32.totalorder %v36, %v216
    %vm232 = vcmp.eq.s32.totalorder %v36, %v219
    %vm233 = vcmp.eq.s32.totalorder %v36, %v222
    %vm234 = vcmp.eq.s32.totalorder %v36, %v225
    %v235 = vsel %vm226, 0.2, 0.0
    %v236 = vsel %vm227, 0.2, 0.0
    %v237 = vsel %vm228, 0.2, 0.0
    %v238 = vsel %vm229, 0.2, 0.0
    %v239 = vsel %vm230, 0.2, 0.0
    %v240 = vsel %vm231, 0.2, 0.0
    %v241 = vsel %vm232, 0.2, 0.0
    %v242 = vsel %vm233, 0.2, 0.0
    %v243 = vsel %vm234, 0.2, 0.0
    %v244 = vadd.f32 %v190, %v235
    %v245 = vadd.f32 %v191, %v236
    %v246 = vadd.f32 %v192, %v237
    %v247 = vadd.f32 %v193, %v238
    %v248 = vadd.f32 %v194, %v239
    %v249 = vadd.f32 %v195, %v240
    %v250 = vadd.f32 %v196, %v241
    %v251 = vadd.f32 %v197, %v242
    %v252 = vadd.f32 %v198, %v243
    %253 = vset.pattern.permute.xlu0 4
    %254 = vperm.xlu0 %253, %v26
    %v255 = vpop.permute.xlu0 %254
    %256 = vset.pattern.permute.xlu0 4
    %257 = vperm.xlu0 %256, %v27
    %v258 = vpop.permute.xlu0 %257
    %259 = vset.pattern.permute.xlu0 4
    %260 = vperm.xlu0 %259, %v28
    %v261 = vpop.permute.xlu0 %260
    %262 = vset.pattern.permute.xlu0 4
    %263 = vperm.xlu0 %262, %v29
    %v264 = vpop.permute.xlu0 %263
    %265 = vset.pattern.permute.xlu0 4
    %266 = vperm.xlu0 %265, %v30
    %v267 = vpop.permute.xlu0 %266
    %268 = vset.pattern.permute.xlu0 4
    %269 = vperm.xlu0 %268, %v31
    %v270 = vpop.permute.xlu0 %269
    %271 = vset.pattern.permute.xlu0 4
    %272 = vperm.xlu0 %271, %v32
    %v273 = vpop.permute.xlu0 %272
    %274 = vset.pattern.permute.xlu0 4
    %275 = vperm.xlu0 %274, %v33
    %v276 = vpop.permute.xlu0 %275
    %277 = vset.pattern.permute.xlu0 4
    %278 = vperm.xlu0 %277, %v34
    %v279 = vpop.permute.xlu0 %278
    %vm280 = vcmp.eq.s32.totalorder %v36, %v255
    %vm281 = vcmp.eq.s32.totalorder %v36, %v258
    %vm282 = vcmp.eq.s32.totalorder %v36, %v261
    %vm283 = vcmp.eq.s32.totalorder %v36, %v264
    %vm284 = vcmp.eq.s32.totalorder %v36, %v267
    %vm285 = vcmp.eq.s32.totalorder %v36, %v270
    %vm286 = vcmp.eq.s32.totalorder %v36, %v273
    %vm287 = vcmp.eq.s32.totalorder %v36, %v276
    %vm288 = vcmp.eq.s32.totalorder %v36, %v279
    %v289 = vsel %vm280, 0.2, 0.0
    %v290 = vsel %vm281, 0.2, 0.0
    %v291 = vsel %vm282, 0.2, 0.0
    %v292 = vsel %vm283, 0.2, 0.0
    %v293 = vsel %vm284, 0.2, 0.0
    %v294 = vsel %vm285, 0.2, 0.0
    %v295 = vsel %vm286, 0.2, 0.0
    %v296 = vsel %vm287, 0.2, 0.0
    %v297 = vsel %vm288, 0.2, 0.0
    %v298 = vadd.f32 %v244, %v289
    %v299 = vadd.f32 %v245, %v290
    %v300 = vadd.f32 %v246, %v291
    %v301 = vadd.f32 %v247, %v292
    %v302 = vadd.f32 %v248, %v293
    %v303 = vadd.f32 %v249, %v294
    %v304 = vadd.f32 %v250, %v295
    %v305 = vadd.f32 %v251, %v296
    %v306 = vadd.f32 %v252, %v297
    %v307 = vld [vmem:[#allocation2] sm:$0xff]
    %v308 = vld [vmem:[#allocation2 + $0x18] sm:$0xff]
    %v309 = vld [vmem:[#allocation2 + $0x30] sm:$0xff]
    %v310 = vld [vmem:[#allocation2 + $0x48] sm:$0xff]
    %v311 = vld [vmem:[#allocation2 + $0x60] sm:$0xff]
    %v312 = vld [vmem:[#allocation2 + $0x78] sm:$0xff]
    %v313 = vld [vmem:[#allocation2 + $0x90] sm:$0xff]
    %vm314 = vcmask 457728
    %v316 = vsel %vm314, %v298, 0
    %v319 = vsel %vm314, %v299, 0
    %v322 = vsel %vm314, %v300, 0
    %v325 = vsel %vm314, %v301, 0
    %v328 = vsel %vm314, %v302, 0
    %v331 = vsel %vm314, %v303, 0
    %v334 = vsel %vm314, %v304, 0
    %v337 = vsel %vm314, %v305, 0
    %v340 = vsel %vm314, %v306, 0
    %342 = vmatprep.subr.mxu0 0.0
    %343 = vmatpush1.msra.mxu0 %v307
    %344 = vmatprep.subr.mxu0 0.0
    %345 = vmatpush1.msra.mxu0 %v308
    %346 = vmatprep.subr.mxu0 0.0
    %347 = vmatpush1.msra.mxu0 %v309
    %348 = vmatprep.subr.mxu0 0.0
    %349 = vmatpush1.msra.mxu0 %v310
    %350 = vmatprep.subr.mxu0 0.0
    %351 = vmatpush1.msra.mxu0 %v311
    %352 = vmatprep.subr.mxu0 0.0
    %353 = vmatpush1.msra.mxu0 %v312
    %354 = vmatprep.subr.mxu0 0.0
    %355 = vmatpush1.msra.mxu0 %v313
    %356 = vmatprep.subr.mxu0 0.0
    %357 = vmatpush1.msra.mxu0 0.0
    %358 = vmatprep.subr.mxu0 0.0
    %359 = vmatpush1.msra.mxu0 0.0
    %360 = vmatprep.subr.mxu0 0.0
    %361 = vmatpush1.msra.mxu0 0.0
    %362 = vmatprep.subr.mxu0 0.0
    %363 = vmatpush1.msra.mxu0 0.0
    %364 = vmatprep.subr.mxu0 0.0
    %365 = vmatpush1.msra.mxu0 0.0
    %366 = vmatprep.subr.mxu0 0.0
    %367 = vmatpush1.msra.mxu0 0.0
    %368 = vmatprep.subr.mxu0 0.0
    %369 = vmatpush1.msra.mxu0 0.0
    %370 = vmatprep.subr.mxu0 0.0
    %371 = vmatpush1.msra.mxu0 0.0
    %372 = vmatprep.subr.mxu0 0.0
    %373 = vmatpush1.msra.mxu0 0.0
    %374 = vmatprep.subr.mxu0 0.0
    %375 = vmatpush1.msra.mxu0 0.0
    %376 = vmatprep.subr.mxu0 0.0
    %377 = vmatpush1.msra.mxu0 0.0
    %378 = vmatprep.subr.mxu0 0.0
    %379 = vmatpush1.msra.mxu0 0.0
    %380 = vmatprep.subr.mxu0 0.0
    %381 = vmatpush1.msra.mxu0 0.0
    %382 = vmatprep.subr.mxu0 0.0
    %383 = vmatpush1.msra.mxu0 0.0
    %384 = vmatprep.subr.mxu0 0.0
    %385 = vmatpush1.msra.mxu0 0.0
    %386 = vmatprep.subr.mxu0 0.0
    %387 = vmatpush1.msra.mxu0 0.0
    %388 = vmatprep.subr.mxu0 0.0
    %389 = vmatpush1.msra.mxu0 0.0
    %390 = vmatprep.subr.mxu0 0.0
    %391 = vmatpush1.msra.mxu0 0.0
    %392 = vmatprep.subr.mxu0 0.0
    %393 = vmatpush1.msra.mxu0 0.0
    %394 = vmatprep.subr.mxu0 0.0
    %395 = vmatpush1.msra.mxu0 0.0
    %396 = vmatprep.subr.mxu0 0.0
    %397 = vmatpush1.msra.mxu0 0.0
    %398 = vmatprep.subr.mxu0 0.0
    %399 = vmatpush1.msra.mxu0 0.0
    %400 = vmatprep.subr.mxu0 0.0
    %401 = vmatpush1.msra.mxu0 0.0
    %402 = vmatprep.subr.mxu0 0.0
    %403 = vmatpush1.msra.mxu0 0.0
    %404 = vmatprep.subr.mxu0 0.0
    %405 = vmatpush1.msra.mxu0 0.0
    %406 = vmatprep.mubr.f32.mxu0 0.0
    %407 = vmatmul.mubr.f32.gmra.mrb[0].mxu0 %v316
    %v408 = vpop.f32.mrb[0].mxu0
    %v409 = vadd.f32 0.0, %v408
    %v410 = vpop.f32.mrb[0].mxu0
    %411 = vmatprep.mubr.f32.mxu0 0.0
    %412 = vmatmul.mubr.f32.gmra.mrb[0].mxu0 %v319
    %v413 = vpop.f32.mrb[0].mxu0
    %v414 = vadd.f32 0.0, %v413
    %v415 = vpop.f32.mrb[0].mxu0
    %416 = vmatprep.mubr.f32.mxu0 0.0
    %417 = vmatmul.mubr.f32.gmra.mrb[0].mxu0 %v322
    %v418 = vpop.f32.mrb[0].mxu0
    %v419 = vadd.f32 0.0, %v418
    %v420 = vpop.f32.mrb[0].mxu0
    %421 = vmatprep.mubr.f32.mxu0 0.0
    %422 = vmatmul.mubr.f32.gmra.mrb[0].mxu0 %v325
    %v423 = vpop.f32.mrb[0].mxu0
    %v424 = vadd.f32 0.0, %v423
    %v425 = vpop.f32.mrb[0].mxu0
    %426 = vmatprep.mubr.f32.mxu0 0.0
    %427 = vmatmul.mubr.f32.gmra.mrb[0].mxu0 %v328
    %v428 = vpop.f32.mrb[0].mxu0
    %v429 = vadd.f32 0.0, %v428
    %v430 = vpop.f32.mrb[0].mxu0
    %431 = vmatprep.mubr.f32.mxu0 0.0
    %432 = vmatmul.mubr.f32.gmra.mrb[0].mxu0 %v331
    %v433 = vpop.f32.mrb[0].mxu0
    %v434 = vadd.f32 0.0, %v433
    %v435 = vpop.f32.mrb[0].mxu0
    %436 = vmatprep.mubr.f32.mxu0 0.0
    %437 = vmatmul.mubr.f32.gmra.mrb[0].mxu0 %v334
    %v438 = vpop.f32.mrb[0].mxu0
    %v439 = vadd.f32 0.0, %v438
    %v440 = vpop.f32.mrb[0].mxu0
    %441 = vmatprep.mubr.f32.mxu0 0.0
    %442 = vmatmul.mubr.f32.gmra.mrb[0].mxu0 %v337
    %v443 = vpop.f32.mrb[0].mxu0
    %v444 = vadd.f32 0.0, %v443
    %v445 = vpop.f32.mrb[0].mxu0
    %446 = vmatprep.mubr.f32.mxu0 0.0
    %447 = vmatmul.mubr.f32.gmra.mrb[0].mxu0 %v340
    %v448 = vpop.f32.mrb[0].mxu0
    %v449 = vadd.f32 0.0, %v448
    %v450 = vpop.f32.mrb[0].mxu0
    %451 = vdwg.mxu0
    %v452 = vld [vmem:[#allocation2 + $0xa8] sm:$0xff]
    %v453 = vld [vmem:[#allocation2 + $0xb0] sm:$0xff]
    %v454 = vld [vmem:[#allocation2 + $0xb8] sm:$0xff]
    %v455 = vld [vmem:[#allocation2 + $0xc0] sm:$0xff]
    %v456 = vld [vmem:[#allocation2 + $0xc8] sm:$0xff]
    %v457 = vld [vmem:[#allocation2 + $0xd0] sm:$0xff]
    %s458 = scalar_lea.vmem [#allocation2], 216
    %v459 = vld [vmem:[%s458] ss:$8 sm:$0x7]
    %v460 = vld [vmem:[#allocation2 + $0xf0] sm:$0xff]
    %v461 = vld [vmem:[#allocation2 + $0xf8] sm:$0xff]
    %v462 = vld [vmem:[#allocation2 + $0x100] sm:$0xff]
    %s463 = scalar_lea.vmem [#allocation2], 264
    %v464 = vld [vmem:[%s463] ss:$8 sm:$0x7]
    %v466 = vlaneseq
    %v467 = vshrl.u32 %v466, 7
    %v468 = vsub.s32 0, %v467
    %v469 = vrot.slane %v459, %v468
    %v470 = vlaneseq
    %v471 = vshrl.u32 %v470, 7
    %v472 = vsub.s32 1, %v471
    %v473 = vrot.slane %v459, %v472
    %v474 = vlaneseq
    %v475 = vshrl.u32 %v474, 7
    %v476 = vsub.s32 2, %v475
    %v477 = vrot.slane %v459, %v476
    %vm481 = vcmask 130048
    %v483 = vsel %vm481, %v409, 0
    %v486 = vsel %vm481, %v414, 0
    %v489 = vsel %vm481, %v419, 0
    %v492 = vsel %vm481, %v424, 0
    %v495 = vsel %vm481, %v429, 0
    %v498 = vsel %vm481, %v434, 0
    %v501 = vsel %vm481, %v439, 0
    %v504 = vsel %vm481, %v444, 0
    %v507 = vsel %vm481, %v449, 0
    %509 = vmatprep.subr.mxu0 %v453
    %510 = vmatpush1.msra.mxu0 %v452
    %511 = vmatprep.subr.mxu0 %v456
    %512 = vmatpush1.msra.mxu0 %v455
    %513 = vmatprep.subr.mxu0 0.0
    %514 = vmatpush1.msra.mxu0 0.0
    %515 = vmatprep.subr.mxu0 0.0
    %516 = vmatpush1.msra.mxu0 0.0
    %517 = vmatprep.subr.mxu0 0.0
    %518 = vmatpush1.msra.mxu0 0.0
    %519 = vmatprep.subr.mxu0 0.0
    %520 = vmatpush1.msra.mxu0 0.0
    %521 = vmatprep.subr.mxu0 0.0
    %522 = vmatpush1.msra.mxu0 0.0
    %523 = vmatprep.subr.mxu0 0.0
    %524 = vmatpush1.msra.mxu0 0.0
    %525 = vmatprep.subr.mxu0 0.0
    %526 = vmatpush1.msra.mxu0 0.0
    %527 = vmatprep.subr.mxu0 0.0
    %528 = vmatpush1.msra.mxu0 0.0
    %529 = vmatprep.subr.mxu0 0.0
    %530 = vmatpush1.msra.mxu0 0.0
    %531 = vmatprep.subr.mxu0 0.0
    %532 = vmatpush1.msra.mxu0 0.0
    %533 = vmatprep.subr.mxu0 0.0
    %534 = vmatpush1.msra.mxu0 0.0
    %535 = vmatprep.subr.mxu0 0.0
    %536 = vmatpush1.msra.mxu0 0.0
    %537 = vmatprep.subr.mxu0 0.0
    %538 = vmatpush1.msra.mxu0 0.0
    %539 = vmatprep.subr.mxu0 0.0
    %540 = vmatpush1.msra.mxu0 0.0
    %541 = vmatprep.subr.mxu0 0.0
    %542 = vmatpush1.msra.mxu0 0.0
    %543 = vmatprep.subr.mxu0 0.0
    %544 = vmatpush1.msra.mxu0 0.0
    %545 = vmatprep.subr.mxu0 0.0
    %546 = vmatpush1.msra.mxu0 0.0
    %547 = vmatprep.subr.mxu0 0.0
    %548 = vmatpush1.msra.mxu0 0.0
    %549 = vmatprep.subr.mxu0 0.0
    %550 = vmatpush1.msra.mxu0 0.0
    %551 = vmatprep.subr.mxu0 0.0
    %552 = vmatpush1.msra.mxu0 0.0
    %553 = vmatprep.subr.mxu0 0.0
    %554 = vmatpush1.msra.mxu0 0.0
    %555 = vmatprep.subr.mxu0 0.0
    %556 = vmatpush1.msra.mxu0 0.0
    %557 = vmatprep.subr.mxu0 0.0
    %558 = vmatpush1.msra.mxu0 0.0
    %559 = vmatprep.subr.mxu0 0.0
    %560 = vmatpush1.msra.mxu0 0.0
    %561 = vmatprep.subr.mxu0 0.0
    %562 = vmatpush1.msra.mxu0 0.0
    %563 = vmatprep.subr.mxu0 0.0
    %564 = vmatpush1.msra.mxu0 0.0
    %565 = vmatprep.subr.mxu0 0.0
    %566 = vmatpush1.msra.mxu0 0.0
    %567 = vmatprep.subr.mxu0 0.0
    %568 = vmatpush1.msra.mxu0 0.0
    %569 = vmatprep.subr.mxu0 0.0
    %570 = vmatpush1.msra.mxu0 0.0
    %571 = vmatprep.subr.mxu0 0.0
    %572 = vmatpush1.msra.mxu0 0.0
    %573 = vmatprep.mubr.f32.mxu0 0.0
    %574 = vmatmul.mubr.f32.gmra.mrb[0].mxu0 %v483
    %v575 = vpop.f32.mrb[0].mxu0
    %v576 = vadd.f32 %v469, %v575
    %v577 = vpop.f32.mrb[0].mxu0
    %v578 = vadd.f32 %v473, %v577
    %579 = vmatprep.mubr.f32.mxu0 0.0
    %580 = vmatmul.mubr.f32.gmra.mrb[0].mxu0 %v486
    %v581 = vpop.f32.mrb[0].mxu0
    %v582 = vadd.f32 %v469, %v581
    %v583 = vpop.f32.mrb[0].mxu0
    %v584 = vadd.f32 %v473, %v583
    %585 = vmatprep.mubr.f32.mxu0 0.0
    %586 = vmatmul.mubr.f32.gmra.mrb[0].mxu0 %v489
    %v587 = vpop.f32.mrb[0].mxu0
    %v588 = vadd.f32 %v469, %v587
    %v589 = vpop.f32.mrb[0].mxu0
    %v590 = vadd.f32 %v473, %v589
    %591 = vmatprep.mubr.f32.mxu0 0.0
    %592 = vmatmul.mubr.f32.gmra.mrb[0].mxu0 %v492
    %v593 = vpop.f32.mrb[0].mxu0
    %v594 = vadd.f32 %v469, %v593
    %v595 = vpop.f32.mrb[0].mxu0
    %v596 = vadd.f32 %v473, %v595
    %597 = vmatprep.mubr.f32.mxu0 0.0
    %598 = vmatmul.mubr.f32.gmra.mrb[0].mxu0 %v495
    %v599 = vpop.f32.mrb[0].mxu0
    %v600 = vadd.f32 %v469, %v599
    %v601 = vpop.f32.mrb[0].mxu0
    %v602 = vadd.f32 %v473, %v601
    %603 = vmatprep.mubr.f32.mxu0 0.0
    %604 = vmatmul.mubr.f32.gmra.mrb[0].mxu0 %v498
    %v605 = vpop.f32.mrb[0].mxu0
    %v606 = vadd.f32 %v469, %v605
    %v607 = vpop.f32.mrb[0].mxu0
    %v608 = vadd.f32 %v473, %v607
    %609 = vmatprep.mubr.f32.mxu0 0.0
    %610 = vmatmul.mubr.f32.gmra.mrb[0].mxu0 %v501
    %v611 = vpop.f32.mrb[0].mxu0
    %v612 = vadd.f32 %v469, %v611
    %v613 = vpop.f32.mrb[0].mxu0
    %v614 = vadd.f32 %v473, %v613
    %615 = vmatprep.mubr.f32.mxu0 0.0
    %616 = vmatmul.mubr.f32.gmra.mrb[0].mxu0 %v504
    %v617 = vpop.f32.mrb[0].mxu0
    %v618 = vadd.f32 %v469, %v617
    %v619 = vpop.f32.mrb[0].mxu0
    %v620 = vadd.f32 %v473, %v619
    %621 = vmatprep.mubr.f32.mxu0 0.0
    %622 = vmatmul.mubr.f32.gmra.mrb[0].mxu0 %v507
    %v623 = vpop.f32.mrb[0].mxu0
    %v624 = vadd.f32 %v469, %v623
    %v625 = vpop.f32.mrb[0].mxu0
    %v626 = vadd.f32 %v473, %v625
    %627 = vdwg.mxu0
    %628 = vmatprep.subr.mxu0 0.0
    %629 = vmatpush1.msra.mxu0 %v454
    %630 = vmatprep.subr.mxu0 0.0
    %631 = vmatpush1.msra.mxu0 %v457
    %632 = vmatprep.subr.mxu0 0.0
    %633 = vmatpush1.msra.mxu0 0.0
    %634 = vmatprep.subr.mxu0 0.0
    %635 = vmatpush1.msra.mxu0 0.0
    %636 = vmatprep.subr.mxu0 0.0
    %637 = vmatpush1.msra.mxu0 0.0
    %638 = vmatprep.subr.mxu0 0.0
    %639 = vmatpush1.msra.mxu0 0.0
    %640 = vmatprep.subr.mxu0 0.0
    %641 = vmatpush1.msra.mxu0 0.0
    %642 = vmatprep.subr.mxu0 0.0
    %643 = vmatpush1.msra.mxu0 0.0
    %644 = vmatprep.subr.mxu0 0.0
    %645 = vmatpush1.msra.mxu0 0.0
    %646 = vmatprep.subr.mxu0 0.0
    %647 = vmatpush1.msra.mxu0 0.0
    %648 = vmatprep.subr.mxu0 0.0
    %649 = vmatpush1.msra.mxu0 0.0
    %650 = vmatprep.subr.mxu0 0.0
    %651 = vmatpush1.msra.mxu0 0.0
    %652 = vmatprep.subr.mxu0 0.0
    %653 = vmatpush1.msra.mxu0 0.0
    %654 = vmatprep.subr.mxu0 0.0
    %655 = vmatpush1.msra.mxu0 0.0
    %656 = vmatprep.subr.mxu0 0.0
    %657 = vmatpush1.msra.mxu0 0.0
    %658 = vmatprep.subr.mxu0 0.0
    %659 = vmatpush1.msra.mxu0 0.0
    %660 = vmatprep.subr.mxu0 0.0
    %661 = vmatpush1.msra.mxu0 0.0
    %662 = vmatprep.subr.mxu0 0.0
    %663 = vmatpush1.msra.mxu0 0.0
    %664 = vmatprep.subr.mxu0 0.0
    %665 = vmatpush1.msra.mxu0 0.0
    %666 = vmatprep.subr.mxu0 0.0
    %667 = vmatpush1.msra.mxu0 0.0
    %668 = vmatprep.subr.mxu0 0.0
    %669 = vmatpush1.msra.mxu0 0.0
    %670 = vmatprep.subr.mxu0 0.0
    %671 = vmatpush1.msra.mxu0 0.0
    %672 = vmatprep.subr.mxu0 0.0
    %673 = vmatpush1.msra.mxu0 0.0
    %674 = vmatprep.subr.mxu0 0.0
    %675 = vmatpush1.msra.mxu0 0.0
    %676 = vmatprep.subr.mxu0 0.0
    %677 = vmatpush1.msra.mxu0 0.0
    %678 = vmatprep.subr.mxu0 0.0
    %679 = vmatpush1.msra.mxu0 0.0
    %680 = vmatprep.subr.mxu0 0.0
    %681 = vmatpush1.msra.mxu0 0.0
    %682 = vmatprep.subr.mxu0 0.0
    %683 = vmatpush1.msra.mxu0 0.0
    %684 = vmatprep.subr.mxu0 0.0
    %685 = vmatpush1.msra.mxu0 0.0
    %686 = vmatprep.subr.mxu0 0.0
    %687 = vmatpush1.msra.mxu0 0.0
    %688 = vmatprep.subr.mxu0 0.0
    %689 = vmatpush1.msra.mxu0 0.0
    %690 = vmatprep.subr.mxu0 0.0
    %691 = vmatpush1.msra.mxu0 0.0
    %692 = vmatprep.mubr.f32.mxu0 0.0
    %693 = vmatmul.mubr.f32.gmra.mrb[0].mxu0 %v483
    %v694 = vpop.f32.mrb[0].mxu0
    %v695 = vadd.f32 %v477, %v694
    %v696 = vpop.f32.mrb[0].mxu0
    %697 = vmatprep.mubr.f32.mxu0 0.0
    %698 = vmatmul.mubr.f32.gmra.mrb[0].mxu0 %v486
    %v699 = vpop.f32.mrb[0].mxu0
    %v700 = vadd.f32 %v477, %v699
    %v701 = vpop.f32.mrb[0].mxu0
    %702 = vmatprep.mubr.f32.mxu0 0.0
    %703 = vmatmul.mubr.f32.gmra.mrb[0].mxu0 %v489
    %v704 = vpop.f32.mrb[0].mxu0
    %v705 = vadd.f32 %v477, %v704
    %v706 = vpop.f32.mrb[0].mxu0
    %707 = vmatprep.mubr.f32.mxu0 0.0
    %708 = vmatmul.mubr.f32.gmra.mrb[0].mxu0 %v492
    %v709 = vpop.f32.mrb[0].mxu0
    %v710 = vadd.f32 %v477, %v709
    %v711 = vpop.f32.mrb[0].mxu0
    %712 = vmatprep.mubr.f32.mxu0 0.0
    %713 = vmatmul.mubr.f32.gmra.mrb[0].mxu0 %v495
    %v714 = vpop.f32.mrb[0].mxu0
    %v715 = vadd.f32 %v477, %v714
    %v716 = vpop.f32.mrb[0].mxu0
    %717 = vmatprep.mubr.f32.mxu0 0.0
    %718 = vmatmul.mubr.f32.gmra.mrb[0].mxu0 %v498
    %v719 = vpop.f32.mrb[0].mxu0
    %v720 = vadd.f32 %v477, %v719
    %v721 = vpop.f32.mrb[0].mxu0
    %722 = vmatprep.mubr.f32.mxu0 0.0
    %723 = vmatmul.mubr.f32.gmra.mrb[0].mxu0 %v501
    %v724 = vpop.f32.mrb[0].mxu0
    %v725 = vadd.f32 %v477, %v724
    %v726 = vpop.f32.mrb[0].mxu0
    %727 = vmatprep.mubr.f32.mxu0 0.0
    %728 = vmatmul.mubr.f32.gmra.mrb[0].mxu0 %v504
    %v729 = vpop.f32.mrb[0].mxu0
    %v730 = vadd.f32 %v477, %v729
    %v731 = vpop.f32.mrb[0].mxu0
    %732 = vmatprep.mubr.f32.mxu0 0.0
    %733 = vmatmul.mubr.f32.gmra.mrb[0].mxu0 %v507
    %v734 = vpop.f32.mrb[0].mxu0
    %v735 = vadd.f32 %v477, %v734
    %v736 = vpop.f32.mrb[0].mxu0
    %737 = vdwg.mxu0
    %vm738 = vcmp.lt.s32.totalorder %v36, 4
    %v739 = vsel %vm738, %v576, %v612
    %v740 = vsel %vm738, %v578, %v614
    %v741 = vsel %vm738, %v695, %v725
    %v742 = vsel %vm738, %v582, %v618
    %v743 = vsel %vm738, %v584, %v620
    %v744 = vsel %vm738, %v700, %v730
    %v745 = vsel %vm738, %v588, %v624
    %v746 = vsel %vm738, %v590, %v626
    %v747 = vsel %vm738, %v705, %v735
    %v749 = vlaneseq
    %v750 = vshrl.u32 %v749, 7
    %v751 = vsub.s32 0, %v750
    %v752 = vrot.slane %v464, %v751
    %v753 = vlaneseq
    %v754 = vshrl.u32 %v753, 7
    %v755 = vsub.s32 1, %v754
    %v756 = vrot.slane %v464, %v755
    %v757 = vlaneseq
    %v758 = vshrl.u32 %v757, 7
    %v759 = vsub.s32 2, %v758
    %v760 = vrot.slane %v464, %v759
    %vm764 = vcmask 64512
    %v766 = vsel %vm764, 0.0, 0
    %768 = vmatprep.subr.mxu0 %v461
    %769 = vmatpush1.msra.mxu0 %v460
    %770 = vmatprep.subr.mxu0 0.0
    %771 = vmatpush1.msra.mxu0 0.0
    %772 = vmatprep.subr.mxu0 0.0
    %773 = vmatpush1.msra.mxu0 0.0
    %774 = vmatprep.subr.mxu0 0.0
    %775 = vmatpush1.msra.mxu0 0.0
    %776 = vmatprep.subr.mxu0 0.0
    %777 = vmatpush1.msra.mxu0 0.0
    %778 = vmatprep.subr.mxu0 0.0
    %779 = vmatpush1.msra.mxu0 0.0
    %780 = vmatprep.subr.mxu0 0.0
    %781 = vmatpush1.msra.mxu0 0.0
    %782 = vmatprep.subr.mxu0 0.0
    %783 = vmatpush1.msra.mxu0 0.0
    %784 = vmatprep.subr.mxu0 0.0
    %785 = vmatpush1.msra.mxu0 0.0
    %786 = vmatprep.subr.mxu0 0.0
    %787 = vmatpush1.msra.mxu0 0.0
    %788 = vmatprep.subr.mxu0 0.0
    %789 = vmatpush1.msra.mxu0 0.0
    %790 = vmatprep.subr.mxu0 0.0
    %791 = vmatpush1.msra.mxu0 0.0
    %792 = vmatprep.subr.mxu0 0.0
    %793 = vmatpush1.msra.mxu0 0.0
    %794 = vmatprep.subr.mxu0 0.0
    %795 = vmatpush1.msra.mxu0 0.0
    %796 = vmatprep.subr.mxu0 0.0
    %797 = vmatpush1.msra.mxu0 0.0
    %798 = vmatprep.subr.mxu0 0.0
    %799 = vmatpush1.msra.mxu0 0.0
    %800 = vmatprep.subr.mxu0 0.0
    %801 = vmatpush1.msra.mxu0 0.0
    %802 = vmatprep.subr.mxu0 0.0
    %803 = vmatpush1.msra.mxu0 0.0
    %804 = vmatprep.subr.mxu0 0.0
    %805 = vmatpush1.msra.mxu0 0.0
    %806 = vmatprep.subr.mxu0 0.0
    %807 = vmatpush1.msra.mxu0 0.0
    %808 = vmatprep.subr.mxu0 0.0
    %809 = vmatpush1.msra.mxu0 0.0
    %810 = vmatprep.subr.mxu0 0.0
    %811 = vmatpush1.msra.mxu0 0.0
    %812 = vmatprep.subr.mxu0 0.0
    %813 = vmatpush1.msra.mxu0 0.0
    %814 = vmatprep.subr.mxu0 0.0
    %815 = vmatpush1.msra.mxu0 0.0
    %816 = vmatprep.subr.mxu0 0.0
    %817 = vmatpush1.msra.mxu0 0.0
    %818 = vmatprep.subr.mxu0 0.0
    %819 = vmatpush1.msra.mxu0 0.0
    %820 = vmatprep.subr.mxu0 0.0
    %821 = vmatpush1.msra.mxu0 0.0
    %822 = vmatprep.subr.mxu0 0.0
    %823 = vmatpush1.msra.mxu0 0.0
    %824 = vmatprep.subr.mxu0 0.0
    %825 = vmatpush1.msra.mxu0 0.0
    %826 = vmatprep.subr.mxu0 0.0
    %827 = vmatpush1.msra.mxu0 0.0
    %828 = vmatprep.subr.mxu0 0.0
    %829 = vmatpush1.msra.mxu0 0.0
    %830 = vmatprep.subr.mxu0 0.0
    %831 = vmatpush1.msra.mxu0 0.0
    %832 = vmatprep.mubr.f32.mxu0 0.0
    %833 = vmatmul.mubr.f32.gmra.mrb[0].mxu0 %v766
    %v834 = vpop.f32.mrb[0].mxu0
    %v835 = vadd.f32 %v752, %v834
    %v836 = vpop.f32.mrb[0].mxu0
    %v837 = vadd.f32 %v756, %v836
    %838 = vmatprep.mubr.f32.mxu0 0.0
    %839 = vmatmul.mubr.f32.gmra.mrb[0].mxu0 %v766
    %v840 = vpop.f32.mrb[0].mxu0
    %v841 = vadd.f32 %v752, %v840
    %v842 = vpop.f32.mrb[0].mxu0
    %v843 = vadd.f32 %v756, %v842
    %844 = vmatprep.mubr.f32.mxu0 0.0
    %845 = vmatmul.mubr.f32.gmra.mrb[0].mxu0 %v766
    %v846 = vpop.f32.mrb[0].mxu0
    %v847 = vadd.f32 %v752, %v846
    %v848 = vpop.f32.mrb[0].mxu0
    %v849 = vadd.f32 %v756, %v848
    %850 = vdwg.mxu0
    %851 = vmatprep.subr.mxu0 0.0
    %852 = vmatpush1.msra.mxu0 %v462
    %853 = vmatprep.subr.mxu0 0.0
    %854 = vmatpush1.msra.mxu0 0.0
    %855 = vmatprep.subr.mxu0 0.0
    %856 = vmatpush1.msra.mxu0 0.0
    %857 = vmatprep.subr.mxu0 0.0
    %858 = vmatpush1.msra.mxu0 0.0
    %859 = vmatprep.subr.mxu0 0.0
    %860 = vmatpush1.msra.mxu0 0.0
    %861 = vmatprep.subr.mxu0 0.0
    %862 = vmatpush1.msra.mxu0 0.0
    %863 = vmatprep.subr.mxu0 0.0
    %864 = vmatpush1.msra.mxu0 0.0
    %865 = vmatprep.subr.mxu0 0.0
    %866 = vmatpush1.msra.mxu0 0.0
    %867 = vmatprep.subr.mxu0 0.0
    %868 = vmatpush1.msra.mxu0 0.0
    %869 = vmatprep.subr.mxu0 0.0
    %870 = vmatpush1.msra.mxu0 0.0
    %871 = vmatprep.subr.mxu0 0.0
    %872 = vmatpush1.msra.mxu0 0.0
    %873 = vmatprep.subr.mxu0 0.0
    %874 = vmatpush1.msra.mxu0 0.0
    %875 = vmatprep.subr.mxu0 0.0
    %876 = vmatpush1.msra.mxu0 0.0
    %877 = vmatprep.subr.mxu0 0.0
    %878 = vmatpush1.msra.mxu0 0.0
    %879 = vmatprep.subr.mxu0 0.0
    %880 = vmatpush1.msra.mxu0 0.0
    %881 = vmatprep.subr.mxu0 0.0
    %882 = vmatpush1.msra.mxu0 0.0
    %883 = vmatprep.subr.mxu0 0.0
    %884 = vmatpush1.msra.mxu0 0.0
    %885 = vmatprep.subr.mxu0 0.0
    %886 = vmatpush1.msra.mxu0 0.0
    %887 = vmatprep.subr.mxu0 0.0
    %888 = vmatpush1.msra.mxu0 0.0
    %889 = vmatprep.subr.mxu0 0.0
    %890 = vmatpush1.msra.mxu0 0.0
    %891 = vmatprep.subr.mxu0 0.0
    %892 = vmatpush1.msra.mxu0 0.0
    %893 = vmatprep.subr.mxu0 0.0
    %894 = vmatpush1.msra.mxu0 0.0
    %895 = vmatprep.subr.mxu0 0.0
    %896 = vmatpush1.msra.mxu0 0.0
    %897 = vmatprep.subr.mxu0 0.0
    %898 = vmatpush1.msra.mxu0 0.0
    %899 = vmatprep.subr.mxu0 0.0
    %900 = vmatpush1.msra.mxu0 0.0
    %901 = vmatprep.subr.mxu0 0.0
    %902 = vmatpush1.msra.mxu0 0.0
    %903 = vmatprep.subr.mxu0 0.0
    %904 = vmatpush1.msra.mxu0 0.0
    %905 = vmatprep.subr.mxu0 0.0
    %906 = vmatpush1.msra.mxu0 0.0
    %907 = vmatprep.subr.mxu0 0.0
    %908 = vmatpush1.msra.mxu0 0.0
    %909 = vmatprep.subr.mxu0 0.0
    %910 = vmatpush1.msra.mxu0 0.0
    %911 = vmatprep.subr.mxu0 0.0
    %912 = vmatpush1.msra.mxu0 0.0
    %913 = vmatprep.subr.mxu0 0.0
    %914 = vmatpush1.msra.mxu0 0.0
    %915 = vmatprep.mubr.f32.mxu0 0.0
    %916 = vmatmul.mubr.f32.gmra.mrb[0].mxu0 %v766
    %v917 = vpop.f32.mrb[0].mxu0
    %v918 = vadd.f32 %v760, %v917
    %v919 = vpop.f32.mrb[0].mxu0
    %920 = vmatprep.mubr.f32.mxu0 0.0
    %921 = vmatmul.mubr.f32.gmra.mrb[0].mxu0 %v766
    %v922 = vpop.f32.mrb[0].mxu0
    %v923 = vadd.f32 %v760, %v922
    %v924 = vpop.f32.mrb[0].mxu0
    %925 = vmatprep.mubr.f32.mxu0 0.0
    %926 = vmatmul.mubr.f32.gmra.mrb[0].mxu0 %v766
    %v927 = vpop.f32.mrb[0].mxu0
    %v928 = vadd.f32 %v760, %v927
    %v929 = vpop.f32.mrb[0].mxu0
    %930 = vdwg.mxu0
    %v931 = vadd.f32 %v739, %v835
    %v932 = vadd.f32 %v742, %v841
    %v933 = vadd.f32 %v745, %v847
    %v934 = vxor.u32 %v931, 2147483648
    %v935 = vxor.u32 %v932, 2147483648
    %v936 = vxor.u32 %v933, 2147483648
    %v937 = vmul.f32 %v934, 1.442695
    %v938 = vpow.pop %v937
    %v939 = vmul.f32 %v935, 1.442695
    %v940 = vpow.pop %v939
    %v941 = vmul.f32 %v936, 1.442695
    %v942 = vpow.pop %v941
    %v943 = vadd.f32 %v938, 1.0
    %v944 = vadd.f32 %v940, 1.0
    %v945 = vadd.f32 %v942, 1.0
    %v946 = vrcp.pop %v943
    %v947 = vmul.f32 1.0, %v946
    %v948 = vrcp.pop %v944
    %v949 = vmul.f32 1.0, %v948
    %v950 = vrcp.pop %v945
    %v951 = vmul.f32 1.0, %v950
    %v952 = vadd.f32 %v740, %v837
    %v953 = vadd.f32 %v743, %v843
    %v954 = vadd.f32 %v746, %v849
    %v955 = vxor.u32 %v952, 2147483648
    %v956 = vxor.u32 %v953, 2147483648
    %v957 = vxor.u32 %v954, 2147483648
    %v958 = vmul.f32 %v955, 1.442695
    %v959 = vpow.pop %v958
    %v960 = vmul.f32 %v956, 1.442695
    %v961 = vpow.pop %v960
    %v962 = vmul.f32 %v957, 1.442695
    %v963 = vpow.pop %v962
    %v964 = vadd.f32 %v959, 1.0
    %v965 = vadd.f32 %v961, 1.0
    %v966 = vadd.f32 %v963, 1.0
    %v967 = vrcp.pop %v964
    %v968 = vmul.f32 1.0, %v967
    %v969 = vrcp.pop %v965
    %v970 = vmul.f32 1.0, %v969
    %v971 = vrcp.pop %v966
    %v972 = vmul.f32 1.0, %v971
    %v973 = vmul.f32 %v947, %v918
    %v974 = vmul.f32 %v949, %v923
    %v975 = vmul.f32 %v951, %v928
    %v976 = vadd.f32 %v741, %v973
    %v977 = vadd.f32 %v744, %v974
    %v978 = vadd.f32 %v747, %v975
    %v979 = vtanh.pop %v976
    %v980 = vtanh.pop %v977
    %v981 = vtanh.pop %v978
    %v982 = vsub.f32 1.0, %v968
    %v983 = vsub.f32 1.0, %v970
    %v984 = vsub.f32 1.0, %v972
    %v985 = vmul.f32 %v982, %v979
    %v986 = vmul.f32 %v983, %v980
    %v987 = vmul.f32 %v984, %v981
    %v988 = vmul.f32 %v968, 0.0
    %v989 = vmul.f32 %v970, 0.0
    %v990 = vmul.f32 %v972, 0.0
    %v991 = vadd.f32 %v985, %v988
    %v992 = vadd.f32 %v986, %v989
    %v993 = vadd.f32 %v987, %v990
    %v995 = vsel %vm764, %v991, 0
    %v998 = vsel %vm764, %v992, 0
    %v1001 = vsel %vm764, %v993, 0
    %1003 = vmatprep.subr.mxu0 %v461
    %1004 = vmatpush1.msra.mxu0 %v460
    %1005 = vmatprep.subr.mxu0 0.0
    %1006 = vmatpush1.msra.mxu0 0.0
    %1007 = vmatprep.subr.mxu0 0.0
    %1008 = vmatpush1.msra.mxu0 0.0
    %1009 = vmatprep.subr.mxu0 0.0
    %1010 = vmatpush1.msra.mxu0 0.0
    %1011 = vmatprep.subr.mxu0 0.0
    %1012 = vmatpush1.msra.mxu0 0.0
    %1013 = vmatprep.subr.mxu0 0.0
    %1014 = vmatpush1.msra.mxu0 0.0
    %1015 = vmatprep.subr.mxu0 0.0
    %1016 = vmatpush1.msra.mxu0 0.0
    %1017 = vmatprep.subr.mxu0 0.0
    %1018 = vmatpush1.msra.mxu0 0.0
    %1019 = vmatprep.subr.mxu0 0.0
    %1020 = vmatpush1.msra.mxu0 0.0
    %1021 = vmatprep.subr.mxu0 0.0
    %1022 = vmatpush1.msra.mxu0 0.0
    %1023 = vmatprep.subr.mxu0 0.0
    %1024 = vmatpush1.msra.mxu0 0.0
    %1025 = vmatprep.subr.mxu0 0.0
    %1026 = vmatpush1.msra.mxu0 0.0
    %1027 = vmatprep.subr.mxu0 0.0
    %1028 = vmatpush1.msra.mxu0 0.0
    %1029 = vmatprep.subr.mxu0 0.0
    %1030 = vmatpush1.msra.mxu0 0.0
    %1031 = vmatprep.subr.mxu0 0.0
    %1032 = vmatpush1.msra.mxu0 0.0
    %1033 = vmatprep.subr.mxu0 0.0
    %1034 = vmatpush1.msra.mxu0 0.0
    %1035 = vmatprep.subr.mxu0 0.0
    %1036 = vmatpush1.msra.mxu0 0.0
    %1037 = vmatprep.subr.mxu0 0.0
    %1038 = vmatpush1.msra.mxu0 0.0
    %1039 = vmatprep.subr.mxu0 0.0
    %1040 = vmatpush1.msra.mxu0 0.0
    %1041 = vmatprep.subr.mxu0 0.0
    %1042 = vmatpush1.msra.mxu0 0.0
    %1043 = vmatprep.subr.mxu0 0.0
    %1044 = vmatpush1.msra.mxu0 0.0
    %1045 = vmatprep.subr.mxu0 0.0
    %1046 = vmatpush1.msra.mxu0 0.0
    %1047 = vmatprep.subr.mxu0 0.0
    %1048 = vmatpush1.msra.mxu0 0.0
    %1049 = vmatprep.subr.mxu0 0.0
    %1050 = vmatpush1.msra.mxu0 0.0
    %1051 = vmatprep.subr.mxu0 0.0
    %1052 = vmatpush1.msra.mxu0 0.0
    %1053 = vmatprep.subr.mxu0 0.0
    %1054 = vmatpush1.msra.mxu0 0.0
    %1055 = vmatprep.subr.mxu0 0.0
    %1056 = vmatpush1.msra.mxu0 0.0
    %1057 = vmatprep.subr.mxu0 0.0
    %1058 = vmatpush1.msra.mxu0 0.0
    %1059 = vmatprep.subr.mxu0 0.0
    %1060 = vmatpush1.msra.mxu0 0.0
    %1061 = vmatprep.subr.mxu0 0.0
    %1062 = vmatpush1.msra.mxu0 0.0
    %1063 = vmatprep.subr.mxu0 0.0
    %1064 = vmatpush1.msra.mxu0 0.0
    %1065 = vmatprep.subr.mxu0 0.0
    %1066 = vmatpush1.msra.mxu0 0.0
    %1067 = vmatprep.mubr.f32.mxu0 0.0
    %1068 = vmatmul.mubr.f32.gmra.mrb[0].mxu0 %v995
    %v1069 = vpop.f32.mrb[0].mxu0
    %v1070 = vadd.f32 %v752, %v1069
    %v1071 = vpop.f32.mrb[0].mxu0
    %v1072 = vadd.f32 %v756, %v1071
    %1073 = vmatprep.mubr.f32.mxu0 0.0
    %1074 = vmatmul.mubr.f32.gmra.mrb[0].mxu0 %v998
    %v1075 = vpop.f32.mrb[0].mxu0
    %v1076 = vadd.f32 %v752, %v1075
    %v1077 = vpop.f32.mrb[0].mxu0
    %v1078 = vadd.f32 %v756, %v1077
    %1079 = vmatprep.mubr.f32.mxu0 0.0
    %1080 = vmatmul.mubr.f32.gmra.mrb[0].mxu0 %v1001
    %v1081 = vpop.f32.mrb[0].mxu0
    %v1082 = vadd.f32 %v752, %v1081
    %v1083 = vpop.f32.mrb[0].mxu0
    %v1084 = vadd.f32 %v756, %v1083
    %1085 = vdwg.mxu0
    %1086 = vmatprep.subr.mxu0 0.0
    %1087 = vmatpush1.msra.mxu0 %v462
    %1088 = vmatprep.subr.mxu0 0.0
    %1089 = vmatpush1.msra.mxu0 0.0
    %1090 = vmatprep.subr.mxu0 0.0
    %1091 = vmatpush1.msra.mxu0 0.0
    %1092 = vmatprep.subr.mxu0 0.0
    %1093 = vmatpush1.msra.mxu0 0.0
    %1094 = vmatprep.subr.mxu0 0.0
    %1095 = vmatpush1.msra.mxu0 0.0
    %1096 = vmatprep.subr.mxu0 0.0
    %1097 = vmatpush1.msra.mxu0 0.0
    %1098 = vmatprep.subr.mxu0 0.0
    %1099 = vmatpush1.msra.mxu0 0.0
    %1100 = vmatprep.subr.mxu0 0.0
    %1101 = vmatpush1.msra.mxu0 0.0
    %1102 = vmatprep.subr.mxu0 0.0
    %1103 = vmatpush1.msra.mxu0 0.0
    %1104 = vmatprep.subr.mxu0 0.0
    %1105 = vmatpush1.msra.mxu0 0.0
    %1106 = vmatprep.subr.mxu0 0.0
    %1107 = vmatpush1.msra.mxu0 0.0
    %1108 = vmatprep.subr.mxu0 0.0
    %1109 = vmatpush1.msra.mxu0 0.0
    %1110 = vmatprep.subr.mxu0 0.0
    %1111 = vmatpush1.msra.mxu0 0.0
    %1112 = vmatprep.subr.mxu0 0.0
    %1113 = vmatpush1.msra.mxu0 0.0
    %1114 = vmatprep.subr.mxu0 0.0
    %1115 = vmatpush1.msra.mxu0 0.0
    %1116 = vmatprep.subr.mxu0 0.0
    %1117 = vmatpush1.msra.mxu0 0.0
    %1118 = vmatprep.subr.mxu0 0.0
    %1119 = vmatpush1.msra.mxu0 0.0
    %1120 = vmatprep.subr.mxu0 0.0
    %1121 = vmatpush1.msra.mxu0 0.0
    %1122 = vmatprep.subr.mxu0 0.0
    %1123 = vmatpush1.msra.mxu0 0.0
    %1124 = vmatprep.subr.mxu0 0.0
    %1125 = vmatpush1.msra.mxu0 0.0
    %1126 = vmatprep.subr.mxu0 0.0
    %1127 = vmatpush1.msra.mxu0 0.0
    %1128 = vmatprep.subr.mxu0 0.0
    %1129 = vmatpush1.msra.mxu0 0.0
    %1130 = vmatprep.subr.mxu0 0.0
    %1131 = vmatpush1.msra.mxu0 0.0
    %1132 = vmatprep.subr.mxu0 0.0
    %1133 = vmatpush1.msra.mxu0 0.0
    %1134 = vmatprep.subr.mxu0 0.0
    %1135 = vmatpush1.msra.mxu0 0.0
    %1136 = vmatprep.subr.mxu0 0.0
    %1137 = vmatpush1.msra.mxu0 0.0
    %1138 = vmatprep.subr.mxu0 0.0
    %1139 = vmatpush1.msra.mxu0 0.0
    %1140 = vmatprep.subr.mxu0 0.0
    %1141 = vmatpush1.msra.mxu0 0.0
    %1142 = vmatprep.subr.mxu0 0.0
    %1143 = vmatpush1.msra.mxu0 0.0
    %1144 = vmatprep.subr.mxu0 0.0
    %1145 = vmatpush1.msra.mxu0 0.0
    %1146 = vmatprep.subr.mxu0 0.0
    %1147 = vmatpush1.msra.mxu0 0.0
    %1148 = vmatprep.subr.mxu0 0.0
    %1149 = vmatpush1.msra.mxu0 0.0
    %1150 = vmatprep.mubr.f32.mxu0 0.0
    %1151 = vmatmul.mubr.f32.gmra.mrb[0].mxu0 %v995
    %v1152 = vpop.f32.mrb[0].mxu0
    %v1153 = vadd.f32 %v760, %v1152
    %v1154 = vpop.f32.mrb[0].mxu0
    %1155 = vmatprep.mubr.f32.mxu0 0.0
    %1156 = vmatmul.mubr.f32.gmra.mrb[0].mxu0 %v998
    %v1157 = vpop.f32.mrb[0].mxu0
    %v1158 = vadd.f32 %v760, %v1157
    %v1159 = vpop.f32.mrb[0].mxu0
    %1160 = vmatprep.mubr.f32.mxu0 0.0
    %1161 = vmatmul.mubr.f32.gmra.mrb[0].mxu0 %v1001
    %v1162 = vpop.f32.mrb[0].mxu0
    %v1163 = vadd.f32 %v760, %v1162
    %v1164 = vpop.f32.mrb[0].mxu0
    %1165 = vdwg.mxu0
    %v1166 = vadd.f32 %v594, %v1070
    %v1167 = vadd.f32 %v600, %v1076
    %v1168 = vadd.f32 %v606, %v1082
    %v1169 = vxor.u32 %v1166, 2147483648
    %v1170 = vxor.u32 %v1167, 2147483648
    %v1171 = vxor.u32 %v1168, 2147483648
    %v1172 = vmul.f32 %v1169, 1.442695
    %v1173 = vpow.pop %v1172
    %v1174 = vmul.f32 %v1170, 1.442695
    %v1175 = vpow.pop %v1174
    %v1176 = vmul.f32 %v1171, 1.442695
    %v1177 = vpow.pop %v1176
    %v1178 = vadd.f32 %v1173, 1.0
    %v1179 = vadd.f32 %v1175, 1.0
    %v1180 = vadd.f32 %v1177, 1.0
    %v1181 = vrcp.pop %v1178
    %v1182 = vmul.f32 1.0, %v1181
    %v1183 = vrcp.pop %v1179
    %v1184 = vmul.f32 1.0, %v1183
    %v1185 = vrcp.pop %v1180
    %v1186 = vmul.f32 1.0, %v1185
    %v1187 = vadd.f32 %v596, %v1072
    %v1188 = vadd.f32 %v602, %v1078
    %v1189 = vadd.f32 %v608, %v1084
    %v1190 = vxor.u32 %v1187, 2147483648
    %v1191 = vxor.u32 %v1188, 2147483648
    %v1192 = vxor.u32 %v1189, 2147483648
    %v1193 = vmul.f32 %v1190, 1.442695
    %v1194 = vpow.pop %v1193
    %v1195 = vmul.f32 %v1191, 1.442695
    %v1196 = vpow.pop %v1195
    %v1197 = vmul.f32 %v1192, 1.442695
    %v1198 = vpow.pop %v1197
    %v1199 = vadd.f32 %v1194, 1.0
    %v1200 = vadd.f32 %v1196, 1.0
    %v1201 = vadd.f32 %v1198, 1.0
    %v1202 = vrcp.pop %v1199
    %v1203 = vmul.f32 1.0, %v1202
    %v1204 = vrcp.pop %v1200
    %v1205 = vmul.f32 1.0, %v1204
    %v1206 = vrcp.pop %v1201
    %v1207 = vmul.f32 1.0, %v1206
    %v1208 = vmul.f32 %v1182, %v1153
    %v1209 = vmul.f32 %v1184, %v1158
    %v1210 = vmul.f32 %v1186, %v1163
    %v1211 = vadd.f32 %v710, %v1208
    %v1212 = vadd.f32 %v715, %v1209
    %v1213 = vadd.f32 %v720, %v1210
    %v1214 = vtanh.pop %v1211
    %v1215 = vtanh.pop %v1212
    %v1216 = vtanh.pop %v1213
    %v1217 = vsub.f32 1.0, %v1203
    %v1218 = vsub.f32 1.0, %v1205
    %v1219 = vsub.f32 1.0, %v1207
    %v1220 = vmul.f32 %v1217, %v1214
    %v1221 = vmul.f32 %v1218, %v1215
    %v1222 = vmul.f32 %v1219, %v1216
    %v1223 = vmul.f32 %v1203, %v991
    %v1224 = vmul.f32 %v1205, %v992
    %v1225 = vmul.f32 %v1207, %v993
    %v1226 = vadd.f32 %v1220, %v1223
    %v1227 = vadd.f32 %v1221, %v1224
    %v1228 = vadd.f32 %v1222, %v1225
    %v1229 = vsel %vm738, %v612, %v576
    %v1230 = vsel %vm738, %v614, %v578
    %v1231 = vsel %vm738, %v725, %v695
    %v1232 = vsel %vm738, %v618, %v582
    %v1233 = vsel %vm738, %v620, %v584
    %v1234 = vsel %vm738, %v730, %v700
    %v1235 = vsel %vm738, %v624, %v588
    %v1236 = vsel %vm738, %v626, %v590
    %v1237 = vsel %vm738, %v735, %v705
    %v1239 = vsel %vm764, %v1226, 0
    %v1242 = vsel %vm764, %v1227, 0
    %v1245 = vsel %vm764, %v1228, 0
    %1247 = vmatprep.subr.mxu0 %v461
    %1248 = vmatpush1.msra.mxu0 %v460
    %1249 = vmatprep.subr.mxu0 0.0
    %1250 = vmatpush1.msra.mxu0 0.0
    %1251 = vmatprep.subr.mxu0 0.0
    %1252 = vmatpush1.msra.mxu0 0.0
    %1253 = vmatprep.subr.mxu0 0.0
    %1254 = vmatpush1.msra.mxu0 0.0
    %1255 = vmatprep.subr.mxu0 0.0
    %1256 = vmatpush1.msra.mxu0 0.0
    %1257 = vmatprep.subr.mxu0 0.0
    %1258 = vmatpush1.msra.mxu0 0.0
    %1259 = vmatprep.subr.mxu0 0.0
    %1260 = vmatpush1.msra.mxu0 0.0
    %1261 = vmatprep.subr.mxu0 0.0
    %1262 = vmatpush1.msra.mxu0 0.0
    %1263 = vmatprep.subr.mxu0 0.0
    %1264 = vmatpush1.msra.mxu0 0.0
    %1265 = vmatprep.subr.mxu0 0.0
    %1266 = vmatpush1.msra.mxu0 0.0
    %1267 = vmatprep.subr.mxu0 0.0
    %1268 = vmatpush1.msra.mxu0 0.0
    %1269 = vmatprep.subr.mxu0 0.0
    %1270 = vmatpush1.msra.mxu0 0.0
    %1271 = vmatprep.subr.mxu0 0.0
    %1272 = vmatpush1.msra.mxu0 0.0
    %1273 = vmatprep.subr.mxu0 0.0
    %1274 = vmatpush1.msra.mxu0 0.0
    %1275 = vmatprep.subr.mxu0 0.0
    %1276 = vmatpush1.msra.mxu0 0.0
    %1277 = vmatprep.subr.mxu0 0.0
    %1278 = vmatpush1.msra.mxu0 0.0
    %1279 = vmatprep.subr.mxu0 0.0
    %1280 = vmatpush1.msra.mxu0 0.0
    %1281 = vmatprep.subr.mxu0 0.0
    %1282 = vmatpush1.msra.mxu0 0.0
    %1283 = vmatprep.subr.mxu0 0.0
    %1284 = vmatpush1.msra.mxu0 0.0
    %1285 = vmatprep.subr.mxu0 0.0
    %1286 = vmatpush1.msra.mxu0 0.0
    %1287 = vmatprep.subr.mxu0 0.0
    %1288 = vmatpush1.msra.mxu0 0.0
    %1289 = vmatprep.subr.mxu0 0.0
    %1290 = vmatpush1.msra.mxu0 0.0
    %1291 = vmatprep.subr.mxu0 0.0
    %1292 = vmatpush1.msra.mxu0 0.0
    %1293 = vmatprep.subr.mxu0 0.0
    %1294 = vmatpush1.msra.mxu0 0.0
    %1295 = vmatprep.subr.mxu0 0.0
    %1296 = vmatpush1.msra.mxu0 0.0
    %1297 = vmatprep.subr.mxu0 0.0
    %1298 = vmatpush1.msra.mxu0 0.0
    %1299 = vmatprep.subr.mxu0 0.0
    %1300 = vmatpush1.msra.mxu0 0.0
    %1301 = vmatprep.subr.mxu0 0.0
    %1302 = vmatpush1.msra.mxu0 0.0
    %1303 = vmatprep.subr.mxu0 0.0
    %1304 = vmatpush1.msra.mxu0 0.0
    %1305 = vmatprep.subr.mxu0 0.0
    %1306 = vmatpush1.msra.mxu0 0.0
    %1307 = vmatprep.subr.mxu0 0.0
    %1308 = vmatpush1.msra.mxu0 0.0
    %1309 = vmatprep.subr.mxu0 0.0
    %1310 = vmatpush1.msra.mxu0 0.0
    %1311 = vmatprep.mubr.f32.mxu0 0.0
    %1312 = vmatmul.mubr.f32.gmra.mrb[0].mxu0 %v1239
    %v1313 = vpop.f32.mrb[0].mxu0
    %v1314 = vadd.f32 %v752, %v1313
    %v1315 = vpop.f32.mrb[0].mxu0
    %v1316 = vadd.f32 %v756, %v1315
    %1317 = vmatprep.mubr.f32.mxu0 0.0
    %1318 = vmatmul.mubr.f32.gmra.mrb[0].mxu0 %v1242
    %v1319 = vpop.f32.mrb[0].mxu0
    %v1320 = vadd.f32 %v752, %v1319
    %v1321 = vpop.f32.mrb[0].mxu0
    %v1322 = vadd.f32 %v756, %v1321
    %1323 = vmatprep.mubr.f32.mxu0 0.0
    %1324 = vmatmul.mubr.f32.gmra.mrb[0].mxu0 %v1245
    %v1325 = vpop.f32.mrb[0].mxu0
    %v1326 = vadd.f32 %v752, %v1325
    %v1327 = vpop.f32.mrb[0].mxu0
    %v1328 = vadd.f32 %v756, %v1327
    %1329 = vdwg.mxu0
    %1330 = vmatprep.subr.mxu0 0.0
    %1331 = vmatpush1.msra.mxu0 %v462
    %1332 = vmatprep.subr.mxu0 0.0
    %1333 = vmatpush1.msra.mxu0 0.0
    %1334 = vmatprep.subr.mxu0 0.0
    %1335 = vmatpush1.msra.mxu0 0.0
    %1336 = vmatprep.subr.mxu0 0.0
    %1337 = vmatpush1.msra.mxu0 0.0
    %1338 = vmatprep.subr.mxu0 0.0
    %1339 = vmatpush1.msra.mxu0 0.0
    %1340 = vmatprep.subr.mxu0 0.0
    %1341 = vmatpush1.msra.mxu0 0.0
    %1342 = vmatprep.subr.mxu0 0.0
    %1343 = vmatpush1.msra.mxu0 0.0
    %1344 = vmatprep.subr.mxu0 0.0
    %1345 = vmatpush1.msra.mxu0 0.0
    %1346 = vmatprep.subr.mxu0 0.0
    %1347 = vmatpush1.msra.mxu0 0.0
    %1348 = vmatprep.subr.mxu0 0.0
    %1349 = vmatpush1.msra.mxu0 0.0
    %1350 = vmatprep.subr.mxu0 0.0
    %1351 = vmatpush1.msra.mxu0 0.0
    %1352 = vmatprep.subr.mxu0 0.0
    %1353 = vmatpush1.msra.mxu0 0.0
    %1354 = vmatprep.subr.mxu0 0.0
    %1355 = vmatpush1.msra.mxu0 0.0
    %1356 = vmatprep.subr.mxu0 0.0
    %1357 = vmatpush1.msra.mxu0 0.0
    %1358 = vmatprep.subr.mxu0 0.0
    %1359 = vmatpush1.msra.mxu0 0.0
    %1360 = vmatprep.subr.mxu0 0.0
    %1361 = vmatpush1.msra.mxu0 0.0
    %1362 = vmatprep.subr.mxu0 0.0
    %1363 = vmatpush1.msra.mxu0 0.0
    %1364 = vmatprep.subr.mxu0 0.0
    %1365 = vmatpush1.msra.mxu0 0.0
    %1366 = vmatprep.subr.mxu0 0.0
    %1367 = vmatpush1.msra.mxu0 0.0
    %1368 = vmatprep.subr.mxu0 0.0
    %1369 = vmatpush1.msra.mxu0 0.0
    %1370 = vmatprep.subr.mxu0 0.0
    %1371 = vmatpush1.msra.mxu0 0.0
    %1372 = vmatprep.subr.mxu0 0.0
    %1373 = vmatpush1.msra.mxu0 0.0
    %1374 = vmatprep.subr.mxu0 0.0
    %1375 = vmatpush1.msra.mxu0 0.0
    %1376 = vmatprep.subr.mxu0 0.0
    %1377 = vmatpush1.msra.mxu0 0.0
    %1378 = vmatprep.subr.mxu0 0.0
    %1379 = vmatpush1.msra.mxu0 0.0
    %1380 = vmatprep.subr.mxu0 0.0
    %1381 = vmatpush1.msra.mxu0 0.0
    %1382 = vmatprep.subr.mxu0 0.0
    %1383 = vmatpush1.msra.mxu0 0.0
    %1384 = vmatprep.subr.mxu0 0.0
    %1385 = vmatpush1.msra.mxu0 0.0
    %1386 = vmatprep.subr.mxu0 0.0
    %1387 = vmatpush1.msra.mxu0 0.0
    %1388 = vmatprep.subr.mxu0 0.0
    %1389 = vmatpush1.msra.mxu0 0.0
    %1390 = vmatprep.subr.mxu0 0.0
    %1391 = vmatpush1.msra.mxu0 0.0
    %1392 = vmatprep.subr.mxu0 0.0
    %1393 = vmatpush1.msra.mxu0 0.0
    %1394 = vmatprep.mubr.f32.mxu0 0.0
    %1395 = vmatmul.mubr.f32.gmra.mrb[0].mxu0 %v1239
    %v1396 = vpop.f32.mrb[0].mxu0
    %v1397 = vadd.f32 %v760, %v1396
    %v1398 = vpop.f32.mrb[0].mxu0
    %1399 = vmatprep.mubr.f32.mxu0 0.0
    %1400 = vmatmul.mubr.f32.gmra.mrb[0].mxu0 %v1242
    %v1401 = vpop.f32.mrb[0].mxu0
    %v1402 = vadd.f32 %v760, %v1401
    %v1403 = vpop.f32.mrb[0].mxu0
    %1404 = vmatprep.mubr.f32.mxu0 0.0
    %1405 = vmatmul.mubr.f32.gmra.mrb[0].mxu0 %v1245
    %v1406 = vpop.f32.mrb[0].mxu0
    %v1407 = vadd.f32 %v760, %v1406
    %v1408 = vpop.f32.mrb[0].mxu0
    %1409 = vdwg.mxu0
    %v1410 = vadd.f32 %v1229, %v1314
    %v1411 = vadd.f32 %v1232, %v1320
    %v1412 = vadd.f32 %v1235, %v1326
    %v1413 = vxor.u32 %v1410, 2147483648
    %v1414 = vxor.u32 %v1411, 2147483648
    %v1415 = vxor.u32 %v1412, 2147483648
    %v1416 = vmul.f32 %v1413, 1.442695
    %v1417 = vpow.pop %v1416
    %v1418 = vmul.f32 %v1414, 1.442695
    %v1419 = vpow.pop %v1418
    %v1420 = vmul.f32 %v1415, 1.442695
    %v1421 = vpow.pop %v1420
    %v1422 = vadd.f32 %v1417, 1.0
    %v1423 = vadd.f32 %v1419, 1.0
    %v1424 = vadd.f32 %v1421, 1.0
    %v1425 = vrcp.pop %v1422
    %v1426 = vmul.f32 1.0, %v1425
    %v1427 = vrcp.pop %v1423
    %v1428 = vmul.f32 1.0, %v1427
    %v1429 = vrcp.pop %v1424
    %v1430 = vmul.f32 1.0, %v1429
    %v1431 = vadd.f32 %v1230, %v1316
    %v1432 = vadd.f32 %v1233, %v1322
    %v1433 = vadd.f32 %v1236, %v1328
    %v1434 = vxor.u32 %v1431, 2147483648
    %v1435 = vxor.u32 %v1432, 2147483648
    %v1436 = vxor.u32 %v1433, 2147483648
    %v1437 = vmul.f32 %v1434, 1.442695
    %v1438 = vpow.pop %v1437
    %v1439 = vmul.f32 %v1435, 1.442695
    %v1440 = vpow.pop %v1439
    %v1441 = vmul.f32 %v1436, 1.442695
    %v1442 = vpow.pop %v1441
    %v1443 = vadd.f32 %v1438, 1.0
    %v1444 = vadd.f32 %v1440, 1.0
    %v1445 = vadd.f32 %v1442, 1.0
    %v1446 = vrcp.pop %v1443
    %v1447 = vmul.f32 1.0, %v1446
    %v1448 = vrcp.pop %v1444
    %v1449 = vmul.f32 1.0, %v1448
    %v1450 = vrcp.pop %v1445
    %v1451 = vmul.f32 1.0, %v1450
    %v1452 = vmul.f32 %v1426, %v1397
    %v1453 = vmul.f32 %v1428, %v1402
    %v1454 = vmul.f32 %v1430, %v1407
    %v1455 = vadd.f32 %v1231, %v1452
    %v1456 = vadd.f32 %v1234, %v1453
    %v1457 = vadd.f32 %v1237, %v1454
    %v1458 = vtanh.pop %v1455
    %v1459 = vtanh.pop %v1456
    %v1460 = vtanh.pop %v1457
    %v1461 = vsub.f32 1.0, %v1447
    %v1462 = vsub.f32 1.0, %v1449
    %v1463 = vsub.f32 1.0, %v1451
    %v1464 = vmul.f32 %v1461, %v1458
    %v1465 = vmul.f32 %v1462, %v1459
    %v1466 = vmul.f32 %v1463, %v1460
    %v1467 = vmul.f32 %v1447, %v1226
    %v1468 = vmul.f32 %v1449, %v1227
    %v1469 = vmul.f32 %v1451, %v1228
    %v1470 = vadd.f32 %v1464, %v1467
    %v1471 = vadd.f32 %v1465, %v1468
    %v1472 = vadd.f32 %v1466, %v1469
    %v1473 = vsel %vm738, %v991, %v1470
    %v1474 = vsel %vm738, %v992, %v1471
    %v1475 = vsel %vm738, %v993, %v1472
    %v1476 = vsel %vm738, %v1470, %v991
    %v1477 = vsel %vm738, %v1471, %v992
    %v1478 = vsel %vm738, %v1472, %v993
    %v1479 = vld [vmem:[#allocation2 + $0x120] sm:$0xff]
    %v1480 = vld [vmem:[#allocation2 + $0x138] ss:$0 sm:$0xff]
    %v1481 = vld [vmem:[#allocation2 + $0x150] ss:$0 sm:$0xff]
    %v1483 = vsel %vm764, %v1473, 0
    %v1486 = vsel %vm764, %v1474, 0
    %v1489 = vsel %vm764, %v1475, 0
    %v1492 = vsel %vm764, %v1476, 0
    %v1495 = vsel %vm764, %v1477, 0
    %v1498 = vsel %vm764, %v1478, 0
    %1500 = vmatprep.subr.mxu0 0.0
    %1501 = vmatpush1.msra.mxu0 %v1479
    %1502 = vmatprep.subr.mxu0 0.0
    %1503 = vmatpush1.msra.mxu0 0.0
    %1504 = vmatprep.subr.mxu0 0.0
    %1505 = vmatpush1.msra.mxu0 0.0
    %1506 = vmatprep.subr.mxu0 0.0
    %1507 = vmatpush1.msra.mxu0 0.0
    %1508 = vmatprep.subr.mxu0 0.0
    %1509 = vmatpush1.msra.mxu0 0.0
    %1510 = vmatprep.subr.mxu0 0.0
    %1511 = vmatpush1.msra.mxu0 0.0
    %1512 = vmatprep.subr.mxu0 0.0
    %1513 = vmatpush1.msra.mxu0 0.0
    %1514 = vmatprep.subr.mxu0 0.0
    %1515 = vmatpush1.msra.mxu0 0.0
    %1516 = vmatprep.subr.mxu0 0.0
    %1517 = vmatpush1.msra.mxu0 0.0
    %1518 = vmatprep.subr.mxu0 0.0
    %1519 = vmatpush1.msra.mxu0 0.0
    %1520 = vmatprep.subr.mxu0 0.0
    %1521 = vmatpush1.msra.mxu0 0.0
    %1522 = vmatprep.subr.mxu0 0.0
    %1523 = vmatpush1.msra.mxu0 0.0
    %1524 = vmatprep.subr.mxu0 0.0
    %1525 = vmatpush1.msra.mxu0 0.0
    %1526 = vmatprep.subr.mxu0 0.0
    %1527 = vmatpush1.msra.mxu0 0.0
    %1528 = vmatprep.subr.mxu0 0.0
    %1529 = vmatpush1.msra.mxu0 0.0
    %1530 = vmatprep.subr.mxu0 0.0
    %1531 = vmatpush1.msra.mxu0 0.0
    %1532 = vmatprep.subr.mxu0 0.0
    %1533 = vmatpush1.msra.mxu0 0.0
    %1534 = vmatprep.subr.mxu0 0.0
    %1535 = vmatpush1.msra.mxu0 0.0
    %1536 = vmatprep.subr.mxu0 0.0
    %1537 = vmatpush1.msra.mxu0 0.0
    %1538 = vmatprep.subr.mxu0 0.0
    %1539 = vmatpush1.msra.mxu0 0.0
    %1540 = vmatprep.subr.mxu0 0.0
    %1541 = vmatpush1.msra.mxu0 0.0
    %1542 = vmatprep.subr.mxu0 0.0
    %1543 = vmatpush1.msra.mxu0 0.0
    %1544 = vmatprep.subr.mxu0 0.0
    %1545 = vmatpush1.msra.mxu0 0.0
    %1546 = vmatprep.subr.mxu0 0.0
    %1547 = vmatpush1.msra.mxu0 0.0
    %1548 = vmatprep.subr.mxu0 0.0
    %1549 = vmatpush1.msra.mxu0 0.0
    %1550 = vmatprep.subr.mxu0 0.0
    %1551 = vmatpush1.msra.mxu0 0.0
    %1552 = vmatprep.subr.mxu0 0.0
    %1553 = vmatpush1.msra.mxu0 0.0
    %1554 = vmatprep.subr.mxu0 0.0
    %1555 = vmatpush1.msra.mxu0 0.0
    %1556 = vmatprep.subr.mxu0 0.0
    %1557 = vmatpush1.msra.mxu0 0.0
    %1558 = vmatprep.subr.mxu0 0.0
    %1559 = vmatpush1.msra.mxu0 0.0
    %1560 = vmatprep.subr.mxu0 0.0
    %1561 = vmatpush1.msra.mxu0 0.0
    %1562 = vmatprep.subr.mxu0 0.0
    %1563 = vmatpush1.msra.mxu0 0.0
    %1564 = vmatprep.mubr.f32.mxu0 0.0
    %1565 = vmatmul.mubr.f32.gmra.mrb[0].mxu0 %v1483
    %v1566 = vpop.f32.mrb[0].mxu0
    %v1567 = vadd.f32 %v1480, %v1566
    %v1568 = vpop.f32.mrb[0].mxu0
    %1569 = vmatprep.mubr.f32.mxu0 0.0
    %1570 = vmatmul.mubr.f32.gmra.mrb[0].mxu0 %v1486
    %v1571 = vpop.f32.mrb[0].mxu0
    %v1572 = vadd.f32 %v1480, %v1571
    %v1573 = vpop.f32.mrb[0].mxu0
    %1574 = vmatprep.mubr.f32.mxu0 0.0
    %1575 = vmatmul.mubr.f32.gmra.mrb[0].mxu0 %v1489
    %v1576 = vpop.f32.mrb[0].mxu0
    %v1577 = vadd.f32 %v1480, %v1576
    %v1578 = vpop.f32.mrb[0].mxu0
    %1579 = vmatprep.mubr.f32.mxu0 0.0
    %1580 = vmatmul.mubr.f32.gmra.mrb[0].mxu0 %v1239
    %v1581 = vpop.f32.mrb[0].mxu0
    %v1582 = vadd.f32 %v1480, %v1581
    %v1583 = vpop.f32.mrb[0].mxu0
    %1584 = vmatprep.mubr.f32.mxu0 0.0
    %1585 = vmatmul.mubr.f32.gmra.mrb[0].mxu0 %v1242
    %v1586 = vpop.f32.mrb[0].mxu0
    %v1587 = vadd.f32 %v1480, %v1586
    %v1588 = vpop.f32.mrb[0].mxu0
    %1589 = vmatprep.mubr.f32.mxu0 0.0
    %1590 = vmatmul.mubr.f32.gmra.mrb[0].mxu0 %v1245
    %v1591 = vpop.f32.mrb[0].mxu0
    %v1592 = vadd.f32 %v1480, %v1591
    %v1593 = vpop.f32.mrb[0].mxu0
    %1594 = vmatprep.mubr.f32.mxu0 0.0
    %1595 = vmatmul.mubr.f32.gmra.mrb[0].mxu0 %v1492
    %v1596 = vpop.f32.mrb[0].mxu0
    %v1597 = vadd.f32 %v1480, %v1596
    %v1598 = vpop.f32.mrb[0].mxu0
    %1599 = vmatprep.mubr.f32.mxu0 0.0
    %1600 = vmatmul.mubr.f32.gmra.mrb[0].mxu0 %v1495
    %v1601 = vpop.f32.mrb[0].mxu0
    %v1602 = vadd.f32 %v1480, %v1601
    %v1603 = vpop.f32.mrb[0].mxu0
    %1604 = vmatprep.mubr.f32.mxu0 0.0
    %1605 = vmatmul.mubr.f32.gmra.mrb[0].mxu0 %v1498
    %v1606 = vpop.f32.mrb[0].mxu0
    %v1607 = vadd.f32 %v1480, %v1606
    %v1608 = vpop.f32.mrb[0].mxu0
    %1609 = vdwg.mxu0
    %v1610 = vtanh.pop %v1567
    %v1611 = vtanh.pop %v1572
    %v1612 = vtanh.pop %v1577
    %v1613 = vtanh.pop %v1582
    %v1614 = vtanh.pop %v1587
    %v1615 = vtanh.pop %v1592
    %v1616 = vtanh.pop %v1597
    %v1617 = vtanh.pop %v1602
    %v1618 = vtanh.pop %v1607
    %v1619 = vmul.f32 %v1610, %v1481
    %v1620 = vmul.f32 %v1611, %v1481
    %v1621 = vmul.f32 %v1612, %v1481
    %v1622 = vmul.f32 %v1613, %v1481
    %v1623 = vmul.f32 %v1614, %v1481
    %v1624 = vmul.f32 %v1615, %v1481
    %v1625 = vmul.f32 %v1616, %v1481
    %v1626 = vmul.f32 %v1617, %v1481
    %v1627 = vmul.f32 %v1618, %v1481
    %v1628 = vsel %vm764, %v1619, 0.0
    %1629 = vadd.xlane.f32.xlu0 %v1628
    %v1630 = vpop.xlane.xlu0 %1629
    %v1631 = vsel %vm764, %v1620, 0.0
    %1632 = vadd.xlane.f32.xlu0 %v1631
    %v1633 = vpop.xlane.xlu0 %1632
    %v1634 = vsel %vm764, %v1621, 0.0
    %1635 = vadd.xlane.f32.xlu0 %v1634
    %v1636 = vpop.xlane.xlu0 %1635
    %v1637 = vsel %vm764, %v1622, 0.0
    %1638 = vadd.xlane.f32.xlu0 %v1637
    %v1639 = vpop.xlane.xlu0 %1638
    %v1640 = vsel %vm764, %v1623, 0.0
    %1641 = vadd.xlane.f32.xlu0 %v1640
    %v1642 = vpop.xlane.xlu0 %1641
    %v1643 = vsel %vm764, %v1624, 0.0
    %1644 = vadd.xlane.f32.xlu0 %v1643
    %v1645 = vpop.xlane.xlu0 %1644
    %v1646 = vsel %vm764, %v1625, 0.0
    %1647 = vadd.xlane.f32.xlu0 %v1646
    %v1648 = vpop.xlane.xlu0 %1647
    %v1649 = vsel %vm764, %v1626, 0.0
    %1650 = vadd.xlane.f32.xlu0 %v1649
    %v1651 = vpop.xlane.xlu0 %1650
    %v1652 = vsel %vm764, %v1627, 0.0
    %1653 = vadd.xlane.f32.xlu0 %v1652
    %v1654 = vpop.xlane.xlu0 %1653
    %v1655 = vmax.f32 %v1630, %v1639
    %v1656 = vmax.f32 %v1633, %v1642
    %v1657 = vmax.f32 %v1636, %v1645
    %v1658 = vmax.f32 %v1655, %v1648
    %v1659 = vmax.f32 %v1656, %v1651
    %v1660 = vmax.f32 %v1657, %v1654
    %v1661 = vsub.f32 %v1630, %v1658
    %v1662 = vsub.f32 %v1633, %v1659
    %v1663 = vsub.f32 %v1636, %v1660
    %v1664 = vmul.f32 %v1661, 1.442695
    %v1665 = vpow.pop %v1664
    %v1666 = vmul.f32 %v1662, 1.442695
    %v1667 = vpow.pop %v1666
    %v1668 = vmul.f32 %v1663, 1.442695
    %v1669 = vpow.pop %v1668
    %v1670 = vsub.f32 %v1639, %v1658
    %v1671 = vsub.f32 %v1642, %v1659
    %v1672 = vsub.f32 %v1645, %v1660
    %v1673 = vmul.f32 %v1670, 1.442695
    %v1674 = vpow.pop %v1673
    %v1675 = vmul.f32 %v1671, 1.442695
    %v1676 = vpow.pop %v1675
    %v1677 = vmul.f32 %v1672, 1.442695
    %v1678 = vpow.pop %v1677
    %v1679 = vsub.f32 %v1648, %v1658
    %v1680 = vsub.f32 %v1651, %v1659
    %v1681 = vsub.f32 %v1654, %v1660
    %v1682 = vmul.f32 %v1679, 1.442695
    %v1683 = vpow.pop %v1682
    %v1684 = vmul.f32 %v1680, 1.442695
    %v1685 = vpow.pop %v1684
    %v1686 = vmul.f32 %v1681, 1.442695
    %v1687 = vpow.pop %v1686
    %v1688 = vadd.f32 %v1665, %v1674
    %v1689 = vadd.f32 %v1667, %v1676
    %v1690 = vadd.f32 %v1669, %v1678
    %v1691 = vadd.f32 %v1688, %v1683
    %v1692 = vadd.f32 %v1689, %v1685
    %v1693 = vadd.f32 %v1690, %v1687
    %v1694 = vrcp.pop %v1691
    %v1695 = vmul.f32 1.0, %v1694
    %v1696 = vrcp.pop %v1692
    %v1697 = vmul.f32 1.0, %v1696
    %v1698 = vrcp.pop %v1693
    %v1699 = vmul.f32 1.0, %v1698
    %v1700 = vmul.f32 %v1665, %v1695
    %v1701 = vmul.f32 %v1667, %v1697
    %v1702 = vmul.f32 %v1669, %v1699
    %v1703 = vmul.f32 %v1700, %v1473
    %v1704 = vmul.f32 %v1701, %v1474
    %v1705 = vmul.f32 %v1702, %v1475
    %v1706 = vmul.f32 %v1674, %v1695
    %v1707 = vmul.f32 %v1676, %v1697
    %v1708 = vmul.f32 %v1678, %v1699
    %v1709 = vmul.f32 %v1706, %v1226
    %v1710 = vmul.f32 %v1707, %v1227
    %v1711 = vmul.f32 %v1708, %v1228
    %v1712 = vadd.f32 %v1703, %v1709
    %v1713 = vadd.f32 %v1704, %v1710
    %v1714 = vadd.f32 %v1705, %v1711
    %v1715 = vmul.f32 %v1683, %v1695
    %v1716 = vmul.f32 %v1685, %v1697
    %v1717 = vmul.f32 %v1687, %v1699
    %v1718 = vmul.f32 %v1715, %v1476
    %v1719 = vmul.f32 %v1716, %v1477
    %v1720 = vmul.f32 %v1717, %v1478
    %v1721 = vadd.f32 %v1712, %v1718
    %v1722 = vadd.f32 %v1713, %v1719
    %v1723 = vadd.f32 %v1714, %v1720
    %v1724 = vld [vmem:[#allocation2 + $0x168] sm:$0xff]
    %v1725 = vld [vmem:[#allocation2 + $0x170] sm:$0xff]
    %v1726 = vld [vmem:[#allocation2 + $0x178] sm:$0xff]
    %s1727 = scalar_lea.vmem [#allocation2], 384
    %v1728 = vld [vmem:[%s1727] ss:$8 sm:$0x7]
    %v1729 = vld [vmem:[#allocation2 + $0x198] sm:$0xff]
    %v1730 = vld [vmem:[#allocation2 + $0x1a0] sm:$0xff]
    %v1731 = vld [vmem:[#allocation2 + $0x1a8] sm:$0xff]
    %v1732 = vld [vmem:[#allocation2 + $0x1b0] sm:$0xff]
    %v1733 = vld [vmem:[#allocation2 + $0x1b8] sm:$0xff]
    %v1734 = vld [vmem:[#allocation2 + $0x1c0] sm:$0xff]
    %s1735 = scalar_lea.vmem [#allocation2], 456
    %v1736 = vld [vmem:[%s1735] ss:$8 sm:$0x7]
    %v1738 = vlaneseq
    %v1739 = vshrl.u32 %v1738, 7
    %v1740 = vsub.s32 0, %v1739
    %v1741 = vrot.slane %v1728, %v1740
    %v1742 = vlaneseq
    %v1743 = vshrl.u32 %v1742, 7
    %v1744 = vsub.s32 1, %v1743
    %v1745 = vrot.slane %v1728, %v1744
    %v1746 = vlaneseq
    %v1747 = vshrl.u32 %v1746, 7
    %v1748 = vsub.s32 2, %v1747
    %v1749 = vrot.slane %v1728, %v1748
    %v1754 = vsel %vm764, %v1721, 0
    %v1757 = vsel %vm764, %v1722, 0
    %v1760 = vsel %vm764, %v1723, 0
    %1762 = vmatprep.subr.mxu0 %v1725
    %1763 = vmatpush1.msra.mxu0 %v1724
    %1764 = vmatprep.subr.mxu0 0.0
    %1765 = vmatpush1.msra.mxu0 0.0
    %1766 = vmatprep.subr.mxu0 0.0
    %1767 = vmatpush1.msra.mxu0 0.0
    %1768 = vmatprep.subr.mxu0 0.0
    %1769 = vmatpush1.msra.mxu0 0.0
    %1770 = vmatprep.subr.mxu0 0.0
    %1771 = vmatpush1.msra.mxu0 0.0
    %1772 = vmatprep.subr.mxu0 0.0
    %1773 = vmatpush1.msra.mxu0 0.0
    %1774 = vmatprep.subr.mxu0 0.0
    %1775 = vmatpush1.msra.mxu0 0.0
    %1776 = vmatprep.subr.mxu0 0.0
    %1777 = vmatpush1.msra.mxu0 0.0
    %1778 = vmatprep.subr.mxu0 0.0
    %1779 = vmatpush1.msra.mxu0 0.0
    %1780 = vmatprep.subr.mxu0 0.0
    %1781 = vmatpush1.msra.mxu0 0.0
    %1782 = vmatprep.subr.mxu0 0.0
    %1783 = vmatpush1.msra.mxu0 0.0
    %1784 = vmatprep.subr.mxu0 0.0
    %1785 = vmatpush1.msra.mxu0 0.0
    %1786 = vmatprep.subr.mxu0 0.0
    %1787 = vmatpush1.msra.mxu0 0.0
    %1788 = vmatprep.subr.mxu0 0.0
    %1789 = vmatpush1.msra.mxu0 0.0
    %1790 = vmatprep.subr.mxu0 0.0
    %1791 = vmatpush1.msra.mxu0 0.0
    %1792 = vmatprep.subr.mxu0 0.0
    %1793 = vmatpush1.msra.mxu0 0.0
    %1794 = vmatprep.subr.mxu0 0.0
    %1795 = vmatpush1.msra.mxu0 0.0
    %1796 = vmatprep.subr.mxu0 0.0
    %1797 = vmatpush1.msra.mxu0 0.0
    %1798 = vmatprep.subr.mxu0 0.0
    %1799 = vmatpush1.msra.mxu0 0.0
    %1800 = vmatprep.subr.mxu0 0.0
    %1801 = vmatpush1.msra.mxu0 0.0
    %1802 = vmatprep.subr.mxu0 0.0
    %1803 = vmatpush1.msra.mxu0 0.0
    %1804 = vmatprep.subr.mxu0 0.0
    %1805 = vmatpush1.msra.mxu0 0.0
    %1806 = vmatprep.subr.mxu0 0.0
    %1807 = vmatpush1.msra.mxu0 0.0
    %1808 = vmatprep.subr.mxu0 0.0
    %1809 = vmatpush1.msra.mxu0 0.0
    %1810 = vmatprep.subr.mxu0 0.0
    %1811 = vmatpush1.msra.mxu0 0.0
    %1812 = vmatprep.subr.mxu0 0.0
    %1813 = vmatpush1.msra.mxu0 0.0
    %1814 = vmatprep.subr.mxu0 0.0
    %1815 = vmatpush1.msra.mxu0 0.0
    %1816 = vmatprep.subr.mxu0 0.0
    %1817 = vmatpush1.msra.mxu0 0.0
    %1818 = vmatprep.subr.mxu0 0.0
    %1819 = vmatpush1.msra.mxu0 0.0
    %1820 = vmatprep.subr.mxu0 0.0
    %1821 = vmatpush1.msra.mxu0 0.0
    %1822 = vmatprep.subr.mxu0 0.0
    %1823 = vmatpush1.msra.mxu0 0.0
    %1824 = vmatprep.subr.mxu0 0.0
    %1825 = vmatpush1.msra.mxu0 0.0
    %1826 = vmatprep.mubr.f32.mxu0 0.0
    %1827 = vmatmul.mubr.f32.gmra.mrb[0].mxu0 %v1754
    %v1828 = vpop.f32.mrb[0].mxu0
    %v1829 = vadd.f32 %v1741, %v1828
    %v1830 = vpop.f32.mrb[0].mxu0
    %v1831 = vadd.f32 %v1745, %v1830
    %1832 = vmatprep.mubr.f32.mxu0 0.0
    %1833 = vmatmul.mubr.f32.gmra.mrb[0].mxu0 %v1757
    %v1834 = vpop.f32.mrb[0].mxu0
    %v1835 = vadd.f32 %v1741, %v1834
    %v1836 = vpop.f32.mrb[0].mxu0
    %v1837 = vadd.f32 %v1745, %v1836
    %1838 = vmatprep.mubr.f32.mxu0 0.0
    %1839 = vmatmul.mubr.f32.gmra.mrb[0].mxu0 %v1760
    %v1840 = vpop.f32.mrb[0].mxu0
    %v1841 = vadd.f32 %v1741, %v1840
    %v1842 = vpop.f32.mrb[0].mxu0
    %v1843 = vadd.f32 %v1745, %v1842
    %1844 = vdwg.mxu0
    %1845 = vmatprep.subr.mxu0 0.0
    %1846 = vmatpush1.msra.mxu0 %v1726
    %1847 = vmatprep.subr.mxu0 0.0
    %1848 = vmatpush1.msra.mxu0 0.0
    %1849 = vmatprep.subr.mxu0 0.0
    %1850 = vmatpush1.msra.mxu0 0.0
    %1851 = vmatprep.subr.mxu0 0.0
    %1852 = vmatpush1.msra.mxu0 0.0
    %1853 = vmatprep.subr.mxu0 0.0
    %1854 = vmatpush1.msra.mxu0 0.0
    %1855 = vmatprep.subr.mxu0 0.0
    %1856 = vmatpush1.msra.mxu0 0.0
    %1857 = vmatprep.subr.mxu0 0.0
    %1858 = vmatpush1.msra.mxu0 0.0
    %1859 = vmatprep.subr.mxu0 0.0
    %1860 = vmatpush1.msra.mxu0 0.0
    %1861 = vmatprep.subr.mxu0 0.0
    %1862 = vmatpush1.msra.mxu0 0.0
    %1863 = vmatprep.subr.mxu0 0.0
    %1864 = vmatpush1.msra.mxu0 0.0
    %1865 = vmatprep.subr.mxu0 0.0
    %1866 = vmatpush1.msra.mxu0 0.0
    %1867 = vmatprep.subr.mxu0 0.0
    %1868 = vmatpush1.msra.mxu0 0.0
    %1869 = vmatprep.subr.mxu0 0.0
    %1870 = vmatpush1.msra.mxu0 0.0
    %1871 = vmatprep.subr.mxu0 0.0
    %1872 = vmatpush1.msra.mxu0 0.0
    %1873 = vmatprep.subr.mxu0 0.0
    %1874 = vmatpush1.msra.mxu0 0.0
    %1875 = vmatprep.subr.mxu0 0.0
    %1876 = vmatpush1.msra.mxu0 0.0
    %1877 = vmatprep.subr.mxu0 0.0
    %1878 = vmatpush1.msra.mxu0 0.0
    %1879 = vmatprep.subr.mxu0 0.0
    %1880 = vmatpush1.msra.mxu0 0.0
    %1881 = vmatprep.subr.mxu0 0.0
    %1882 = vmatpush1.msra.mxu0 0.0
    %1883 = vmatprep.subr.mxu0 0.0
    %1884 = vmatpush1.msra.mxu0 0.0
    %1885 = vmatprep.subr.mxu0 0.0
    %1886 = vmatpush1.msra.mxu0 0.0
    %1887 = vmatprep.subr.mxu0 0.0
    %1888 = vmatpush1.msra.mxu0 0.0
    %1889 = vmatprep.subr.mxu0 0.0
    %1890 = vmatpush1.msra.mxu0 0.0
    %1891 = vmatprep.subr.mxu0 0.0
    %1892 = vmatpush1.msra.mxu0 0.0
    %1893 = vmatprep.subr.mxu0 0.0
    %1894 = vmatpush1.msra.mxu0 0.0
    %1895 = vmatprep.subr.mxu0 0.0
    %1896 = vmatpush1.msra.mxu0 0.0
    %1897 = vmatprep.subr.mxu0 0.0
    %1898 = vmatpush1.msra.mxu0 0.0
    %1899 = vmatprep.subr.mxu0 0.0
    %1900 = vmatpush1.msra.mxu0 0.0
    %1901 = vmatprep.subr.mxu0 0.0
    %1902 = vmatpush1.msra.mxu0 0.0
    %1903 = vmatprep.subr.mxu0 0.0
    %1904 = vmatpush1.msra.mxu0 0.0
    %1905 = vmatprep.subr.mxu0 0.0
    %1906 = vmatpush1.msra.mxu0 0.0
    %1907 = vmatprep.subr.mxu0 0.0
    %1908 = vmatpush1.msra.mxu0 0.0
    %1909 = vmatprep.mubr.f32.mxu0 0.0
    %1910 = vmatmul.mubr.f32.gmra.mrb[0].mxu0 %v1754
    %v1911 = vpop.f32.mrb[0].mxu0
    %v1912 = vadd.f32 %v1749, %v1911
    %v1913 = vpop.f32.mrb[0].mxu0
    %1914 = vmatprep.mubr.f32.mxu0 0.0
    %1915 = vmatmul.mubr.f32.gmra.mrb[0].mxu0 %v1757
    %v1916 = vpop.f32.mrb[0].mxu0
    %v1917 = vadd.f32 %v1749, %v1916
    %v1918 = vpop.f32.mrb[0].mxu0
    %1919 = vmatprep.mubr.f32.mxu0 0.0
    %1920 = vmatmul.mubr.f32.gmra.mrb[0].mxu0 %v1760
    %v1921 = vpop.f32.mrb[0].mxu0
    %v1922 = vadd.f32 %v1749, %v1921
    %v1923 = vpop.f32.mrb[0].mxu0
    %1924 = vdwg.mxu0
    %vm1925 = vcmp.lt.s32.totalorder %v36, 8
    %v1926 = vsel %vm1925, %v1829, %v1841
    %v1927 = vsel %vm1925, %v1831, %v1843
    %v1928 = vsel %vm1925, %v1912, %v1922
    %v1930 = vlaneseq
    %v1931 = vshrl.u32 %v1930, 7
    %v1932 = vsub.s32 0, %v1931
    %v1933 = vrot.slane %v1736, %v1932
    %v1934 = vlaneseq
    %v1935 = vshrl.u32 %v1934, 7
    %v1936 = vsub.s32 1, %v1935
    %v1937 = vrot.slane %v1736, %v1936
    %v1938 = vlaneseq
    %v1939 = vshrl.u32 %v1938, 7
    %v1940 = vsub.s32 2, %v1939
    %v1941 = vrot.slane %v1736, %v1940
    %v1945 = vsel %vm481, 0.0, 0
    %1947 = vmatprep.subr.mxu0 %v1730
    %1948 = vmatpush1.msra.mxu0 %v1729
    %1949 = vmatprep.subr.mxu0 %v1733
    %1950 = vmatpush1.msra.mxu0 %v1732
    %1951 = vmatprep.subr.mxu0 0.0
    %1952 = vmatpush1.msra.mxu0 0.0
    %1953 = vmatprep.subr.mxu0 0.0
    %1954 = vmatpush1.msra.mxu0 0.0
    %1955 = vmatprep.subr.mxu0 0.0
    %1956 = vmatpush1.msra.mxu0 0.0
    %1957 = vmatprep.subr.mxu0 0.0
    %1958 = vmatpush1.msra.mxu0 0.0
    %1959 = vmatprep.subr.mxu0 0.0
    %1960 = vmatpush1.msra.mxu0 0.0
    %1961 = vmatprep.subr.mxu0 0.0
    %1962 = vmatpush1.msra.mxu0 0.0
    %1963 = vmatprep.subr.mxu0 0.0
    %1964 = vmatpush1.msra.mxu0 0.0
    %1965 = vmatprep.subr.mxu0 0.0
    %1966 = vmatpush1.msra.mxu0 0.0
    %1967 = vmatprep.subr.mxu0 0.0
    %1968 = vmatpush1.msra.mxu0 0.0
    %1969 = vmatprep.subr.mxu0 0.0
    %1970 = vmatpush1.msra.mxu0 0.0
    %1971 = vmatprep.subr.mxu0 0.0
    %1972 = vmatpush1.msra.mxu0 0.0
    %1973 = vmatprep.subr.mxu0 0.0
    %1974 = vmatpush1.msra.mxu0 0.0
    %1975 = vmatprep.subr.mxu0 0.0
    %1976 = vmatpush1.msra.mxu0 0.0
    %1977 = vmatprep.subr.mxu0 0.0
    %1978 = vmatpush1.msra.mxu0 0.0
    %1979 = vmatprep.subr.mxu0 0.0
    %1980 = vmatpush1.msra.mxu0 0.0
    %1981 = vmatprep.subr.mxu0 0.0
    %1982 = vmatpush1.msra.mxu0 0.0
    %1983 = vmatprep.subr.mxu0 0.0
    %1984 = vmatpush1.msra.mxu0 0.0
    %1985 = vmatprep.subr.mxu0 0.0
    %1986 = vmatpush1.msra.mxu0 0.0
    %1987 = vmatprep.subr.mxu0 0.0
    %1988 = vmatpush1.msra.mxu0 0.0
    %1989 = vmatprep.subr.mxu0 0.0
    %1990 = vmatpush1.msra.mxu0 0.0
    %1991 = vmatprep.subr.mxu0 0.0
    %1992 = vmatpush1.msra.mxu0 0.0
    %1993 = vmatprep.subr.mxu0 0.0
    %1994 = vmatpush1.msra.mxu0 0.0
    %1995 = vmatprep.subr.mxu0 0.0
    %1996 = vmatpush1.msra.mxu0 0.0
    %1997 = vmatprep.subr.mxu0 0.0
    %1998 = vmatpush1.msra.mxu0 0.0
    %1999 = vmatprep.subr.mxu0 0.0
    %2000 = vmatpush1.msra.mxu0 0.0
    %2001 = vmatprep.subr.mxu0 0.0
    %2002 = vmatpush1.msra.mxu0 0.0
    %2003 = vmatprep.subr.mxu0 0.0
    %2004 = vmatpush1.msra.mxu0 0.0
    %2005 = vmatprep.subr.mxu0 0.0
    %2006 = vmatpush1.msra.mxu0 0.0
    %2007 = vmatprep.subr.mxu0 0.0
    %2008 = vmatpush1.msra.mxu0 0.0
    %2009 = vmatprep.subr.mxu0 0.0
    %2010 = vmatpush1.msra.mxu0 0.0
    %2011 = vmatprep.mubr.f32.mxu0 0.0
    %2012 = vmatmul.mubr.f32.gmra.mrb[0].mxu0 %v1945
    %v2013 = vpop.f32.mrb[0].mxu0
    %v2014 = vadd.f32 %v1933, %v2013
    %v2015 = vpop.f32.mrb[0].mxu0
    %v2016 = vadd.f32 %v1937, %v2015
    %2017 = vdwg.mxu0
    %2018 = vmatprep.subr.mxu0 0.0
    %2019 = vmatpush1.msra.mxu0 %v1731
    %2020 = vmatprep.subr.mxu0 0.0
    %2021 = vmatpush1.msra.mxu0 %v1734
    %2022 = vmatprep.subr.mxu0 0.0
    %2023 = vmatpush1.msra.mxu0 0.0
    %2024 = vmatprep.subr.mxu0 0.0
    %2025 = vmatpush1.msra.mxu0 0.0
    %2026 = vmatprep.subr.mxu0 0.0
    %2027 = vmatpush1.msra.mxu0 0.0
    %2028 = vmatprep.subr.mxu0 0.0
    %2029 = vmatpush1.msra.mxu0 0.0
    %2030 = vmatprep.subr.mxu0 0.0
    %2031 = vmatpush1.msra.mxu0 0.0
    %2032 = vmatprep.subr.mxu0 0.0
    %2033 = vmatpush1.msra.mxu0 0.0
    %2034 = vmatprep.subr.mxu0 0.0
    %2035 = vmatpush1.msra.mxu0 0.0
    %2036 = vmatprep.subr.mxu0 0.0
    %2037 = vmatpush1.msra.mxu0 0.0
    %2038 = vmatprep.subr.mxu0 0.0
    %2039 = vmatpush1.msra.mxu0 0.0
    %2040 = vmatprep.subr.mxu0 0.0
    %2041 = vmatpush1.msra.mxu0 0.0
    %2042 = vmatprep.subr.mxu0 0.0
    %2043 = vmatpush1.msra.mxu0 0.0
    %2044 = vmatprep.subr.mxu0 0.0
    %2045 = vmatpush1.msra.mxu0 0.0
    %2046 = vmatprep.subr.mxu0 0.0
    %2047 = vmatpush1.msra.mxu0 0.0
    %2048 = vmatprep.subr.mxu0 0.0
    %2049 = vmatpush1.msra.mxu0 0.0
    %2050 = vmatprep.subr.mxu0 0.0
    %2051 = vmatpush1.msra.mxu0 0.0
    %2052 = vmatprep.subr.mxu0 0.0
    %2053 = vmatpush1.msra.mxu0 0.0
    %2054 = vmatprep.subr.mxu0 0.0
    %2055 = vmatpush1.msra.mxu0 0.0
    %2056 = vmatprep.subr.mxu0 0.0
    %2057 = vmatpush1.msra.mxu0 0.0
    %2058 = vmatprep.subr.mxu0 0.0
    %2059 = vmatpush1.msra.mxu0 0.0
    %2060 = vmatprep.subr.mxu0 0.0
    %2061 = vmatpush1.msra.mxu0 0.0
    %2062 = vmatprep.subr.mxu0 0.0
    %2063 = vmatpush1.msra.mxu0 0.0
    %2064 = vmatprep.subr.mxu0 0.0
    %2065 = vmatpush1.msra.mxu0 0.0
    %2066 = vmatprep.subr.mxu0 0.0
    %2067 = vmatpush1.msra.mxu0 0.0
    %2068 = vmatprep.subr.mxu0 0.0
    %2069 = vmatpush1.msra.mxu0 0.0
    %2070 = vmatprep.subr.mxu0 0.0
    %2071 = vmatpush1.msra.mxu0 0.0
    %2072 = vmatprep.subr.mxu0 0.0
    %2073 = vmatpush1.msra.mxu0 0.0
    %2074 = vmatprep.subr.mxu0 0.0
    %2075 = vmatpush1.msra.mxu0 0.0
    %2076 = vmatprep.subr.mxu0 0.0
    %2077 = vmatpush1.msra.mxu0 0.0
    %2078 = vmatprep.subr.mxu0 0.0
    %2079 = vmatpush1.msra.mxu0 0.0
    %2080 = vmatprep.subr.mxu0 0.0
    %2081 = vmatpush1.msra.mxu0 0.0
    %2082 = vmatprep.mubr.f32.mxu0 0.0
    %2083 = vmatmul.mubr.f32.gmra.mrb[0].mxu0 %v1945
    %v2084 = vpop.f32.mrb[0].mxu0
    %v2085 = vadd.f32 %v1941, %v2084
    %v2086 = vpop.f32.mrb[0].mxu0
    %2087 = vdwg.mxu0
    %v2088 = vadd.f32 %v1926, %v2014
    %v2089 = vxor.u32 %v2088, 2147483648
    %v2090 = vmul.f32 %v2089, 1.442695
    %v2091 = vpow.pop %v2090
    %v2092 = vadd.f32 %v2091, 1.0
    %v2093 = vrcp.pop %v2092
    %v2094 = vmul.f32 1.0, %v2093
    %v2095 = vadd.f32 %v1927, %v2016
    %v2096 = vxor.u32 %v2095, 2147483648
    %v2097 = vmul.f32 %v2096, 1.442695
    %v2098 = vpow.pop %v2097
    %v2099 = vadd.f32 %v2098, 1.0
    %v2100 = vrcp.pop %v2099
    %v2101 = vmul.f32 1.0, %v2100
    %v2102 = vmul.f32 %v2094, %v2085
    %v2103 = vadd.f32 %v1928, %v2102
    %v2104 = vtanh.pop %v2103
    %v2105 = vsub.f32 1.0, %v2101
    %v2106 = vmul.f32 %v2105, %v2104
    %v2107 = vmul.f32 %v2101, 0.0
    %v2108 = vadd.f32 %v2106, %v2107
    %v2110 = vsel %vm481, %v2108, 0
    %2112 = vmatprep.subr.mxu0 %v1730
    %2113 = vmatpush1.msra.mxu0 %v1729
    %2114 = vmatprep.subr.mxu0 %v1733
    %2115 = vmatpush1.msra.mxu0 %v1732
    %2116 = vmatprep.subr.mxu0 0.0
    %2117 = vmatpush1.msra.mxu0 0.0
    %2118 = vmatprep.subr.mxu0 0.0
    %2119 = vmatpush1.msra.mxu0 0.0
    %2120 = vmatprep.subr.mxu0 0.0
    %2121 = vmatpush1.msra.mxu0 0.0
    %2122 = vmatprep.subr.mxu0 0.0
    %2123 = vmatpush1.msra.mxu0 0.0
    %2124 = vmatprep.subr.mxu0 0.0
    %2125 = vmatpush1.msra.mxu0 0.0
    %2126 = vmatprep.subr.mxu0 0.0
    %2127 = vmatpush1.msra.mxu0 0.0
    %2128 = vmatprep.subr.mxu0 0.0
    %2129 = vmatpush1.msra.mxu0 0.0
    %2130 = vmatprep.subr.mxu0 0.0
    %2131 = vmatpush1.msra.mxu0 0.0
    %2132 = vmatprep.subr.mxu0 0.0
    %2133 = vmatpush1.msra.mxu0 0.0
    %2134 = vmatprep.subr.mxu0 0.0
    %2135 = vmatpush1.msra.mxu0 0.0
    %2136 = vmatprep.subr.mxu0 0.0
    %2137 = vmatpush1.msra.mxu0 0.0
    %2138 = vmatprep.subr.mxu0 0.0
    %2139 = vmatpush1.msra.mxu0 0.0
    %2140 = vmatprep.subr.mxu0 0.0
    %2141 = vmatpush1.msra.mxu0 0.0
    %2142 = vmatprep.subr.mxu0 0.0
    %2143 = vmatpush1.msra.mxu0 0.0
    %2144 = vmatprep.subr.mxu0 0.0
    %2145 = vmatpush1.msra.mxu0 0.0
    %2146 = vmatprep.subr.mxu0 0.0
    %2147 = vmatpush1.msra.mxu0 0.0
    %2148 = vmatprep.subr.mxu0 0.0
    %2149 = vmatpush1.msra.mxu0 0.0
    %2150 = vmatprep.subr.mxu0 0.0
    %2151 = vmatpush1.msra.mxu0 0.0
    %2152 = vmatprep.subr.mxu0 0.0
    %2153 = vmatpush1.msra.mxu0 0.0
    %2154 = vmatprep.subr.mxu0 0.0
    %2155 = vmatpush1.msra.mxu0 0.0
    %2156 = vmatprep.subr.mxu0 0.0
    %2157 = vmatpush1.msra.mxu0 0.0
    %2158 = vmatprep.subr.mxu0 0.0
    %2159 = vmatpush1.msra.mxu0 0.0
    %2160 = vmatprep.subr.mxu0 0.0
    %2161 = vmatpush1.msra.mxu0 0.0
    %2162 = vmatprep.subr.mxu0 0.0
    %2163 = vmatpush1.msra.mxu0 0.0
    %2164 = vmatprep.subr.mxu0 0.0
    %2165 = vmatpush1.msra.mxu0 0.0
    %2166 = vmatprep.subr.mxu0 0.0
    %2167 = vmatpush1.msra.mxu0 0.0
    %2168 = vmatprep.subr.mxu0 0.0
    %2169 = vmatpush1.msra.mxu0 0.0
    %2170 = vmatprep.subr.mxu0 0.0
    %2171 = vmatpush1.msra.mxu0 0.0
    %2172 = vmatprep.subr.mxu0 0.0
    %2173 = vmatpush1.msra.mxu0 0.0
    %2174 = vmatprep.subr.mxu0 0.0
    %2175 = vmatpush1.msra.mxu0 0.0
    %2176 = vmatprep.mubr.f32.mxu0 0.0
    %2177 = vmatmul.mubr.f32.gmra.mrb[0].mxu0 %v2110
    %v2178 = vpop.f32.mrb[0].mxu0
    %v2179 = vadd.f32 %v1933, %v2178
    %v2180 = vpop.f32.mrb[0].mxu0
    %v2181 = vadd.f32 %v1937, %v2180
    %2182 = vdwg.mxu0
    %2183 = vmatprep.subr.mxu0 0.0
    %2184 = vmatpush1.msra.mxu0 %v1731
    %2185 = vmatprep.subr.mxu0 0.0
    %2186 = vmatpush1.msra.mxu0 %v1734
    %2187 = vmatprep.subr.mxu0 0.0
    %2188 = vmatpush1.msra.mxu0 0.0
    %2189 = vmatprep.subr.mxu0 0.0
    %2190 = vmatpush1.msra.mxu0 0.0
    %2191 = vmatprep.subr.mxu0 0.0
    %2192 = vmatpush1.msra.mxu0 0.0
    %2193 = vmatprep.subr.mxu0 0.0
    %2194 = vmatpush1.msra.mxu0 0.0
    %2195 = vmatprep.subr.mxu0 0.0
    %2196 = vmatpush1.msra.mxu0 0.0
    %2197 = vmatprep.subr.mxu0 0.0
    %2198 = vmatpush1.msra.mxu0 0.0
    %2199 = vmatprep.subr.mxu0 0.0
    %2200 = vmatpush1.msra.mxu0 0.0
    %2201 = vmatprep.subr.mxu0 0.0
    %2202 = vmatpush1.msra.mxu0 0.0
    %2203 = vmatprep.subr.mxu0 0.0
    %2204 = vmatpush1.msra.mxu0 0.0
    %2205 = vmatprep.subr.mxu0 0.0
    %2206 = vmatpush1.msra.mxu0 0.0
    %2207 = vmatprep.subr.mxu0 0.0
    %2208 = vmatpush1.msra.mxu0 0.0
    %2209 = vmatprep.subr.mxu0 0.0
    %2210 = vmatpush1.msra.mxu0 0.0
    %2211 = vmatprep.subr.mxu0 0.0
    %2212 = vmatpush1.msra.mxu0 0.0
    %2213 = vmatprep.subr.mxu0 0.0
    %2214 = vmatpush1.msra.mxu0 0.0
    %2215 = vmatprep.subr.mxu0 0.0
    %2216 = vmatpush1.msra.mxu0 0.0
    %2217 = vmatprep.subr.mxu0 0.0
    %2218 = vmatpush1.msra.mxu0 0.0
    %2219 = vmatprep.subr.mxu0 0.0
    %2220 = vmatpush1.msra.mxu0 0.0
    %2221 = vmatprep.subr.mxu0 0.0
    %2222 = vmatpush1.msra.mxu0 0.0
    %2223 = vmatprep.subr.mxu0 0.0
    %2224 = vmatpush1.msra.mxu0 0.0
    %2225 = vmatprep.subr.mxu0 0.0
    %2226 = vmatpush1.msra.mxu0 0.0
    %2227 = vmatprep.subr.mxu0 0.0
    %2228 = vmatpush1.msra.mxu0 0.0
    %2229 = vmatprep.subr.mxu0 0.0
    %2230 = vmatpush1.msra.mxu0 0.0
    %2231 = vmatprep.subr.mxu0 0.0
    %2232 = vmatpush1.msra.mxu0 0.0
    %2233 = vmatprep.subr.mxu0 0.0
    %2234 = vmatpush1.msra.mxu0 0.0
    %2235 = vmatprep.subr.mxu0 0.0
    %2236 = vmatpush1.msra.mxu0 0.0
    %2237 = vmatprep.subr.mxu0 0.0
    %2238 = vmatpush1.msra.mxu0 0.0
    %2239 = vmatprep.subr.mxu0 0.0
    %2240 = vmatpush1.msra.mxu0 0.0
    %2241 = vmatprep.subr.mxu0 0.0
    %2242 = vmatpush1.msra.mxu0 0.0
    %2243 = vmatprep.subr.mxu0 0.0
    %2244 = vmatpush1.msra.mxu0 0.0
    %2245 = vmatprep.subr.mxu0 0.0
    %2246 = vmatpush1.msra.mxu0 0.0
    %2247 = vmatprep.mubr.f32.mxu0 0.0
    %2248 = vmatmul.mubr.f32.gmra.mrb[0].mxu0 %v2110
    %v2249 = vpop.f32.mrb[0].mxu0
    %v2250 = vadd.f32 %v1941, %v2249
    %v2251 = vpop.f32.mrb[0].mxu0
    %2252 = vdwg.mxu0
    %v2253 = vadd.f32 %v1835, %v2179
    %v2254 = vxor.u32 %v2253, 2147483648
    %v2255 = vmul.f32 %v2254, 1.442695
    %v2256 = vpow.pop %v2255
    %v2257 = vadd.f32 %v2256, 1.0
    %v2258 = vrcp.pop %v2257
    %v2259 = vmul.f32 1.0, %v2258
    %v2260 = vadd.f32 %v1837, %v2181
    %v2261 = vxor.u32 %v2260, 2147483648
    %v2262 = vmul.f32 %v2261, 1.442695
    %v2263 = vpow.pop %v2262
    %v2264 = vadd.f32 %v2263, 1.0
    %v2265 = vrcp.pop %v2264
    %v2266 = vmul.f32 1.0, %v2265
    %v2267 = vmul.f32 %v2259, %v2250
    %v2268 = vadd.f32 %v1917, %v2267
    %v2269 = vtanh.pop %v2268
    %v2270 = vsub.f32 1.0, %v2266
    %v2271 = vmul.f32 %v2270, %v2269
    %v2272 = vmul.f32 %v2266, %v2108
    %v2273 = vadd.f32 %v2271, %v2272
    %v2274 = vsel %vm1925, %v1841, %v1829
    %v2275 = vsel %vm1925, %v1843, %v1831
    %v2276 = vsel %vm1925, %v1922, %v1912
    %v2278 = vsel %vm481, %v2273, 0
    %2280 = vmatprep.subr.mxu0 %v1730
    %2281 = vmatpush1.msra.mxu0 %v1729
    %2282 = vmatprep.subr.mxu0 %v1733
    %2283 = vmatpush1.msra.mxu0 %v1732
    %2284 = vmatprep.subr.mxu0 0.0
    %2285 = vmatpush1.msra.mxu0 0.0
    %2286 = vmatprep.subr.mxu0 0.0
    %2287 = vmatpush1.msra.mxu0 0.0
    %2288 = vmatprep.subr.mxu0 0.0
    %2289 = vmatpush1.msra.mxu0 0.0
    %2290 = vmatprep.subr.mxu0 0.0
    %2291 = vmatpush1.msra.mxu0 0.0
    %2292 = vmatprep.subr.mxu0 0.0
    %2293 = vmatpush1.msra.mxu0 0.0
    %2294 = vmatprep.subr.mxu0 0.0
    %2295 = vmatpush1.msra.mxu0 0.0
    %2296 = vmatprep.subr.mxu0 0.0
    %2297 = vmatpush1.msra.mxu0 0.0
    %2298 = vmatprep.subr.mxu0 0.0
    %2299 = vmatpush1.msra.mxu0 0.0
    %2300 = vmatprep.subr.mxu0 0.0
    %2301 = vmatpush1.msra.mxu0 0.0
    %2302 = vmatprep.subr.mxu0 0.0
    %2303 = vmatpush1.msra.mxu0 0.0
    %2304 = vmatprep.subr.mxu0 0.0
    %2305 = vmatpush1.msra.mxu0 0.0
    %2306 = vmatprep.subr.mxu0 0.0
    %2307 = vmatpush1.msra.mxu0 0.0
    %2308 = vmatprep.subr.mxu0 0.0
    %2309 = vmatpush1.msra.mxu0 0.0
    %2310 = vmatprep.subr.mxu0 0.0
    %2311 = vmatpush1.msra.mxu0 0.0
    %2312 = vmatprep.subr.mxu0 0.0
    %2313 = vmatpush1.msra.mxu0 0.0
    %2314 = vmatprep.subr.mxu0 0.0
    %2315 = vmatpush1.msra.mxu0 0.0
    %2316 = vmatprep.subr.mxu0 0.0
    %2317 = vmatpush1.msra.mxu0 0.0
    %2318 = vmatprep.subr.mxu0 0.0
    %2319 = vmatpush1.msra.mxu0 0.0
    %2320 = vmatprep.subr.mxu0 0.0
    %2321 = vmatpush1.msra.mxu0 0.0
    %2322 = vmatprep.subr.mxu0 0.0
    %2323 = vmatpush1.msra.mxu0 0.0
    %2324 = vmatprep.subr.mxu0 0.0
    %2325 = vmatpush1.msra.mxu0 0.0
    %2326 = vmatprep.subr.mxu0 0.0
    %2327 = vmatpush1.msra.mxu0 0.0
    %2328 = vmatprep.subr.mxu0 0.0
    %2329 = vmatpush1.msra.mxu0 0.0
    %2330 = vmatprep.subr.mxu0 0.0
    %2331 = vmatpush1.msra.mxu0 0.0
    %2332 = vmatprep.subr.mxu0 0.0
    %2333 = vmatpush1.msra.mxu0 0.0
    %2334 = vmatprep.subr.mxu0 0.0
    %2335 = vmatpush1.msra.mxu0 0.0
    %2336 = vmatprep.subr.mxu0 0.0
    %2337 = vmatpush1.msra.mxu0 0.0
    %2338 = vmatprep.subr.mxu0 0.0
    %2339 = vmatpush1.msra.mxu0 0.0
    %2340 = vmatprep.subr.mxu0 0.0
    %2341 = vmatpush1.msra.mxu0 0.0
    %2342 = vmatprep.subr.mxu0 0.0
    %2343 = vmatpush1.msra.mxu0 0.0
    %2344 = vmatprep.mubr.f32.mxu0 0.0
    %2345 = vmatmul.mubr.f32.gmra.mrb[0].mxu0 %v2278
    %v2346 = vpop.f32.mrb[0].mxu0
    %v2347 = vadd.f32 %v1933, %v2346
    %v2348 = vpop.f32.mrb[0].mxu0
    %v2349 = vadd.f32 %v1937, %v2348
    %2350 = vdwg.mxu0
    %2351 = vmatprep.subr.mxu0 0.0
    %2352 = vmatpush1.msra.mxu0 %v1731
    %2353 = vmatprep.subr.mxu0 0.0
    %2354 = vmatpush1.msra.mxu0 %v1734
    %2355 = vmatprep.subr.mxu0 0.0
    %2356 = vmatpush1.msra.mxu0 0.0
    %2357 = vmatprep.subr.mxu0 0.0
    %2358 = vmatpush1.msra.mxu0 0.0
    %2359 = vmatprep.subr.mxu0 0.0
    %2360 = vmatpush1.msra.mxu0 0.0
    %2361 = vmatprep.subr.mxu0 0.0
    %2362 = vmatpush1.msra.mxu0 0.0
    %2363 = vmatprep.subr.mxu0 0.0
    %2364 = vmatpush1.msra.mxu0 0.0
    %2365 = vmatprep.subr.mxu0 0.0
    %2366 = vmatpush1.msra.mxu0 0.0
    %2367 = vmatprep.subr.mxu0 0.0
    %2368 = vmatpush1.msra.mxu0 0.0
    %2369 = vmatprep.subr.mxu0 0.0
    %2370 = vmatpush1.msra.mxu0 0.0
    %2371 = vmatprep.subr.mxu0 0.0
    %2372 = vmatpush1.msra.mxu0 0.0
    %2373 = vmatprep.subr.mxu0 0.0
    %2374 = vmatpush1.msra.mxu0 0.0
    %2375 = vmatprep.subr.mxu0 0.0
    %2376 = vmatpush1.msra.mxu0 0.0
    %2377 = vmatprep.subr.mxu0 0.0
    %2378 = vmatpush1.msra.mxu0 0.0
    %2379 = vmatprep.subr.mxu0 0.0
    %2380 = vmatpush1.msra.mxu0 0.0
    %2381 = vmatprep.subr.mxu0 0.0
    %2382 = vmatpush1.msra.mxu0 0.0
    %2383 = vmatprep.subr.mxu0 0.0
    %2384 = vmatpush1.msra.mxu0 0.0
    %2385 = vmatprep.subr.mxu0 0.0
    %2386 = vmatpush1.msra.mxu0 0.0
    %2387 = vmatprep.subr.mxu0 0.0
    %2388 = vmatpush1.msra.mxu0 0.0
    %2389 = vmatprep.subr.mxu0 0.0
    %2390 = vmatpush1.msra.mxu0 0.0
    %2391 = vmatprep.subr.mxu0 0.0
    %2392 = vmatpush1.msra.mxu0 0.0
    %2393 = vmatprep.subr.mxu0 0.0
    %2394 = vmatpush1.msra.mxu0 0.0
    %2395 = vmatprep.subr.mxu0 0.0
    %2396 = vmatpush1.msra.mxu0 0.0
    %2397 = vmatprep.subr.mxu0 0.0
    %2398 = vmatpush1.msra.mxu0 0.0
    %2399 = vmatprep.subr.mxu0 0.0
    %2400 = vmatpush1.msra.mxu0 0.0
    %2401 = vmatprep.subr.mxu0 0.0
    %2402 = vmatpush1.msra.mxu0 0.0
    %2403 = vmatprep.subr.mxu0 0.0
    %2404 = vmatpush1.msra.mxu0 0.0
    %2405 = vmatprep.subr.mxu0 0.0
    %2406 = vmatpush1.msra.mxu0 0.0
    %2407 = vmatprep.subr.mxu0 0.0
    %2408 = vmatpush1.msra.mxu0 0.0
    %2409 = vmatprep.subr.mxu0 0.0
    %2410 = vmatpush1.msra.mxu0 0.0
    %2411 = vmatprep.subr.mxu0 0.0
    %2412 = vmatpush1.msra.mxu0 0.0
    %2413 = vmatprep.subr.mxu0 0.0
    %2414 = vmatpush1.msra.mxu0 0.0
    %2415 = vmatprep.mubr.f32.mxu0 0.0
    %2416 = vmatmul.mubr.f32.gmra.mrb[0].mxu0 %v2278
    %v2417 = vpop.f32.mrb[0].mxu0
    %v2418 = vadd.f32 %v1941, %v2417
    %v2419 = vpop.f32.mrb[0].mxu0
    %2420 = vdwg.mxu0
    %v2421 = vadd.f32 %v2274, %v2347
    %v2422 = vxor.u32 %v2421, 2147483648
    %v2423 = vmul.f32 %v2422, 1.442695
    %v2424 = vpow.pop %v2423
    %v2425 = vadd.f32 %v2424, 1.0
    %v2426 = vrcp.pop %v2425
    %v2427 = vmul.f32 1.0, %v2426
    %v2428 = vadd.f32 %v2275, %v2349
    %v2429 = vxor.u32 %v2428, 2147483648
    %v2430 = vmul.f32 %v2429, 1.442695
    %v2431 = vpow.pop %v2430
    %v2432 = vadd.f32 %v2431, 1.0
    %v2433 = vrcp.pop %v2432
    %v2434 = vmul.f32 1.0, %v2433
    %v2435 = vmul.f32 %v2427, %v2418
    %v2436 = vadd.f32 %v2276, %v2435
    %v2437 = vtanh.pop %v2436
    %v2438 = vsub.f32 1.0, %v2434
    %v2439 = vmul.f32 %v2438, %v2437
    %v2440 = vmul.f32 %v2434, %v2273
    %v2441 = vadd.f32 %v2439, %v2440
    %v2442 = vsel %vm1925, %v2108, %v2441
    %v2443 = vsel %vm1925, %v2441, %v2108
    %v2444 = vld [vmem:[#allocation2 + $0x1e0] sm:$0xff]
    %v2445 = vld [vmem:[#allocation2 + $0x1f8] sm:$0xff]
    %v2446 = vld [vmem:[#allocation2 + $0x210] ss:$0 sm:$0xff]
    %v2447 = vld [vmem:[#allocation2 + $0x228] ss:$0 sm:$0xff]
    %v2449 = vsel %vm481, %v2442, 0
    %v2452 = vsel %vm481, %v2443, 0
    %2454 = vmatprep.subr.mxu0 0.0
    %2455 = vmatpush1.msra.mxu0 %v2444
    %2456 = vmatprep.subr.mxu0 0.0
    %2457 = vmatpush1.msra.mxu0 %v2445
    %2458 = vmatprep.subr.mxu0 0.0
    %2459 = vmatpush1.msra.mxu0 0.0
    %2460 = vmatprep.subr.mxu0 0.0
    %2461 = vmatpush1.msra.mxu0 0.0
    %2462 = vmatprep.subr.mxu0 0.0
    %2463 = vmatpush1.msra.mxu0 0.0
    %2464 = vmatprep.subr.mxu0 0.0
    %2465 = vmatpush1.msra.mxu0 0.0
    %2466 = vmatprep.subr.mxu0 0.0
    %2467 = vmatpush1.msra.mxu0 0.0
    %2468 = vmatprep.subr.mxu0 0.0
    %2469 = vmatpush1.msra.mxu0 0.0
    %2470 = vmatprep.subr.mxu0 0.0
    %2471 = vmatpush1.msra.mxu0 0.0
    %2472 = vmatprep.subr.mxu0 0.0
    %2473 = vmatpush1.msra.mxu0 0.0
    %2474 = vmatprep.subr.mxu0 0.0
    %2475 = vmatpush1.msra.mxu0 0.0
    %2476 = vmatprep.subr.mxu0 0.0
    %2477 = vmatpush1.msra.mxu0 0.0
    %2478 = vmatprep.subr.mxu0 0.0
    %2479 = vmatpush1.msra.mxu0 0.0
    %2480 = vmatprep.subr.mxu0 0.0
    %2481 = vmatpush1.msra.mxu0 0.0
    %2482 = vmatprep.subr.mxu0 0.0
    %2483 = vmatpush1.msra.mxu0 0.0
    %2484 = vmatprep.subr.mxu0 0.0
    %2485 = vmatpush1.msra.mxu0 0.0
    %2486 = vmatprep.subr.mxu0 0.0
    %2487 = vmatpush1.msra.mxu0 0.0
    %2488 = vmatprep.subr.mxu0 0.0
    %2489 = vmatpush1.msra.mxu0 0.0
    %2490 = vmatprep.subr.mxu0 0.0
    %2491 = vmatpush1.msra.mxu0 0.0
    %2492 = vmatprep.subr.mxu0 0.0
    %2493 = vmatpush1.msra.mxu0 0.0
    %2494 = vmatprep.subr.mxu0 0.0
    %2495 = vmatpush1.msra.mxu0 0.0
    %2496 = vmatprep.subr.mxu0 0.0
    %2497 = vmatpush1.msra.mxu0 0.0
    %2498 = vmatprep.subr.mxu0 0.0
    %2499 = vmatpush1.msra.mxu0 0.0
    %2500 = vmatprep.subr.mxu0 0.0
    %2501 = vmatpush1.msra.mxu0 0.0
    %2502 = vmatprep.subr.mxu0 0.0
    %2503 = vmatpush1.msra.mxu0 0.0
    %2504 = vmatprep.subr.mxu0 0.0
    %2505 = vmatpush1.msra.mxu0 0.0
    %2506 = vmatprep.subr.mxu0 0.0
    %2507 = vmatpush1.msra.mxu0 0.0
    %2508 = vmatprep.subr.mxu0 0.0
    %2509 = vmatpush1.msra.mxu0 0.0
    %2510 = vmatprep.subr.mxu0 0.0
    %2511 = vmatpush1.msra.mxu0 0.0
    %2512 = vmatprep.subr.mxu0 0.0
    %2513 = vmatpush1.msra.mxu0 0.0
    %2514 = vmatprep.subr.mxu0 0.0
    %2515 = vmatpush1.msra.mxu0 0.0
    %2516 = vmatprep.subr.mxu0 0.0
    %2517 = vmatpush1.msra.mxu0 0.0
    %2518 = vmatprep.mubr.f32.mxu0 0.0
    %2519 = vmatmul.mubr.f32.gmra.mrb[0].mxu0 %v2449
    %v2520 = vpop.f32.mrb[0].mxu0
    %v2521 = vadd.f32 %v2446, %v2520
    %v2522 = vpop.f32.mrb[0].mxu0
    %2523 = vmatprep.mubr.f32.mxu0 0.0
    %2524 = vmatmul.mubr.f32.gmra.mrb[0].mxu0 %v2278
    %v2525 = vpop.f32.mrb[0].mxu0
    %v2526 = vadd.f32 %v2446, %v2525
    %v2527 = vpop.f32.mrb[0].mxu0
    %2528 = vmatprep.mubr.f32.mxu0 0.0
    %2529 = vmatmul.mubr.f32.gmra.mrb[0].mxu0 %v2452
    %v2530 = vpop.f32.mrb[0].mxu0
    %v2531 = vadd.f32 %v2446, %v2530
    %v2532 = vpop.f32.mrb[0].mxu0
    %2533 = vdwg.mxu0
    %v2534 = vtanh.pop %v2521
    %v2535 = vtanh.pop %v2526
    %v2536 = vtanh.pop %v2531
    %v2537 = vmul.f32 %v2534, %v2447
    %v2538 = vmul.f32 %v2535, %v2447
    %v2539 = vmul.f32 %v2536, %v2447
    %v2540 = vsel %vm481, %v2537, 0.0
    %2541 = vadd.xlane.f32.xlu0 %v2540
    %v2542 = vpop.xlane.xlu0 %2541
    %v2543 = vsel %vm481, %v2538, 0.0
    %2544 = vadd.xlane.f32.xlu0 %v2543
    %v2545 = vpop.xlane.xlu0 %2544
    %v2546 = vsel %vm481, %v2539, 0.0
    %2547 = vadd.xlane.f32.xlu0 %v2546
    %v2548 = vpop.xlane.xlu0 %2547
    %v2549 = vmax.f32 %v2542, %v2545
    %v2550 = vmax.f32 %v2549, %v2548
    %v2551 = vsub.f32 %v2542, %v2550
    %v2552 = vmul.f32 %v2551, 1.442695
    %v2553 = vpow.pop %v2552
    %v2554 = vsub.f32 %v2545, %v2550
    %v2555 = vmul.f32 %v2554, 1.442695
    %v2556 = vpow.pop %v2555
    %v2557 = vsub.f32 %v2548, %v2550
    %v2558 = vmul.f32 %v2557, 1.442695
    %v2559 = vpow.pop %v2558
    %v2560 = vadd.f32 %v2553, %v2556
    %v2561 = vadd.f32 %v2560, %v2559
    %v2562 = vrcp.pop %v2561
    %v2563 = vmul.f32 1.0, %v2562
    %v2564 = vmul.f32 %v2553, %v2563
    %v2565 = vmul.f32 %v2564, %v2442
    %v2566 = vmul.f32 %v2556, %v2563
    %v2567 = vmul.f32 %v2566, %v2273
    %v2568 = vadd.f32 %v2565, %v2567
    %v2569 = vmul.f32 %v2559, %v2563
    %v2570 = vmul.f32 %v2569, %v2443
    %v2571 = vadd.f32 %v2568, %v2570
    %v2572 = vld [vmem:[#allocation2 + $0x240] sm:$0xff]
    %v2573 = vld [vmem:[#allocation2 + $0x248] sm:$0xff]
    %v2574 = vld [vmem:[#allocation2 + $0x250] sm:$0xff]
    %v2575 = vld [vmem:[#allocation2 + $0x258] sm:$0xff]
    %v2576 = vld [vmem:[#allocation2 + $0x260] sm:$0xff]
    %v2577 = vld [vmem:[#allocation2 + $0x268] sm:$0xff]
    %s2578 = scalar_lea.vmem [#allocation2], 624
    %v2579 = vld [vmem:[%s2578] ss:$8 sm:$0x7]
    %v2580 = vld [vmem:[#allocation2 + $0x288] sm:$0xff]
    %v2581 = vld [vmem:[#allocation2 + $0x290] sm:$0xff]
    %v2582 = vld [vmem:[#allocation2 + $0x298] sm:$0xff]
    %v2583 = vld [vmem:[#allocation2 + $0x2a0] sm:$0xff]
    %v2584 = vld [vmem:[#allocation2 + $0x2a8] sm:$0xff]
    %v2585 = vld [vmem:[#allocation2 + $0x2b0] sm:$0xff]
    %v2586 = vld [vmem:[#allocation2 + $0x2b8] sm:$0xff]
    %v2587 = vld [vmem:[#allocation2 + $0x2c0] sm:$0xff]
    %v2588 = vld [vmem:[#allocation2 + $0x2c8] sm:$0xff]
    %v2589 = vld [vmem:[#allocation2 + $0x2d0] sm:$0xff]
    %v2590 = vld [vmem:[#allocation2 + $0x2d8] sm:$0xff]
    %v2591 = vld [vmem:[#allocation2 + $0x2e0] sm:$0xff]
    %s2592 = scalar_lea.vmem [#allocation2], 744
    %v2593 = vld [vmem:[%s2592] ss:$8 sm:$0x7]
    %v2595 = vlaneseq
    %v2596 = vshrl.u32 %v2595, 7
    %v2597 = vsub.s32 0, %v2596
    %v2598 = vrot.slane %v2579, %v2597
    %v2599 = vlaneseq
    %v2600 = vshrl.u32 %v2599, 7
    %v2601 = vsub.s32 1, %v2600
    %v2602 = vrot.slane %v2579, %v2601
    %v2603 = vlaneseq
    %v2604 = vshrl.u32 %v2603, 7
    %v2605 = vsub.s32 2, %v2604
    %v2606 = vrot.slane %v2579, %v2605
    %v2611 = vsel %vm481, %v2571, 0
    %2613 = vmatprep.subr.mxu0 %v2573
    %2614 = vmatpush1.msra.mxu0 %v2572
    %2615 = vmatprep.subr.mxu0 %v2576
    %2616 = vmatpush1.msra.mxu0 %v2575
    %2617 = vmatprep.subr.mxu0 0.0
    %2618 = vmatpush1.msra.mxu0 0.0
    %2619 = vmatprep.subr.mxu0 0.0
    %2620 = vmatpush1.msra.mxu0 0.0
    %2621 = vmatprep.subr.mxu0 0.0
    %2622 = vmatpush1.msra.mxu0 0.0
    %2623 = vmatprep.subr.mxu0 0.0
    %2624 = vmatpush1.msra.mxu0 0.0
    %2625 = vmatprep.subr.mxu0 0.0
    %2626 = vmatpush1.msra.mxu0 0.0
    %2627 = vmatprep.subr.mxu0 0.0
    %2628 = vmatpush1.msra.mxu0 0.0
    %2629 = vmatprep.subr.mxu0 0.0
    %2630 = vmatpush1.msra.mxu0 0.0
    %2631 = vmatprep.subr.mxu0 0.0
    %2632 = vmatpush1.msra.mxu0 0.0
    %2633 = vmatprep.subr.mxu0 0.0
    %2634 = vmatpush1.msra.mxu0 0.0
    %2635 = vmatprep.subr.mxu0 0.0
    %2636 = vmatpush1.msra.mxu0 0.0
    %2637 = vmatprep.subr.mxu0 0.0
    %2638 = vmatpush1.msra.mxu0 0.0
    %2639 = vmatprep.subr.mxu0 0.0
    %2640 = vmatpush1.msra.mxu0 0.0
    %2641 = vmatprep.subr.mxu0 0.0
    %2642 = vmatpush1.msra.mxu0 0.0
    %2643 = vmatprep.subr.mxu0 0.0
    %2644 = vmatpush1.msra.mxu0 0.0
    %2645 = vmatprep.subr.mxu0 0.0
    %2646 = vmatpush1.msra.mxu0 0.0
    %2647 = vmatprep.subr.mxu0 0.0
    %2648 = vmatpush1.msra.mxu0 0.0
    %2649 = vmatprep.subr.mxu0 0.0
    %2650 = vmatpush1.msra.mxu0 0.0
    %2651 = vmatprep.subr.mxu0 0.0
    %2652 = vmatpush1.msra.mxu0 0.0
    %2653 = vmatprep.subr.mxu0 0.0
    %2654 = vmatpush1.msra.mxu0 0.0
    %2655 = vmatprep.subr.mxu0 0.0
    %2656 = vmatpush1.msra.mxu0 0.0
    %2657 = vmatprep.subr.mxu0 0.0
    %2658 = vmatpush1.msra.mxu0 0.0
    %2659 = vmatprep.subr.mxu0 0.0
    %2660 = vmatpush1.msra.mxu0 0.0
    %2661 = vmatprep.subr.mxu0 0.0
    %2662 = vmatpush1.msra.mxu0 0.0
    %2663 = vmatprep.subr.mxu0 0.0
    %2664 = vmatpush1.msra.mxu0 0.0
    %2665 = vmatprep.subr.mxu0 0.0
    %2666 = vmatpush1.msra.mxu0 0.0
    %2667 = vmatprep.subr.mxu0 0.0
    %2668 = vmatpush1.msra.mxu0 0.0
    %2669 = vmatprep.subr.mxu0 0.0
    %2670 = vmatpush1.msra.mxu0 0.0
    %2671 = vmatprep.subr.mxu0 0.0
    %2672 = vmatpush1.msra.mxu0 0.0
    %2673 = vmatprep.subr.mxu0 0.0
    %2674 = vmatpush1.msra.mxu0 0.0
    %2675 = vmatprep.subr.mxu0 0.0
    %2676 = vmatpush1.msra.mxu0 0.0
    %2677 = vmatprep.mubr.f32.mxu0 0.0
    %2678 = vmatmul.mubr.f32.gmra.mrb[0].mxu0 %v2611
    %v2679 = vpop.f32.mrb[0].mxu0
    %v2680 = vadd.f32 %v2598, %v2679
    %v2681 = vpop.f32.mrb[0].mxu0
    %v2682 = vadd.f32 %v2602, %v2681
    %2683 = vdwg.mxu0
    %2684 = vmatprep.subr.mxu0 0.0
    %2685 = vmatpush1.msra.mxu0 %v2574
    %2686 = vmatprep.subr.mxu0 0.0
    %2687 = vmatpush1.msra.mxu0 %v2577
    %2688 = vmatprep.subr.mxu0 0.0
    %2689 = vmatpush1.msra.mxu0 0.0
    %2690 = vmatprep.subr.mxu0 0.0
    %2691 = vmatpush1.msra.mxu0 0.0
    %2692 = vmatprep.subr.mxu0 0.0
    %2693 = vmatpush1.msra.mxu0 0.0
    %2694 = vmatprep.subr.mxu0 0.0
    %2695 = vmatpush1.msra.mxu0 0.0
    %2696 = vmatprep.subr.mxu0 0.0
    %2697 = vmatpush1.msra.mxu0 0.0
    %2698 = vmatprep.subr.mxu0 0.0
    %2699 = vmatpush1.msra.mxu0 0.0
    %2700 = vmatprep.subr.mxu0 0.0
    %2701 = vmatpush1.msra.mxu0 0.0
    %2702 = vmatprep.subr.mxu0 0.0
    %2703 = vmatpush1.msra.mxu0 0.0
    %2704 = vmatprep.subr.mxu0 0.0
    %2705 = vmatpush1.msra.mxu0 0.0
    %2706 = vmatprep.subr.mxu0 0.0
    %2707 = vmatpush1.msra.mxu0 0.0
    %2708 = vmatprep.subr.mxu0 0.0
    %2709 = vmatpush1.msra.mxu0 0.0
    %2710 = vmatprep.subr.mxu0 0.0
    %2711 = vmatpush1.msra.mxu0 0.0
    %2712 = vmatprep.subr.mxu0 0.0
    %2713 = vmatpush1.msra.mxu0 0.0
    %2714 = vmatprep.subr.mxu0 0.0
    %2715 = vmatpush1.msra.mxu0 0.0
    %2716 = vmatprep.subr.mxu0 0.0
    %2717 = vmatpush1.msra.mxu0 0.0
    %2718 = vmatprep.subr.mxu0 0.0
    %2719 = vmatpush1.msra.mxu0 0.0
    %2720 = vmatprep.subr.mxu0 0.0
    %2721 = vmatpush1.msra.mxu0 0.0
    %2722 = vmatprep.subr.mxu0 0.0
    %2723 = vmatpush1.msra.mxu0 0.0
    %2724 = vmatprep.subr.mxu0 0.0
    %2725 = vmatpush1.msra.mxu0 0.0
    %2726 = vmatprep.subr.mxu0 0.0
    %2727 = vmatpush1.msra.mxu0 0.0
    %2728 = vmatprep.subr.mxu0 0.0
    %2729 = vmatpush1.msra.mxu0 0.0
    %2730 = vmatprep.subr.mxu0 0.0
    %2731 = vmatpush1.msra.mxu0 0.0
    %2732 = vmatprep.subr.mxu0 0.0
    %2733 = vmatpush1.msra.mxu0 0.0
    %2734 = vmatprep.subr.mxu0 0.0
    %2735 = vmatpush1.msra.mxu0 0.0
    %2736 = vmatprep.subr.mxu0 0.0
    %2737 = vmatpush1.msra.mxu0 0.0
    %2738 = vmatprep.subr.mxu0 0.0
    %2739 = vmatpush1.msra.mxu0 0.0
    %2740 = vmatprep.subr.mxu0 0.0
    %2741 = vmatpush1.msra.mxu0 0.0
    %2742 = vmatprep.subr.mxu0 0.0
    %2743 = vmatpush1.msra.mxu0 0.0
    %2744 = vmatprep.subr.mxu0 0.0
    %2745 = vmatpush1.msra.mxu0 0.0
    %2746 = vmatprep.subr.mxu0 0.0
    %2747 = vmatpush1.msra.mxu0 0.0
    %2748 = vmatprep.mubr.f32.mxu0 0.0
    %2749 = vmatmul.mubr.f32.gmra.mrb[0].mxu0 %v2611
    %v2750 = vpop.f32.mrb[0].mxu0
    %v2751 = vadd.f32 %v2606, %v2750
    %v2752 = vpop.f32.mrb[0].mxu0
    %2753 = vdwg.mxu0
    %vm2754 = vcmp.lt.s32.totalorder %v36, 16
    %v2758 = vrot.slane %v2680, 6
    %v2759 = vrot.slane %v2682, 6
    %v2760 = vrot.slane %v2751, 6
    %v2764 = vsel %vm2754, %v2680, %v2758
    %v2765 = vsel %vm2754, %v2682, %v2759
    %v2766 = vsel %vm2754, %v2751, %v2760
    %v2768 = vlaneseq
    %v2769 = vshrl.u32 %v2768, 7
    %v2770 = vsub.s32 0, %v2769
    %v2771 = vrot.slane %v2593, %v2770
    %v2772 = vlaneseq
    %v2773 = vshrl.u32 %v2772, 7
    %v2774 = vsub.s32 1, %v2773
    %v2775 = vrot.slane %v2593, %v2774
    %v2776 = vlaneseq
    %v2777 = vshrl.u32 %v2776, 7
    %v2778 = vsub.s32 2, %v2777
    %v2779 = vrot.slane %v2593, %v2778
    %vm2783 = vcmask 261120
    %v2784 = vsel %vm2783, 0.0, 0
    %2786 = vmatprep.subr.mxu0 %v2581
    %2787 = vmatpush1.msra.mxu0 %v2580
    %2788 = vmatprep.subr.mxu0 %v2584
    %2789 = vmatpush1.msra.mxu0 %v2583
    %2790 = vmatprep.subr.mxu0 %v2587
    %2791 = vmatpush1.msra.mxu0 %v2586
    %2792 = vmatprep.subr.mxu0 %v2590
    %2793 = vmatpush1.msra.mxu0 %v2589
    %2794 = vmatprep.subr.mxu0 0.0
    %2795 = vmatpush1.msra.mxu0 0.0
    %2796 = vmatprep.subr.mxu0 0.0
    %2797 = vmatpush1.msra.mxu0 0.0
    %2798 = vmatprep.subr.mxu0 0.0
    %2799 = vmatpush1.msra.mxu0 0.0
    %2800 = vmatprep.subr.mxu0 0.0
    %2801 = vmatpush1.msra.mxu0 0.0
    %2802 = vmatprep.subr.mxu0 0.0
    %2803 = vmatpush1.msra.mxu0 0.0
    %2804 = vmatprep.subr.mxu0 0.0
    %2805 = vmatpush1.msra.mxu0 0.0
    %2806 = vmatprep.subr.mxu0 0.0
    %2807 = vmatpush1.msra.mxu0 0.0
    %2808 = vmatprep.subr.mxu0 0.0
    %2809 = vmatpush1.msra.mxu0 0.0
    %2810 = vmatprep.subr.mxu0 0.0
    %2811 = vmatpush1.msra.mxu0 0.0
    %2812 = vmatprep.subr.mxu0 0.0
    %2813 = vmatpush1.msra.mxu0 0.0
    %2814 = vmatprep.subr.mxu0 0.0
    %2815 = vmatpush1.msra.mxu0 0.0
    %2816 = vmatprep.subr.mxu0 0.0
    %2817 = vmatpush1.msra.mxu0 0.0
    %2818 = vmatprep.subr.mxu0 0.0
    %2819 = vmatpush1.msra.mxu0 0.0
    %2820 = vmatprep.subr.mxu0 0.0
    %2821 = vmatpush1.msra.mxu0 0.0
    %2822 = vmatprep.subr.mxu0 0.0
    %2823 = vmatpush1.msra.mxu0 0.0
    %2824 = vmatprep.subr.mxu0 0.0
    %2825 = vmatpush1.msra.mxu0 0.0
    %2826 = vmatprep.subr.mxu0 0.0
    %2827 = vmatpush1.msra.mxu0 0.0
    %2828 = vmatprep.subr.mxu0 0.0
    %2829 = vmatpush1.msra.mxu0 0.0
    %2830 = vmatprep.subr.mxu0 0.0
    %2831 = vmatpush1.msra.mxu0 0.0
    %2832 = vmatprep.subr.mxu0 0.0
    %2833 = vmatpush1.msra.mxu0 0.0
    %2834 = vmatprep.subr.mxu0 0.0
    %2835 = vmatpush1.msra.mxu0 0.0
    %2836 = vmatprep.subr.mxu0 0.0
    %2837 = vmatpush1.msra.mxu0 0.0
    %2838 = vmatprep.subr.mxu0 0.0
    %2839 = vmatpush1.msra.mxu0 0.0
    %2840 = vmatprep.subr.mxu0 0.0
    %2841 = vmatpush1.msra.mxu0 0.0
    %2842 = vmatprep.subr.mxu0 0.0
    %2843 = vmatpush1.msra.mxu0 0.0
    %2844 = vmatprep.subr.mxu0 0.0
    %2845 = vmatpush1.msra.mxu0 0.0
    %2846 = vmatprep.subr.mxu0 0.0
    %2847 = vmatpush1.msra.mxu0 0.0
    %2848 = vmatprep.subr.mxu0 0.0
    %2849 = vmatpush1.msra.mxu0 0.0
    %2850 = vmatprep.mubr.f32.mxu0 0.0
    %2851 = vmatmul.mubr.f32.gmra.mrb[0].mxu0 %v2784
    %v2852 = vpop.f32.mrb[0].mxu0
    %v2853 = vadd.f32 %v2771, %v2852
    %v2854 = vpop.f32.mrb[0].mxu0
    %v2855 = vadd.f32 %v2775, %v2854
    %2856 = vdwg.mxu0
    %2857 = vmatprep.subr.mxu0 0.0
    %2858 = vmatpush1.msra.mxu0 %v2582
    %2859 = vmatprep.subr.mxu0 0.0
    %2860 = vmatpush1.msra.mxu0 %v2585
    %2861 = vmatprep.subr.mxu0 0.0
    %2862 = vmatpush1.msra.mxu0 %v2588
    %2863 = vmatprep.subr.mxu0 0.0
    %2864 = vmatpush1.msra.mxu0 %v2591
    %2865 = vmatprep.subr.mxu0 0.0
    %2866 = vmatpush1.msra.mxu0 0.0
    %2867 = vmatprep.subr.mxu0 0.0
    %2868 = vmatpush1.msra.mxu0 0.0
    %2869 = vmatprep.subr.mxu0 0.0
    %2870 = vmatpush1.msra.mxu0 0.0
    %2871 = vmatprep.subr.mxu0 0.0
    %2872 = vmatpush1.msra.mxu0 0.0
    %2873 = vmatprep.subr.mxu0 0.0
    %2874 = vmatpush1.msra.mxu0 0.0
    %2875 = vmatprep.subr.mxu0 0.0
    %2876 = vmatpush1.msra.mxu0 0.0
    %2877 = vmatprep.subr.mxu0 0.0
    %2878 = vmatpush1.msra.mxu0 0.0
    %2879 = vmatprep.subr.mxu0 0.0
    %2880 = vmatpush1.msra.mxu0 0.0
    %2881 = vmatprep.subr.mxu0 0.0
    %2882 = vmatpush1.msra.mxu0 0.0
    %2883 = vmatprep.subr.mxu0 0.0
    %2884 = vmatpush1.msra.mxu0 0.0
    %2885 = vmatprep.subr.mxu0 0.0
    %2886 = vmatpush1.msra.mxu0 0.0
    %2887 = vmatprep.subr.mxu0 0.0
    %2888 = vmatpush1.msra.mxu0 0.0
    %2889 = vmatprep.subr.mxu0 0.0
    %2890 = vmatpush1.msra.mxu0 0.0
    %2891 = vmatprep.subr.mxu0 0.0
    %2892 = vmatpush1.msra.mxu0 0.0
    %2893 = vmatprep.subr.mxu0 0.0
    %2894 = vmatpush1.msra.mxu0 0.0
    %2895 = vmatprep.subr.mxu0 0.0
    %2896 = vmatpush1.msra.mxu0 0.0
    %2897 = vmatprep.subr.mxu0 0.0
    %2898 = vmatpush1.msra.mxu0 0.0
    %2899 = vmatprep.subr.mxu0 0.0
    %2900 = vmatpush1.msra.mxu0 0.0
    %2901 = vmatprep.subr.mxu0 0.0
    %2902 = vmatpush1.msra.mxu0 0.0
    %2903 = vmatprep.subr.mxu0 0.0
    %2904 = vmatpush1.msra.mxu0 0.0
    %2905 = vmatprep.subr.mxu0 0.0
    %2906 = vmatpush1.msra.mxu0 0.0
    %2907 = vmatprep.subr.mxu0 0.0
    %2908 = vmatpush1.msra.mxu0 0.0
    %2909 = vmatprep.subr.mxu0 0.0
    %2910 = vmatpush1.msra.mxu0 0.0
    %2911 = vmatprep.subr.mxu0 0.0
    %2912 = vmatpush1.msra.mxu0 0.0
    %2913 = vmatprep.subr.mxu0 0.0
    %2914 = vmatpush1.msra.mxu0 0.0
    %2915 = vmatprep.subr.mxu0 0.0
    %2916 = vmatpush1.msra.mxu0 0.0
    %2917 = vmatprep.subr.mxu0 0.0
    %2918 = vmatpush1.msra.mxu0 0.0
    %2919 = vmatprep.subr.mxu0 0.0
    %2920 = vmatpush1.msra.mxu0 0.0
    %2921 = vmatprep.mubr.f32.mxu0 0.0
    %2922 = vmatmul.mubr.f32.gmra.mrb[0].mxu0 %v2784
    %v2923 = vpop.f32.mrb[0].mxu0
    %v2924 = vadd.f32 %v2779, %v2923
    %v2925 = vpop.f32.mrb[0].mxu0
    %2926 = vdwg.mxu0
    %v2927 = vadd.f32 %v2764, %v2853
    %v2928 = vxor.u32 %v2927, 2147483648
    %v2929 = vmul.f32 %v2928, 1.442695
    %v2930 = vpow.pop %v2929
    %v2931 = vadd.f32 %v2930, 1.0
    %v2932 = vrcp.pop %v2931
    %v2933 = vmul.f32 1.0, %v2932
    %v2934 = vadd.f32 %v2765, %v2855
    %v2935 = vxor.u32 %v2934, 2147483648
    %v2936 = vmul.f32 %v2935, 1.442695
    %v2937 = vpow.pop %v2936
    %v2938 = vadd.f32 %v2937, 1.0
    %v2939 = vrcp.pop %v2938
    %v2940 = vmul.f32 1.0, %v2939
    %v2941 = vmul.f32 %v2933, %v2924
    %v2942 = vadd.f32 %v2766, %v2941
    %v2943 = vtanh.pop %v2942
    %v2944 = vsub.f32 1.0, %v2940
    %v2945 = vmul.f32 %v2944, %v2943
    %v2946 = vmul.f32 %v2940, 0.0
    %v2947 = vadd.f32 %v2945, %v2946
    %v2948 = vrot.slane %v2680, 2
    %v2949 = vrot.slane %v2682, 2
    %v2950 = vrot.slane %v2751, 2
    %v2954 = vrot.slane %v2680, 4
    %v2955 = vrot.slane %v2682, 4
    %v2956 = vrot.slane %v2751, 4
    %v2960 = vsel %vm2754, %v2948, %v2954
    %v2961 = vsel %vm2754, %v2949, %v2955
    %v2962 = vsel %vm2754, %v2950, %v2956
    %v2964 = vsel %vm2783, %v2947, 0
    %2966 = vmatprep.subr.mxu0 %v2581
    %2967 = vmatpush1.msra.mxu0 %v2580
    %2968 = vmatprep.subr.mxu0 %v2584
    %2969 = vmatpush1.msra.mxu0 %v2583
    %2970 = vmatprep.subr.mxu0 %v2587
    %2971 = vmatpush1.msra.mxu0 %v2586
    %2972 = vmatprep.subr.mxu0 %v2590
    %2973 = vmatpush1.msra.mxu0 %v2589
    %2974 = vmatprep.subr.mxu0 0.0
    %2975 = vmatpush1.msra.mxu0 0.0
    %2976 = vmatprep.subr.mxu0 0.0
    %2977 = vmatpush1.msra.mxu0 0.0
    %2978 = vmatprep.subr.mxu0 0.0
    %2979 = vmatpush1.msra.mxu0 0.0
    %2980 = vmatprep.subr.mxu0 0.0
    %2981 = vmatpush1.msra.mxu0 0.0
    %2982 = vmatprep.subr.mxu0 0.0
    %2983 = vmatpush1.msra.mxu0 0.0
    %2984 = vmatprep.subr.mxu0 0.0
    %2985 = vmatpush1.msra.mxu0 0.0
    %2986 = vmatprep.subr.mxu0 0.0
    %2987 = vmatpush1.msra.mxu0 0.0
    %2988 = vmatprep.subr.mxu0 0.0
    %2989 = vmatpush1.msra.mxu0 0.0
    %2990 = vmatprep.subr.mxu0 0.0
    %2991 = vmatpush1.msra.mxu0 0.0
    %2992 = vmatprep.subr.mxu0 0.0
    %2993 = vmatpush1.msra.mxu0 0.0
    %2994 = vmatprep.subr.mxu0 0.0
    %2995 = vmatpush1.msra.mxu0 0.0
    %2996 = vmatprep.subr.mxu0 0.0
    %2997 = vmatpush1.msra.mxu0 0.0
    %2998 = vmatprep.subr.mxu0 0.0
    %2999 = vmatpush1.msra.mxu0 0.0
    %3000 = vmatprep.subr.mxu0 0.0
    %3001 = vmatpush1.msra.mxu0 0.0
    %3002 = vmatprep.subr.mxu0 0.0
    %3003 = vmatpush1.msra.mxu0 0.0
    %3004 = vmatprep.subr.mxu0 0.0
    %3005 = vmatpush1.msra.mxu0 0.0
    %3006 = vmatprep.subr.mxu0 0.0
    %3007 = vmatpush1.msra.mxu0 0.0
    %3008 = vmatprep.subr.mxu0 0.0
    %3009 = vmatpush1.msra.mxu0 0.0
    %3010 = vmatprep.subr.mxu0 0.0
    %3011 = vmatpush1.msra.mxu0 0.0
    %3012 = vmatprep.subr.mxu0 0.0
    %3013 = vmatpush1.msra.mxu0 0.0
    %3014 = vmatprep.subr.mxu0 0.0
    %3015 = vmatpush1.msra.mxu0 0.0
    %3016 = vmatprep.subr.mxu0 0.0
    %3017 = vmatpush1.msra.mxu0 0.0
    %3018 = vmatprep.subr.mxu0 0.0
    %3019 = vmatpush1.msra.mxu0 0.0
    %3020 = vmatprep.subr.mxu0 0.0
    %3021 = vmatpush1.msra.mxu0 0.0
    %3022 = vmatprep.subr.mxu0 0.0
    %3023 = vmatpush1.msra.mxu0 0.0
    %3024 = vmatprep.subr.mxu0 0.0
    %3025 = vmatpush1.msra.mxu0 0.0
    %3026 = vmatprep.subr.mxu0 0.0
    %3027 = vmatpush1.msra.mxu0 0.0
    %3028 = vmatprep.subr.mxu0 0.0
    %3029 = vmatpush1.msra.mxu0 0.0
    %3030 = vmatprep.mubr.f32.mxu0 0.0
    %3031 = vmatmul.mubr.f32.gmra.mrb[0].mxu0 %v2964
    %v3032 = vpop.f32.mrb[0].mxu0
    %v3033 = vadd.f32 %v2771, %v3032
    %v3034 = vpop.f32.mrb[0].mxu0
    %v3035 = vadd.f32 %v2775, %v3034
    %3036 = vdwg.mxu0
    %3037 = vmatprep.subr.mxu0 0.0
    %3038 = vmatpush1.msra.mxu0 %v2582
    %3039 = vmatprep.subr.mxu0 0.0
    %3040 = vmatpush1.msra.mxu0 %v2585
    %3041 = vmatprep.subr.mxu0 0.0
    %3042 = vmatpush1.msra.mxu0 %v2588
    %3043 = vmatprep.subr.mxu0 0.0
    %3044 = vmatpush1.msra.mxu0 %v2591
    %3045 = vmatprep.subr.mxu0 0.0
    %3046 = vmatpush1.msra.mxu0 0.0
    %3047 = vmatprep.subr.mxu0 0.0
    %3048 = vmatpush1.msra.mxu0 0.0
    %3049 = vmatprep.subr.mxu0 0.0
    %3050 = vmatpush1.msra.mxu0 0.0
    %3051 = vmatprep.subr.mxu0 0.0
    %3052 = vmatpush1.msra.mxu0 0.0
    %3053 = vmatprep.subr.mxu0 0.0
    %3054 = vmatpush1.msra.mxu0 0.0
    %3055 = vmatprep.subr.mxu0 0.0
    %3056 = vmatpush1.msra.mxu0 0.0
    %3057 = vmatprep.subr.mxu0 0.0
    %3058 = vmatpush1.msra.mxu0 0.0
    %3059 = vmatprep.subr.mxu0 0.0
    %3060 = vmatpush1.msra.mxu0 0.0
    %3061 = vmatprep.subr.mxu0 0.0
    %3062 = vmatpush1.msra.mxu0 0.0
    %3063 = vmatprep.subr.mxu0 0.0
    %3064 = vmatpush1.msra.mxu0 0.0
    %3065 = vmatprep.subr.mxu0 0.0
    %3066 = vmatpush1.msra.mxu0 0.0
    %3067 = vmatprep.subr.mxu0 0.0
    %3068 = vmatpush1.msra.mxu0 0.0
    %3069 = vmatprep.subr.mxu0 0.0
    %3070 = vmatpush1.msra.mxu0 0.0
    %3071 = vmatprep.subr.mxu0 0.0
    %3072 = vmatpush1.msra.mxu0 0.0
    %3073 = vmatprep.subr.mxu0 0.0
    %3074 = vmatpush1.msra.mxu0 0.0
    %3075 = vmatprep.subr.mxu0 0.0
    %3076 = vmatpush1.msra.mxu0 0.0
    %3077 = vmatprep.subr.mxu0 0.0
    %3078 = vmatpush1.msra.mxu0 0.0
    %3079 = vmatprep.subr.mxu0 0.0
    %3080 = vmatpush1.msra.mxu0 0.0
    %3081 = vmatprep.subr.mxu0 0.0
    %3082 = vmatpush1.msra.mxu0 0.0
    %3083 = vmatprep.subr.mxu0 0.0
    %3084 = vmatpush1.msra.mxu0 0.0
    %3085 = vmatprep.subr.mxu0 0.0
    %3086 = vmatpush1.msra.mxu0 0.0
    %3087 = vmatprep.subr.mxu0 0.0
    %3088 = vmatpush1.msra.mxu0 0.0
    %3089 = vmatprep.subr.mxu0 0.0
    %3090 = vmatpush1.msra.mxu0 0.0
    %3091 = vmatprep.subr.mxu0 0.0
    %3092 = vmatpush1.msra.mxu0 0.0
    %3093 = vmatprep.subr.mxu0 0.0
    %3094 = vmatpush1.msra.mxu0 0.0
    %3095 = vmatprep.subr.mxu0 0.0
    %3096 = vmatpush1.msra.mxu0 0.0
    %3097 = vmatprep.subr.mxu0 0.0
    %3098 = vmatpush1.msra.mxu0 0.0
    %3099 = vmatprep.subr.mxu0 0.0
    %3100 = vmatpush1.msra.mxu0 0.0
    %3101 = vmatprep.mubr.f32.mxu0 0.0
    %3102 = vmatmul.mubr.f32.gmra.mrb[0].mxu0 %v2964
    %v3103 = vpop.f32.mrb[0].mxu0
    %v3104 = vadd.f32 %v2779, %v3103
    %v3105 = vpop.f32.mrb[0].mxu0
    %3106 = vdwg.mxu0
    %v3107 = vadd.f32 %v2960, %v3033
    %v3108 = vxor.u32 %v3107, 2147483648
    %v3109 = vmul.f32 %v3108, 1.442695
    %v3110 = vpow.pop %v3109
    %v3111 = vadd.f32 %v3110, 1.0
    %v3112 = vrcp.pop %v3111
    %v3113 = vmul.f32 1.0, %v3112
    %v3114 = vadd.f32 %v2961, %v3035
    %v3115 = vxor.u32 %v3114, 2147483648
    %v3116 = vmul.f32 %v3115, 1.442695
    %v3117 = vpow.pop %v3116
    %v3118 = vadd.f32 %v3117, 1.0
    %v3119 = vrcp.pop %v3118
    %v3120 = vmul.f32 1.0, %v3119
    %v3121 = vmul.f32 %v3113, %v3104
    %v3122 = vadd.f32 %v2962, %v3121
    %v3123 = vtanh.pop %v3122
    %v3124 = vsub.f32 1.0, %v3120
    %v3125 = vmul.f32 %v3124, %v3123
    %v3126 = vmul.f32 %v3120, %v2947
    %v3127 = vadd.f32 %v3125, %v3126
    %v3128 = vsel %vm2754, %v2954, %v2948
    %v3129 = vsel %vm2754, %v2955, %v2949
    %v3130 = vsel %vm2754, %v2956, %v2950
    %v3132 = vsel %vm2783, %v3127, 0
    %3134 = vmatprep.subr.mxu0 %v2581
    %3135 = vmatpush1.msra.mxu0 %v2580
    %3136 = vmatprep.subr.mxu0 %v2584
    %3137 = vmatpush1.msra.mxu0 %v2583
    %3138 = vmatprep.subr.mxu0 %v2587
    %3139 = vmatpush1.msra.mxu0 %v2586
    %3140 = vmatprep.subr.mxu0 %v2590
    %3141 = vmatpush1.msra.mxu0 %v2589
    %3142 = vmatprep.subr.mxu0 0.0
    %3143 = vmatpush1.msra.mxu0 0.0
    %3144 = vmatprep.subr.mxu0 0.0
    %3145 = vmatpush1.msra.mxu0 0.0
    %3146 = vmatprep.subr.mxu0 0.0
    %3147 = vmatpush1.msra.mxu0 0.0
    %3148 = vmatprep.subr.mxu0 0.0
    %3149 = vmatpush1.msra.mxu0 0.0
    %3150 = vmatprep.subr.mxu0 0.0
    %3151 = vmatpush1.msra.mxu0 0.0
    %3152 = vmatprep.subr.mxu0 0.0
    %3153 = vmatpush1.msra.mxu0 0.0
    %3154 = vmatprep.subr.mxu0 0.0
    %3155 = vmatpush1.msra.mxu0 0.0
    %3156 = vmatprep.subr.mxu0 0.0
    %3157 = vmatpush1.msra.mxu0 0.0
    %3158 = vmatprep.subr.mxu0 0.0
    %3159 = vmatpush1.msra.mxu0 0.0
    %3160 = vmatprep.subr.mxu0 0.0
    %3161 = vmatpush1.msra.mxu0 0.0
    %3162 = vmatprep.subr.mxu0 0.0
    %3163 = vmatpush1.msra.mxu0 0.0
    %3164 = vmatprep.subr.mxu0 0.0
    %3165 = vmatpush1.msra.mxu0 0.0
    %3166 = vmatprep.subr.mxu0 0.0
    %3167 = vmatpush1.msra.mxu0 0.0
    %3168 = vmatprep.subr.mxu0 0.0
    %3169 = vmatpush1.msra.mxu0 0.0
    %3170 = vmatprep.subr.mxu0 0.0
    %3171 = vmatpush1.msra.mxu0 0.0
    %3172 = vmatprep.subr.mxu0 0.0
    %3173 = vmatpush1.msra.mxu0 0.0
    %3174 = vmatprep.subr.mxu0 0.0
    %3175 = vmatpush1.msra.mxu0 0.0
    %3176 = vmatprep.subr.mxu0 0.0
    %3177 = vmatpush1.msra.mxu0 0.0
    %3178 = vmatprep.subr.mxu0 0.0
    %3179 = vmatpush1.msra.mxu0 0.0
    %3180 = vmatprep.subr.mxu0 0.0
    %3181 = vmatpush1.msra.mxu0 0.0
    %3182 = vmatprep.subr.mxu0 0.0
    %3183 = vmatpush1.msra.mxu0 0.0
    %3184 = vmatprep.subr.mxu0 0.0
    %3185 = vmatpush1.msra.mxu0 0.0
    %3186 = vmatprep.subr.mxu0 0.0
    %3187 = vmatpush1.msra.mxu0 0.0
    %3188 = vmatprep.subr.mxu0 0.0
    %3189 = vmatpush1.msra.mxu0 0.0
    %3190 = vmatprep.subr.mxu0 0.0
    %3191 = vmatpush1.msra.mxu0 0.0
    %3192 = vmatprep.subr.mxu0 0.0
    %3193 = vmatpush1.msra.mxu0 0.0
    %3194 = vmatprep.subr.mxu0 0.0
    %3195 = vmatpush1.msra.mxu0 0.0
    %3196 = vmatprep.subr.mxu0 0.0
    %3197 = vmatpush1.msra.mxu0 0.0
    %3198 = vmatprep.mubr.f32.mxu0 0.0
    %3199 = vmatmul.mubr.f32.gmra.mrb[0].mxu0 %v3132
    %v3200 = vpop.f32.mrb[0].mxu0
    %v3201 = vadd.f32 %v2771, %v3200
    %v3202 = vpop.f32.mrb[0].mxu0
    %v3203 = vadd.f32 %v2775, %v3202
    %3204 = vdwg.mxu0
    %3205 = vmatprep.subr.mxu0 0.0
    %3206 = vmatpush1.msra.mxu0 %v2582
    %3207 = vmatprep.subr.mxu0 0.0
    %3208 = vmatpush1.msra.mxu0 %v2585
    %3209 = vmatprep.subr.mxu0 0.0
    %3210 = vmatpush1.msra.mxu0 %v2588
    %3211 = vmatprep.subr.mxu0 0.0
    %3212 = vmatpush1.msra.mxu0 %v2591
    %3213 = vmatprep.subr.mxu0 0.0
    %3214 = vmatpush1.msra.mxu0 0.0
    %3215 = vmatprep.subr.mxu0 0.0
    %3216 = vmatpush1.msra.mxu0 0.0
    %3217 = vmatprep.subr.mxu0 0.0
    %3218 = vmatpush1.msra.mxu0 0.0
    %3219 = vmatprep.subr.mxu0 0.0
    %3220 = vmatpush1.msra.mxu0 0.0
    %3221 = vmatprep.subr.mxu0 0.0
    %3222 = vmatpush1.msra.mxu0 0.0
    %3223 = vmatprep.subr.mxu0 0.0
    %3224 = vmatpush1.msra.mxu0 0.0
    %3225 = vmatprep.subr.mxu0 0.0
    %3226 = vmatpush1.msra.mxu0 0.0
    %3227 = vmatprep.subr.mxu0 0.0
    %3228 = vmatpush1.msra.mxu0 0.0
    %3229 = vmatprep.subr.mxu0 0.0
    %3230 = vmatpush1.msra.mxu0 0.0
    %3231 = vmatprep.subr.mxu0 0.0
    %3232 = vmatpush1.msra.mxu0 0.0
    %3233 = vmatprep.subr.mxu0 0.0
    %3234 = vmatpush1.msra.mxu0 0.0
    %3235 = vmatprep.subr.mxu0 0.0
    %3236 = vmatpush1.msra.mxu0 0.0
    %3237 = vmatprep.subr.mxu0 0.0
    %3238 = vmatpush1.msra.mxu0 0.0
    %3239 = vmatprep.subr.mxu0 0.0
    %3240 = vmatpush1.msra.mxu0 0.0
    %3241 = vmatprep.subr.mxu0 0.0
    %3242 = vmatpush1.msra.mxu0 0.0
    %3243 = vmatprep.subr.mxu0 0.0
    %3244 = vmatpush1.msra.mxu0 0.0
    %3245 = vmatprep.subr.mxu0 0.0
    %3246 = vmatpush1.msra.mxu0 0.0
    %3247 = vmatprep.subr.mxu0 0.0
    %3248 = vmatpush1.msra.mxu0 0.0
    %3249 = vmatprep.subr.mxu0 0.0
    %3250 = vmatpush1.msra.mxu0 0.0
    %3251 = vmatprep.subr.mxu0 0.0
    %3252 = vmatpush1.msra.mxu0 0.0
    %3253 = vmatprep.subr.mxu0 0.0
    %3254 = vmatpush1.msra.mxu0 0.0
    %3255 = vmatprep.subr.mxu0 0.0
    %3256 = vmatpush1.msra.mxu0 0.0
    %3257 = vmatprep.subr.mxu0 0.0
    %3258 = vmatpush1.msra.mxu0 0.0
    %3259 = vmatprep.subr.mxu0 0.0
    %3260 = vmatpush1.msra.mxu0 0.0
    %3261 = vmatprep.subr.mxu0 0.0
    %3262 = vmatpush1.msra.mxu0 0.0
    %3263 = vmatprep.subr.mxu0 0.0
    %3264 = vmatpush1.msra.mxu0 0.0
    %3265 = vmatprep.subr.mxu0 0.0
    %3266 = vmatpush1.msra.mxu0 0.0
    %3267 = vmatprep.subr.mxu0 0.0
    %3268 = vmatpush1.msra.mxu0 0.0
    %3269 = vmatprep.mubr.f32.mxu0 0.0
    %3270 = vmatmul.mubr.f32.gmra.mrb[0].mxu0 %v3132
    %v3271 = vpop.f32.mrb[0].mxu0
    %v3272 = vadd.f32 %v2779, %v3271
    %v3273 = vpop.f32.mrb[0].mxu0
    %3274 = vdwg.mxu0
    %v3275 = vadd.f32 %v3128, %v3201
    %v3276 = vxor.u32 %v3275, 2147483648
    %v3277 = vmul.f32 %v3276, 1.442695
    %v3278 = vpow.pop %v3277
    %v3279 = vadd.f32 %v3278, 1.0
    %v3280 = vrcp.pop %v3279
    %v3281 = vmul.f32 1.0, %v3280
    %v3282 = vadd.f32 %v3129, %v3203
    %v3283 = vxor.u32 %v3282, 2147483648
    %v3284 = vmul.f32 %v3283, 1.442695
    %v3285 = vpow.pop %v3284
    %v3286 = vadd.f32 %v3285, 1.0
    %v3287 = vrcp.pop %v3286
    %v3288 = vmul.f32 1.0, %v3287
    %v3289 = vmul.f32 %v3281, %v3272
    %v3290 = vadd.f32 %v3130, %v3289
    %v3291 = vtanh.pop %v3290
    %v3292 = vsub.f32 1.0, %v3288
    %v3293 = vmul.f32 %v3292, %v3291
    %v3294 = vmul.f32 %v3288, %v3127
    %v3295 = vadd.f32 %v3293, %v3294
    %v3296 = vsel %vm2754, %v2758, %v2680
    %v3297 = vsel %vm2754, %v2759, %v2682
    %v3298 = vsel %vm2754, %v2760, %v2751
    %v3300 = vsel %vm2783, %v3295, 0
    %3302 = vmatprep.subr.mxu0 %v2581
    %3303 = vmatpush1.msra.mxu0 %v2580
    %3304 = vmatprep.subr.mxu0 %v2584
    %3305 = vmatpush1.msra.mxu0 %v2583
    %3306 = vmatprep.subr.mxu0 %v2587
    %3307 = vmatpush1.msra.mxu0 %v2586
    %3308 = vmatprep.subr.mxu0 %v2590
    %3309 = vmatpush1.msra.mxu0 %v2589
    %3310 = vmatprep.subr.mxu0 0.0
    %3311 = vmatpush1.msra.mxu0 0.0
    %3312 = vmatprep.subr.mxu0 0.0
    %3313 = vmatpush1.msra.mxu0 0.0
    %3314 = vmatprep.subr.mxu0 0.0
    %3315 = vmatpush1.msra.mxu0 0.0
    %3316 = vmatprep.subr.mxu0 0.0
    %3317 = vmatpush1.msra.mxu0 0.0
    %3318 = vmatprep.subr.mxu0 0.0
    %3319 = vmatpush1.msra.mxu0 0.0
    %3320 = vmatprep.subr.mxu0 0.0
    %3321 = vmatpush1.msra.mxu0 0.0
    %3322 = vmatprep.subr.mxu0 0.0
    %3323 = vmatpush1.msra.mxu0 0.0
    %3324 = vmatprep.subr.mxu0 0.0
    %3325 = vmatpush1.msra.mxu0 0.0
    %3326 = vmatprep.subr.mxu0 0.0
    %3327 = vmatpush1.msra.mxu0 0.0
    %3328 = vmatprep.subr.mxu0 0.0
    %3329 = vmatpush1.msra.mxu0 0.0
    %3330 = vmatprep.subr.mxu0 0.0
    %3331 = vmatpush1.msra.mxu0 0.0
    %3332 = vmatprep.subr.mxu0 0.0
    %3333 = vmatpush1.msra.mxu0 0.0
    %3334 = vmatprep.subr.mxu0 0.0
    %3335 = vmatpush1.msra.mxu0 0.0
    %3336 = vmatprep.subr.mxu0 0.0
    %3337 = vmatpush1.msra.mxu0 0.0
    %3338 = vmatprep.subr.mxu0 0.0
    %3339 = vmatpush1.msra.mxu0 0.0
    %3340 = vmatprep.subr.mxu0 0.0
    %3341 = vmatpush1.msra.mxu0 0.0
    %3342 = vmatprep.subr.mxu0 0.0
    %3343 = vmatpush1.msra.mxu0 0.0
    %3344 = vmatprep.subr.mxu0 0.0
    %3345 = vmatpush1.msra.mxu0 0.0
    %3346 = vmatprep.subr.mxu0 0.0
    %3347 = vmatpush1.msra.mxu0 0.0
    %3348 = vmatprep.subr.mxu0 0.0
    %3349 = vmatpush1.msra.mxu0 0.0
    %3350 = vmatprep.subr.mxu0 0.0
    %3351 = vmatpush1.msra.mxu0 0.0
    %3352 = vmatprep.subr.mxu0 0.0
    %3353 = vmatpush1.msra.mxu0 0.0
    %3354 = vmatprep.subr.mxu0 0.0
    %3355 = vmatpush1.msra.mxu0 0.0
    %3356 = vmatprep.subr.mxu0 0.0
    %3357 = vmatpush1.msra.mxu0 0.0
    %3358 = vmatprep.subr.mxu0 0.0
    %3359 = vmatpush1.msra.mxu0 0.0
    %3360 = vmatprep.subr.mxu0 0.0
    %3361 = vmatpush1.msra.mxu0 0.0
    %3362 = vmatprep.subr.mxu0 0.0
    %3363 = vmatpush1.msra.mxu0 0.0
    %3364 = vmatprep.subr.mxu0 0.0
    %3365 = vmatpush1.msra.mxu0 0.0
    %3366 = vmatprep.mubr.f32.mxu0 0.0
    %3367 = vmatmul.mubr.f32.gmra.mrb[0].mxu0 %v3300
    %v3368 = vpop.f32.mrb[0].mxu0
    %v3369 = vadd.f32 %v2771, %v3368
    %v3370 = vpop.f32.mrb[0].mxu0
    %v3371 = vadd.f32 %v2775, %v3370
    %3372 = vdwg.mxu0
    %3373 = vmatprep.subr.mxu0 0.0
    %3374 = vmatpush1.msra.mxu0 %v2582
    %3375 = vmatprep.subr.mxu0 0.0
    %3376 = vmatpush1.msra.mxu0 %v2585
    %3377 = vmatprep.subr.mxu0 0.0
    %3378 = vmatpush1.msra.mxu0 %v2588
    %3379 = vmatprep.subr.mxu0 0.0
    %3380 = vmatpush1.msra.mxu0 %v2591
    %3381 = vmatprep.subr.mxu0 0.0
    %3382 = vmatpush1.msra.mxu0 0.0
    %3383 = vmatprep.subr.mxu0 0.0
    %3384 = vmatpush1.msra.mxu0 0.0
    %3385 = vmatprep.subr.mxu0 0.0
    %3386 = vmatpush1.msra.mxu0 0.0
    %3387 = vmatprep.subr.mxu0 0.0
    %3388 = vmatpush1.msra.mxu0 0.0
    %3389 = vmatprep.subr.mxu0 0.0
    %3390 = vmatpush1.msra.mxu0 0.0
    %3391 = vmatprep.subr.mxu0 0.0
    %3392 = vmatpush1.msra.mxu0 0.0
    %3393 = vmatprep.subr.mxu0 0.0
    %3394 = vmatpush1.msra.mxu0 0.0
    %3395 = vmatprep.subr.mxu0 0.0
    %3396 = vmatpush1.msra.mxu0 0.0
    %3397 = vmatprep.subr.mxu0 0.0
    %3398 = vmatpush1.msra.mxu0 0.0
    %3399 = vmatprep.subr.mxu0 0.0
    %3400 = vmatpush1.msra.mxu0 0.0
    %3401 = vmatprep.subr.mxu0 0.0
    %3402 = vmatpush1.msra.mxu0 0.0
    %3403 = vmatprep.subr.mxu0 0.0
    %3404 = vmatpush1.msra.mxu0 0.0
    %3405 = vmatprep.subr.mxu0 0.0
    %3406 = vmatpush1.msra.mxu0 0.0
    %3407 = vmatprep.subr.mxu0 0.0
    %3408 = vmatpush1.msra.mxu0 0.0
    %3409 = vmatprep.subr.mxu0 0.0
    %3410 = vmatpush1.msra.mxu0 0.0
    %3411 = vmatprep.subr.mxu0 0.0
    %3412 = vmatpush1.msra.mxu0 0.0
    %3413 = vmatprep.subr.mxu0 0.0
    %3414 = vmatpush1.msra.mxu0 0.0
    %3415 = vmatprep.subr.mxu0 0.0
    %3416 = vmatpush1.msra.mxu0 0.0
    %3417 = vmatprep.subr.mxu0 0.0
    %3418 = vmatpush1.msra.mxu0 0.0
    %3419 = vmatprep.subr.mxu0 0.0
    %3420 = vmatpush1.msra.mxu0 0.0
    %3421 = vmatprep.subr.mxu0 0.0
    %3422 = vmatpush1.msra.mxu0 0.0
    %3423 = vmatprep.subr.mxu0 0.0
    %3424 = vmatpush1.msra.mxu0 0.0
    %3425 = vmatprep.subr.mxu0 0.0
    %3426 = vmatpush1.msra.mxu0 0.0
    %3427 = vmatprep.subr.mxu0 0.0
    %3428 = vmatpush1.msra.mxu0 0.0
    %3429 = vmatprep.subr.mxu0 0.0
    %3430 = vmatpush1.msra.mxu0 0.0
    %3431 = vmatprep.subr.mxu0 0.0
    %3432 = vmatpush1.msra.mxu0 0.0
    %3433 = vmatprep.subr.mxu0 0.0
    %3434 = vmatpush1.msra.mxu0 0.0
    %3435 = vmatprep.subr.mxu0 0.0
    %3436 = vmatpush1.msra.mxu0 0.0
    %3437 = vmatprep.mubr.f32.mxu0 0.0
    %3438 = vmatmul.mubr.f32.gmra.mrb[0].mxu0 %v3300
    %v3439 = vpop.f32.mrb[0].mxu0
    %v3440 = vadd.f32 %v2779, %v3439
    %v3441 = vpop.f32.mrb[0].mxu0
    %3442 = vdwg.mxu0
    %v3443 = vadd.f32 %v3296, %v3369
    %v3444 = vxor.u32 %v3443, 2147483648
    %v3445 = vmul.f32 %v3444, 1.442695
    %v3446 = vpow.pop %v3445
    %v3447 = vadd.f32 %v3446, 1.0
    %v3448 = vrcp.pop %v3447
    %v3449 = vmul.f32 1.0, %v3448
    %v3450 = vadd.f32 %v3297, %v3371
    %v3451 = vxor.u32 %v3450, 2147483648
    %v3452 = vmul.f32 %v3451, 1.442695
    %v3453 = vpow.pop %v3452
    %v3454 = vadd.f32 %v3453, 1.0
    %v3455 = vrcp.pop %v3454
    %v3456 = vmul.f32 1.0, %v3455
    %v3457 = vmul.f32 %v3449, %v3440
    %v3458 = vadd.f32 %v3298, %v3457
    %v3459 = vtanh.pop %v3458
    %v3460 = vsub.f32 1.0, %v3456
    %v3461 = vmul.f32 %v3460, %v3459
    %v3462 = vmul.f32 %v3456, %v3295
    %v3463 = vadd.f32 %v3461, %v3462
    %v3464 = vsel %vm2754, %v2947, %v3463
    %v3465 = vsel %vm2754, %v3127, %v3295
    %v3466 = vsel %vm2754, %v3295, %v3127
    %v3467 = vsel %vm2754, %v3463, %v2947
    %v3468 = vld [vmem:[#allocation2 + $0x300] sm:$0xff]
    %v3469 = vld [vmem:[#allocation2 + $0x318] sm:$0xff]
    %v3470 = vld [vmem:[#allocation2 + $0x330] sm:$0xff]
    %v3471 = vld [vmem:[#allocation2 + $0x348] sm:$0xff]
    %v3472 = vld [vmem:[#allocation2 + $0x360] ss:$0 sm:$0xff]
    %v3473 = vld [vmem:[#allocation2 + $0x378] ss:$0 sm:$0xff]
    %v3475 = vrot.slane %v3465, 6
    %v3478 = vrot.slane %v3466, 4
    %v3481 = vrot.slane %v3467, 2
    %vm3483 = vcmask 1041408
    %v3484 = vsel %vm3483, %v3464, %v3475
    %vm3485 = vcmask 1043456
    %v3486 = vsel %vm3485, %v3484, %v3478
    %vm3487 = vcmask 1045504
    %v3488 = vsel %vm3487, %v3486, %v3481
    %v3490 = vsel %vm2783, %v3488, 0
    %3492 = vmatprep.subr.mxu0 0.0
    %3493 = vmatpush1.msra.mxu0 %v3468
    %3494 = vmatprep.subr.mxu0 0.0
    %3495 = vmatpush1.msra.mxu0 %v3469
    %3496 = vmatprep.subr.mxu0 0.0
    %3497 = vmatpush1.msra.mxu0 %v3470
    %3498 = vmatprep.subr.mxu0 0.0
    %3499 = vmatpush1.msra.mxu0 %v3471
    %3500 = vmatprep.subr.mxu0 0.0
    %3501 = vmatpush1.msra.mxu0 0.0
    %3502 = vmatprep.subr.mxu0 0.0
    %3503 = vmatpush1.msra.mxu0 0.0
    %3504 = vmatprep.subr.mxu0 0.0
    %3505 = vmatpush1.msra.mxu0 0.0
    %3506 = vmatprep.subr.mxu0 0.0
    %3507 = vmatpush1.msra.mxu0 0.0
    %3508 = vmatprep.subr.mxu0 0.0
    %3509 = vmatpush1.msra.mxu0 0.0
    %3510 = vmatprep.subr.mxu0 0.0
    %3511 = vmatpush1.msra.mxu0 0.0
    %3512 = vmatprep.subr.mxu0 0.0
    %3513 = vmatpush1.msra.mxu0 0.0
    %3514 = vmatprep.subr.mxu0 0.0
    %3515 = vmatpush1.msra.mxu0 0.0
    %3516 = vmatprep.subr.mxu0 0.0
    %3517 = vmatpush1.msra.mxu0 0.0
    %3518 = vmatprep.subr.mxu0 0.0
    %3519 = vmatpush1.msra.mxu0 0.0
    %3520 = vmatprep.subr.mxu0 0.0
    %3521 = vmatpush1.msra.mxu0 0.0
    %3522 = vmatprep.subr.mxu0 0.0
    %3523 = vmatpush1.msra.mxu0 0.0
    %3524 = vmatprep.subr.mxu0 0.0
    %3525 = vmatpush1.msra.mxu0 0.0
    %3526 = vmatprep.subr.mxu0 0.0
    %3527 = vmatpush1.msra.mxu0 0.0
    %3528 = vmatprep.subr.mxu0 0.0
    %3529 = vmatpush1.msra.mxu0 0.0
    %3530 = vmatprep.subr.mxu0 0.0
    %3531 = vmatpush1.msra.mxu0 0.0
    %3532 = vmatprep.subr.mxu0 0.0
    %3533 = vmatpush1.msra.mxu0 0.0
    %3534 = vmatprep.subr.mxu0 0.0
    %3535 = vmatpush1.msra.mxu0 0.0
    %3536 = vmatprep.subr.mxu0 0.0
    %3537 = vmatpush1.msra.mxu0 0.0
    %3538 = vmatprep.subr.mxu0 0.0
    %3539 = vmatpush1.msra.mxu0 0.0
    %3540 = vmatprep.subr.mxu0 0.0
    %3541 = vmatpush1.msra.mxu0 0.0
    %3542 = vmatprep.subr.mxu0 0.0
    %3543 = vmatpush1.msra.mxu0 0.0
    %3544 = vmatprep.subr.mxu0 0.0
    %3545 = vmatpush1.msra.mxu0 0.0
    %3546 = vmatprep.subr.mxu0 0.0
    %3547 = vmatpush1.msra.mxu0 0.0
    %3548 = vmatprep.subr.mxu0 0.0
    %3549 = vmatpush1.msra.mxu0 0.0
    %3550 = vmatprep.subr.mxu0 0.0
    %3551 = vmatpush1.msra.mxu0 0.0
    %3552 = vmatprep.subr.mxu0 0.0
    %3553 = vmatpush1.msra.mxu0 0.0
    %3554 = vmatprep.subr.mxu0 0.0
    %3555 = vmatpush1.msra.mxu0 0.0
    %3556 = vmatprep.mubr.f32.mxu0 0.0
    %3557 = vmatmul.mubr.f32.gmra.mrb[0].mxu0 %v3490
    %v3558 = vpop.f32.mrb[0].mxu0
    %v3559 = vadd.f32 %v3472, %v3558
    %v3560 = vpop.f32.mrb[0].mxu0
    %3561 = vdwg.mxu0
    %v3562 = vtanh.pop %v3559
    %v3563 = vmul.f32 %v3562, %v3473
    %v3564 = vsel %vm2783, %v3563, 0.0
    %3565 = vadd.xlane.f32.xlu0 %v3564
    %v3566 = vpop.xlane.xlu0 %3565
    %v3568 = vrot.slane %v3566, 2
    %v3570 = vmax.f32 %v3566, %v3568
    %v3571 = vrot.slane %v3566, 4
    %v3573 = vmax.f32 %v3570, %v3571
    %v3574 = vrot.slane %v3566, 6
    %v3576 = vmax.f32 %v3573, %v3574
    %v3577 = vsub.f32 %v3566, %v3576
    %v3578 = vmul.f32 %v3577, 1.442695
    %v3579 = vpow.pop %v3578
    %v3581 = vrot.slane %v3576, 6
    %v3583 = vsub.f32 %v3566, %v3581
    %v3584 = vmul.f32 %v3583, 1.442695
    %v3585 = vpow.pop %v3584
    %v3586 = vrot.slane %v3576, 4
    %v3588 = vsub.f32 %v3566, %v3586
    %v3589 = vmul.f32 %v3588, 1.442695
    %v3590 = vpow.pop %v3589
    %v3591 = vrot.slane %v3576, 2
    %v3593 = vsub.f32 %v3566, %v3591
    %v3594 = vmul.f32 %v3593, 1.442695
    %v3595 = vpow.pop %v3594
    %v3597 = vrot.slane %v3585, 2
    %v3599 = vadd.f32 %v3579, %v3597
    %v3601 = vrot.slane %v3590, 4
    %v3603 = vadd.f32 %v3599, %v3601
    %v3605 = vrot.slane %v3595, 6
    %v3607 = vadd.f32 %v3603, %v3605
    %v3608 = vrcp.pop %v3607
    %v3609 = vmul.f32 1.0, %v3608
    %v3610 = vmul.f32 %v3579, %v3609
    %3612 = vset.pattern.permute.xlu0 0
    %3613 = vperm.xlu0 %3612, %v3610
    %v3614 = vpop.permute.xlu0 %3613
    %v3616 = vmul.f32 %v3614, %v3464
    %v3618 = vrot.slane %v3609, 6
    %v3620 = vmul.f32 %v3585, %v3618
    %3622 = vset.pattern.permute.xlu0 0
    %3623 = vperm.xlu0 %3622, %v3620
    %v3624 = vpop.permute.xlu0 %3623
    %v3626 = vmul.f32 %v3624, %v3475
    %v3628 = vrot.slane %v3626, 2
    %v3630 = vadd.f32 %v3616, %v3628
    %v3631 = vrot.slane %v3609, 4
    %v3633 = vmul.f32 %v3590, %v3631
    %3635 = vset.pattern.permute.xlu0 0
    %3636 = vperm.xlu0 %3635, %v3633
    %v3637 = vpop.permute.xlu0 %3636
    %v3639 = vmul.f32 %v3637, %v3478
    %v3641 = vrot.slane %v3639, 4
    %v3643 = vadd.f32 %v3630, %v3641
    %v3644 = vrot.slane %v3609, 2
    %v3646 = vmul.f32 %v3595, %v3644
    %3648 = vset.pattern.permute.xlu0 0
    %3649 = vperm.xlu0 %3648, %v3646
    %v3650 = vpop.permute.xlu0 %3649
    %v3652 = vmul.f32 %v3650, %v3481
    %v3654 = vrot.slane %v3652, 6
    %v3656 = vadd.f32 %v3643, %v3654
    %v3657 = vld [vmem:[#allocation2 + $0x390] sm:$0xff]
    %v3658 = vld [vmem:[#allocation2 + $0x3a8] sm:$0xff]
    %v3659 = vld [vmem:[#allocation2 + $0x3c0] sm:$0xff]
    %v3660 = vld [vmem:[#allocation2 + $0x3d8] sm:$0xff]
    %v3661 = vld [vmem:[#allocation2 + $0x3f0] ss:$0 sm:$0xff]
    %v3663 = vsel %vm2783, %v3656, 0
    %3665 = vmatprep.subr.mxu0 0.0
    %3666 = vmatpush1.msra.mxu0 %v3657
    %3667 = vmatprep.subr.mxu0 0.0
    %3668 = vmatpush1.msra.mxu0 %v3658
    %3669 = vmatprep.subr.mxu0 0.0
    %3670 = vmatpush1.msra.mxu0 %v3659
    %3671 = vmatprep.subr.mxu0 0.0
    %3672 = vmatpush1.msra.mxu0 %v3660
    %3673 = vmatprep.subr.mxu0 0.0
    %3674 = vmatpush1.msra.mxu0 0.0
    %3675 = vmatprep.subr.mxu0 0.0
    %3676 = vmatpush1.msra.mxu0 0.0
    %3677 = vmatprep.subr.mxu0 0.0
    %3678 = vmatpush1.msra.mxu0 0.0
    %3679 = vmatprep.subr.mxu0 0.0
    %3680 = vmatpush1.msra.mxu0 0.0
    %3681 = vmatprep.subr.mxu0 0.0
    %3682 = vmatpush1.msra.mxu0 0.0
    %3683 = vmatprep.subr.mxu0 0.0
    %3684 = vmatpush1.msra.mxu0 0.0
    %3685 = vmatprep.subr.mxu0 0.0
    %3686 = vmatpush1.msra.mxu0 0.0
    %3687 = vmatprep.subr.mxu0 0.0
    %3688 = vmatpush1.msra.mxu0 0.0
    %3689 = vmatprep.subr.mxu0 0.0
    %3690 = vmatpush1.msra.mxu0 0.0
    %3691 = vmatprep.subr.mxu0 0.0
    %3692 = vmatpush1.msra.mxu0 0.0
    %3693 = vmatprep.subr.mxu0 0.0
    %3694 = vmatpush1.msra.mxu0 0.0
    %3695 = vmatprep.subr.mxu0 0.0
    %3696 = vmatpush1.msra.mxu0 0.0
    %3697 = vmatprep.subr.mxu0 0.0
    %3698 = vmatpush1.msra.mxu0 0.0
    %3699 = vmatprep.subr.mxu0 0.0
    %3700 = vmatpush1.msra.mxu0 0.0
    %3701 = vmatprep.subr.mxu0 0.0
    %3702 = vmatpush1.msra.mxu0 0.0
    %3703 = vmatprep.subr.mxu0 0.0
    %3704 = vmatpush1.msra.mxu0 0.0
    %3705 = vmatprep.subr.mxu0 0.0
    %3706 = vmatpush1.msra.mxu0 0.0
    %3707 = vmatprep.subr.mxu0 0.0
    %3708 = vmatpush1.msra.mxu0 0.0
    %3709 = vmatprep.subr.mxu0 0.0
    %3710 = vmatpush1.msra.mxu0 0.0
    %3711 = vmatprep.subr.mxu0 0.0
    %3712 = vmatpush1.msra.mxu0 0.0
    %3713 = vmatprep.subr.mxu0 0.0
    %3714 = vmatpush1.msra.mxu0 0.0
    %3715 = vmatprep.subr.mxu0 0.0
    %3716 = vmatpush1.msra.mxu0 0.0
    %3717 = vmatprep.subr.mxu0 0.0
    %3718 = vmatpush1.msra.mxu0 0.0
    %3719 = vmatprep.subr.mxu0 0.0
    %3720 = vmatpush1.msra.mxu0 0.0
    %3721 = vmatprep.subr.mxu0 0.0
    %3722 = vmatpush1.msra.mxu0 0.0
    %3723 = vmatprep.subr.mxu0 0.0
    %3724 = vmatpush1.msra.mxu0 0.0
    %3725 = vmatprep.subr.mxu0 0.0
    %3726 = vmatpush1.msra.mxu0 0.0
    %3727 = vmatprep.subr.mxu0 0.0
    %3728 = vmatpush1.msra.mxu0 0.0
    %3729 = vmatprep.mubr.f32.mxu0 0.0
    %3730 = vmatmul.mubr.f32.gmra.mrb[0].mxu0 %v3663
    %v3731 = vpop.f32.mrb[0].mxu0
    %v3732 = vadd.f32 %v3661, %v3731
    %v3733 = vpop.f32.mrb[0].mxu0
    %3734 = vdwg.mxu0
    %vm3735 = vcmask 9216
    %3736 = vst.msk [vmem:[#allocation5] sm:$0x3] %vm3735, %v3732
    // Predicated region
    $region14: #{_lambda_.1} parent=1 // pred_check
      _
    $region15: #{_lambda_.1} parent=1 // pred_check_branch
      %3738 = sbr.rel (0) target = $region17
    $region16: #{_lambda_.1} parent=1 // pred_region
      %s3740 = ssub.s32 32, 32
      %3741 = vsyncadd [#allocation4], %s3740
      %s3743 = sshll.u32 [#allocation5], 4
      %s3744 = int_to_ptr.vmem [resolvable:$true] %s3743
      %3746 = dma.vmem_to_hbm [thread:$0]  %s3744, 32, %s2, [#allocation4]
    $region17: #{_lambda_.1} parent=1 // pred_fallthru
      _
    // Predicated region
    $region18: #{_lambda_.1} parent=1 // pred_check
      _
    $region19: #{_lambda_.1} parent=1 // pred_check_branch
      %3748 = sbr.rel (0) target = $region21
    $region20: #{_lambda_.1} parent=1 // pred_region
      %3749 = dma.done [#allocation4], 32
    $region21: #{_lambda_.1} parent=1 // pred_fallthru
      _
    %3750 = vsyncpa [#allocation3], 1
    %3751 = vsyncpa [#allocation4], 1

</llo_original>
